<compile_context>
chip_gen: v5e
topology: v5e:2x2
jax: 0.10.0
libtpu: 0.0.40
codegen_flags: <defaults>
</compile_context>

<pallas_src>
import jax
import jax.numpy as jnp
from jax.experimental import pallas as pl
from jax.experimental.pallas import tpu as pltpu

STATE_SIZE = 32      # d_model
N_STATES = 8         # number of state vectors fed to the critic
NHEAD = 4
FFN = 2048           # nn.TransformerEncoderLayer default dim_feedforward
NUM_LAYERS = 2
EPS = 1e-5           # LayerNorm eps (PyTorch default)

# packed small-f32 slab layout (width = STATE_SIZE):
#   rows [0 : 14)              per-layer [b_attn, ln1_w, ln1_b, b2, ln2_w, ln2_b] x2,
#                              then wc row, bc row
#   rows [14 : 16)             padding (sublane alignment)
#   rows [16 + li*D : 16+(li+1)*D)   w_attn for layer li, (D, D)
_VEC = 6
_VEC_ROWS = NUM_LAYERS * _VEC + 2          # 14
_VEC_PAD = 16
SMALL_ROWS = _VEC_PAD + NUM_LAYERS * STATE_SIZE   # 80


def _layernorm(h, w, b):
    # one-pass LN: two independent reduces, var = E[x^2] - mu^2
    mu = jnp.mean(h, axis=-1, keepdims=True)
    ms = jnp.mean(h * h, axis=-1, keepdims=True)
    var = ms - mu * mu
    return (h - mu) * jax.lax.rsqrt(var + EPS) * w + b


def critic_kernel(x_ref, small_ref, b1_ref, w_ref, out_ref):
    D = STATE_SIZE
    x = x_ref[...].astype(jnp.float32)
    vecs = small_ref[0:_VEC_PAD, :]                       # (16, D) f32 small params

    for li in range(NUM_LAYERS):
        r = _VEC * li
        b_attn = vecs[r + 0:r + 1, :]
        ln1w, ln1b = vecs[r + 1:r + 2, :], vecs[r + 2:r + 3, :]
        b2 = vecs[r + 3:r + 4, :]
        ln2w, ln2b = vecs[r + 4:r + 5, :], vecs[r + 5:r + 6, :]

        w_attn = small_ref[_VEC_PAD + li * D:_VEC_PAD + (li + 1) * D, :].astype(jnp.bfloat16)
        w1 = w_ref[li * 2 * D:li * 2 * D + D, :]          # (D, FFN) bf16
        w2t = w_ref[li * 2 * D + D:(li + 1) * 2 * D, :]   # (D, FFN) bf16, lane-dense
        b1 = b1_ref[li:li + 1, :]                         # (1, FFN) f32

        # --- attention block (seq_len==1 => softmax==1): one bf16 MXU matmul;
        #     residual x added exactly in f32 on the VPU ---
        att = jnp.dot(x.astype(jnp.bfloat16), w_attn,
                      preferred_element_type=jnp.float32)
        h = _layernorm(att + x + b_attn, ln1w, ln1b)

        # --- FFN: Linear(D->FFN) -> ReLU -> Linear(FFN->D), bf16 MXU / f32 accum ---
        ff = jnp.dot(h.astype(jnp.bfloat16), w1,
                     preferred_element_type=jnp.float32) + b1
        ff = jnp.maximum(ff, 0.0)
        # second matmul: NT contraction over the FFN axis against lane-dense w2t
        ff = jax.lax.dot_general(
            ff.astype(jnp.bfloat16), w2t,
            dimension_numbers=(((1,), (1,)), ((), ())),
            preferred_element_type=jnp.float32) + b2
        x = _layernorm(h + ff, ln2w, ln2b)

    # --- value head: VPU broadcast-multiply + lane reduce (no 1-wide MXU matmul) ---
    wc = vecs[_VEC_ROWS - 2:_VEC_ROWS - 1, :]             # (1, D)
    bc = vecs[_VEC_ROWS - 1:_VEC_ROWS, 0:1]               # (1, 1)
    # TODO(synk): for N >= ~512, emit a lane-dense (1, tm) output block instead of (tm, 1).
    out_ref[...] = (jnp.sum(x * wc, axis=-1, keepdims=True) + bc).astype(out_ref.dtype)


def _round_up(n, m):
    return (n + m - 1) // m * m


def _pick_row_tile(n8):
    """One grid step on v5e/v6e (single TC); >=2 parallel steps on v7x when N allows."""
    kind = ""
    try:
        kind = jax.devices()[0].device_kind.lower()
    except Exception:
        pass
    two_tc = ("v7" in kind) or ("7x" in kind)
    if two_tc and n8 >= 16:
        return min(512, _round_up(pl.cdiv(n8, 2), 8))     # shard rows across 2 TCs
    return min(512, n8)                                   # single step, serial grid anyway


def critic_forward(x, slabs):
    """x: (N, D) float32.  Returns state values (N, 1) float32."""
    small, b1s, wbf = slabs
    n, d = x.shape
    tm = _pick_row_tile(_round_up(n, 8))
    n_pad = _round_up(n, tm)
    if n_pad != n:
        x = jnp.pad(x, ((0, n_pad - n), (0, 0)))          # padded rows discarded below

    def _call(buffered):
        # grid-invariant weight slabs: single-buffer (no pipelining benefit, half VMEM)
        wmode = dict(pipeline_mode=pl.Buffered(1)) if buffered else {}
        return pl.pallas_call(
            critic_kernel,
            out_shape=jax.ShapeDtypeStruct((n_pad, 1), jnp.float32),
            grid_spec=pltpu.PrefetchScalarGridSpec(
                num_scalar_prefetch=0,
                grid=(n_pad // tm,),
                in_specs=[
                    pl.BlockSpec((tm, d), lambda i: (i, 0)),               # x rows
                    pl.BlockSpec(small.shape, lambda i: (0, 0), **wmode),  # vecs + w_attn
                    pl.BlockSpec(b1s.shape, lambda i: (0, 0), **wmode),    # FFN biases
                    pl.BlockSpec(wbf.shape, lambda i: (0, 0), **wmode),    # w1/w2t bf16
                ],
                out_specs=pl.BlockSpec((tm, 1), lambda i: (i, 0)),
            ),
            compiler_params=pltpu.CompilerParams(
                dimension_semantics=("parallel",),   # lets v7x shard rows across 2 TCs
            ),
        )(x, small, b1s, wbf)

    try:
        out = jax.block_until_ready(_call(True))
    except Exception:
        # fallback if this jax build's pallas_call pipeline rejects Buffered(1)
        out = jax.block_until_ready(_call(False))
    return out[:n]


# ------------------------- parameter construction -------------------------
def init_params(key, d_model=STATE_SIZE, ffn=FFN, num_layers=NUM_LAYERS):
    """Deterministic synthetic params in PyTorch layout: Linear weight (out, in)."""
    layers = []
    for _ in range(num_layers):
        keys = jax.random.split(key, 7)
        key = keys[0]
        lp = dict(
            in_proj_w=jax.random.normal(keys[1], (3 * d_model, d_model), jnp.float32)
            * (1.0 / jnp.sqrt(d_model)),
            in_proj_b=jax.random.normal(keys[2], (3 * d_model,), jnp.float32) * 0.01,
            out_proj_w=jax.random.normal(keys[3], (d_model, d_model), jnp.float32)
            * (1.0 / jnp.sqrt(d_model)),
            out_proj_b=jnp.zeros((d_model,), jnp.float32),
            ln1_w=jnp.ones((d_model,), jnp.float32),
            ln1_b=jnp.zeros((d_model,), jnp.float32),
            w1=jax.random.normal(keys[4], (ffn, d_model), jnp.float32)
            * (1.0 / jnp.sqrt(d_model)),
            b1=jnp.zeros((ffn,), jnp.float32),
            w2=jax.random.normal(keys[5], (d_model, ffn), jnp.float32)
            * (1.0 / jnp.sqrt(ffn)),
            b2=jnp.zeros((d_model,), jnp.float32),
            ln2_w=jnp.ones((d_model,), jnp.float32),
            ln2_b=jnp.zeros((d_model,), jnp.float32),
        )
        layers.append(lp)
    keys = jax.random.split(key, 3)
    wc = jax.random.normal(keys[1], (1, d_model), jnp.float32) * (1.0 / jnp.sqrt(d_model))
    bc = jax.random.normal(keys[2], (1,), jnp.float32) * 0.01
    return dict(layers=layers, wc=wc, bc=bc)


def pack_for_kernel(p, d_model=STATE_SIZE, ffn=FFN):
    """Host-side glue:
       * fold the seq_len==1 attention block into (w_attn, b_attn) - residual NOT folded
         (kernel adds x exactly in f32),
       * pre-transpose weights to (in, out) where needed so the kernel does plain x @ W,
       * large FFN weights -> bf16, both stored lane-dense as (D, FFN),
       * pack everything into 3 slabs -> 4 DMAs total (incl. x) instead of 6+."""
    vec_rows, small_blocks, b1_rows, w_rows = [], [], [], []
    for lp in p["layers"]:
        wv = lp["in_proj_w"][2 * d_model:3 * d_model]       # V rows of in_proj (out, in)
        bv = lp["in_proj_b"][2 * d_model:3 * d_model]
        wo, bo = lp["out_proj_w"], lp["out_proj_b"]
        w_attn = (wv.T @ wo.T).astype(jnp.float32)          # (in, out), no identity folded
        b_attn = bv @ wo.T + bo
        vec_rows += [b_attn, lp["ln1_w"], lp["ln1_b"],
                     lp["b2"], lp["ln2_w"], lp["ln2_b"]]
        small_blocks.append(w_attn)
        b1_rows.append(lp["b1"])
        w_rows.append(lp["w1"].T.astype(jnp.bfloat16))       # (D, FFN)
        w_rows.append(lp["w2"].astype(jnp.bfloat16))         # (D, FFN) lane-dense, NT use
    vec_rows += [p["wc"][0], jnp.full((d_model,), p["bc"][0], jnp.float32)]

    vec = jnp.stack(vec_rows).astype(jnp.float32)            # (14, D)
    vec = jnp.pad(vec, ((0, _VEC_PAD - vec.shape[0]), (0, 0)))
    small = jnp.concatenate([vec] + small_blocks, axis=0)    # (80, D) f32
    b1_slab = jnp.stack(b1_rows).astype(jnp.float32)         # (NUM_LAYERS, FFN) f32
    w_slab = jnp.concatenate(w_rows, axis=0)                 # (NUM_LAYERS*2*D, FFN) bf16
    return small, b1_slab, w_slab


# ------------------- pure-JAX reference (full MHA math, f32) -------------------
def ref_forward(x, p, nhead=NHEAD):
    def _ln(h, w, b):
        mu = jnp.mean(h, axis=-1, keepdims=True)
        var = jnp.mean((h - mu) ** 2, axis=-1, keepdims=True)
        return (h - mu) * jax.lax.rsqrt(var + EPS) * w + b

    h = x
    d = h.shape[-1]
    dh = d // nhead
    for lp in p["layers"]:
        qkv = h @ lp["in_proj_w"].T + lp["in_proj_b"]
        q, k, v = jnp.split(qkv, 3, axis=-1)
        qh = q.reshape(-1, nhead, dh)
        kh = k.reshape(-1, nhead, dh)
        vh = v.reshape(-1, nhead, dh)
        # sequence length is 1: each token attends only to itself
        scores = jnp.sum(qh * kh, axis=-1, keepdims=True) / jnp.sqrt(dh)
        attn_w = jax.nn.softmax(scores, axis=-1)              # == 1.0
        attn = (attn_w * vh).reshape(-1, d)
        sa = attn @ lp["out_proj_w"].T + lp["out_proj_b"]
        h1 = _ln(h + sa, lp["ln1_w"], lp["ln1_b"])
        ff = jax.nn.relu(h1 @ lp["w1"].T + lp["b1"]) @ lp["w2"].T + lp["b2"]
        h = _ln(h1 + ff, lp["ln2_w"], lp["ln2_b"])
    return h @ p["wc"].T + p["bc"]


if __name__ == "__main__":
    key = jax.random.PRNGKey(0)
    kx, kp = jax.random.split(key)
    x = jax.random.normal(kx, (N_STATES, STATE_SIZE), jnp.float32)

    params = init_params(kp)
    slabs = pack_for_kernel(params)

    out = critic_forward(x, slabs)
    out = jax.block_until_ready(out)

    ref = ref_forward(x, params)
    assert out.shape == (N_STATES, 1), out.shape
    assert jnp.allclose(out, ref, atol=5e-2, rtol=5e-2), (
        f"max abs diff {float(jnp.max(jnp.abs(out - ref)))}")

    print("KERNEL_OK")
</pallas_src>

<mosaic_0001>
module attributes {stable_mosaic.version = 11 : i64} {
  func.func @critic_kernel(%arg0: i32, %arg1: memref<8x32xf32, #tpu.memory_space<vmem>>, %arg2: memref<80x32xf32, #tpu.memory_space<vmem>>, %arg3: memref<2x2048xf32, #tpu.memory_space<vmem>>, %arg4: memref<128x2048xbf16, #tpu.memory_space<vmem>>, %arg5: memref<8x1xf32, #tpu.memory_space<vmem>>) attributes {dimension_semantics = [#tpu.dimension_semantics<parallel>], iteration_bounds = array<i64: 1>, scalar_prefetch = 0 : i64, scratch_operands = 0 : i64, tpu.core_type = #tpu.core_type<tc>, window_params = [{transform_indices = @transform_0, window_bounds = array<i64: 8, 32>}, {pipeline_mode = #tpu.pipeline_mode<synchronous>, transform_indices = @transform_1, window_bounds = array<i64: 80, 32>}, {pipeline_mode = #tpu.pipeline_mode<synchronous>, transform_indices = @transform_2, window_bounds = array<i64: 2, 2048>}, {pipeline_mode = #tpu.pipeline_mode<synchronous>, transform_indices = @transform_3, window_bounds = array<i64: 128, 2048>}, {transform_indices = @transform_4, window_bounds = array<i64: 8, 1>}]} {
    %c0 = arith.constant 0 : index
    %c0_0 = arith.constant 0 : index
    %0 = vector.load %arg1[%c0, %c0_0] : memref<8x32xf32, #tpu.memory_space<vmem>>, vector<8x32xf32>
    %c0_1 = arith.constant 0 : index
    %c0_2 = arith.constant 0 : index
    %1 = vector.load %arg2[%c0_1, %c0_2] : memref<80x32xf32, #tpu.memory_space<vmem>>, vector<16x32xf32>
    %2 = vector.extract_strided_slice %1 {offsets = [0, 0], sizes = [1, 32], strides = [1, 1]} : vector<16x32xf32> to vector<1x32xf32>
    %3 = vector.extract_strided_slice %1 {offsets = [1, 0], sizes = [1, 32], strides = [1, 1]} : vector<16x32xf32> to vector<1x32xf32>
    %4 = vector.extract_strided_slice %1 {offsets = [2, 0], sizes = [1, 32], strides = [1, 1]} : vector<16x32xf32> to vector<1x32xf32>
    %5 = vector.extract_strided_slice %1 {offsets = [3, 0], sizes = [1, 32], strides = [1, 1]} : vector<16x32xf32> to vector<1x32xf32>
    %6 = vector.extract_strided_slice %1 {offsets = [4, 0], sizes = [1, 32], strides = [1, 1]} : vector<16x32xf32> to vector<1x32xf32>
    %7 = vector.extract_strided_slice %1 {offsets = [5, 0], sizes = [1, 32], strides = [1, 1]} : vector<16x32xf32> to vector<1x32xf32>
    %c16 = arith.constant 16 : index
    %c0_3 = arith.constant 0 : index
    %8 = vector.load %arg2[%c16, %c0_3] : memref<80x32xf32, #tpu.memory_space<vmem>>, vector<32x32xf32>
    %9 = arith.truncf %8 : vector<32x32xf32> to vector<32x32xbf16>
    %c0_4 = arith.constant 0 : index
    %c0_5 = arith.constant 0 : index
    %10 = vector.load %arg4[%c0_4, %c0_5] : memref<128x2048xbf16, #tpu.memory_space<vmem>>, vector<32x2048xbf16>
    %c32 = arith.constant 32 : index
    %c0_6 = arith.constant 0 : index
    %11 = vector.load %arg4[%c32, %c0_6] : memref<128x2048xbf16, #tpu.memory_space<vmem>>, vector<32x2048xbf16>
    %c0_7 = arith.constant 0 : index
    %c0_8 = arith.constant 0 : index
    %12 = vector.load %arg3[%c0_7, %c0_8] : memref<2x2048xf32, #tpu.memory_space<vmem>>, vector<1x2048xf32>
    %13 = arith.truncf %0 : vector<8x32xf32> to vector<8x32xbf16>
    %cst = arith.constant dense<0.000000e+00> : vector<8x32xf32>
    %14 = tpu.matmul %13, %9, %cst {dimension_numbers = #tpu.dot_dimension_numbers<[1], [0], [0], [1], [0, 0, 1, 1], [], []>} : vector<8x32xbf16>, vector<32x32xbf16>, vector<8x32xf32> -> vector<8x32xf32>
    %15 = arith.addf %14, %0 : vector<8x32xf32>
    %16 = vector.broadcast %2 : vector<1x32xf32> to vector<8x32xf32>
    %17 = arith.addf %15, %16 : vector<8x32xf32>
    %cst_9 = arith.constant dense<0.000000e+00> : vector<8xf32>
    %18 = vector.multi_reduction <add>, %17, %cst_9 [1] : vector<8x32xf32> to vector<8xf32>
    %19 = vector.shape_cast %18 : vector<8xf32> to vector<8x1xf32>
    %cst_10 = arith.constant 3.200000e+01 : f32
    %20 = vector.broadcast %cst_10 : f32 to vector<8x1xf32>
    %21 = arith.divf %19, %20 : vector<8x1xf32>
    %22 = arith.mulf %17, %17 : vector<8x32xf32>
    %cst_11 = arith.constant dense<0.000000e+00> : vector<8xf32>
    %23 = vector.multi_reduction <add>, %22, %cst_11 [1] : vector<8x32xf32> to vector<8xf32>
    %24 = vector.shape_cast %23 : vector<8xf32> to vector<8x1xf32>
    %cst_12 = arith.constant 3.200000e+01 : f32
    %25 = vector.broadcast %cst_12 : f32 to vector<8x1xf32>
    %26 = arith.divf %24, %25 : vector<8x1xf32>
    %27 = arith.mulf %21, %21 : vector<8x1xf32>
    %28 = arith.subf %26, %27 : vector<8x1xf32>
    %29 = vector.broadcast %21 : vector<8x1xf32> to vector<8x32xf32>
    %30 = arith.subf %17, %29 : vector<8x32xf32>
    %cst_13 = arith.constant 9.99999974E-6 : f32
    %31 = vector.broadcast %cst_13 : f32 to vector<8x1xf32>
    %32 = arith.addf %28, %31 : vector<8x1xf32>
    %33 = math.rsqrt %32 : vector<8x1xf32>
    %34 = vector.broadcast %33 : vector<8x1xf32> to vector<8x32xf32>
    %35 = arith.mulf %30, %34 : vector<8x32xf32>
    %36 = vector.broadcast %3 : vector<1x32xf32> to vector<8x32xf32>
    %37 = arith.mulf %35, %36 : vector<8x32xf32>
    %38 = vector.broadcast %4 : vector<1x32xf32> to vector<8x32xf32>
    %39 = arith.addf %37, %38 : vector<8x32xf32>
    %40 = arith.truncf %39 : vector<8x32xf32> to vector<8x32xbf16>
    %cst_14 = arith.constant dense<0.000000e+00> : vector<8x2048xf32>
    %41 = tpu.matmul %40, %10, %cst_14 {dimension_numbers = #tpu.dot_dimension_numbers<[1], [0], [0], [1], [0, 0, 1, 1], [], []>} : vector<8x32xbf16>, vector<32x2048xbf16>, vector<8x2048xf32> -> vector<8x2048xf32>
    %42 = vector.broadcast %12 : vector<1x2048xf32> to vector<8x2048xf32>
    %43 = arith.addf %41, %42 : vector<8x2048xf32>
    %cst_15 = arith.constant 0.000000e+00 : f32
    %44 = vector.broadcast %cst_15 : f32 to vector<8x2048xf32>
    %45 = arith.maximumf %43, %44 : vector<8x2048xf32>
    %46 = arith.truncf %45 : vector<8x2048xf32> to vector<8x2048xbf16>
    %cst_16 = arith.constant dense<0.000000e+00> : vector<8x32xf32>
    %47 = tpu.matmul %46, %11, %cst_16 {dimension_numbers = #tpu.dot_dimension_numbers<[1], [1], [0], [0], [0, 0, 1, 0], [], []>} : vector<8x2048xbf16>, vector<32x2048xbf16>, vector<8x32xf32> -> vector<8x32xf32>
    %48 = vector.broadcast %5 : vector<1x32xf32> to vector<8x32xf32>
    %49 = arith.addf %47, %48 : vector<8x32xf32>
    %50 = arith.addf %39, %49 : vector<8x32xf32>
    %cst_17 = arith.constant dense<0.000000e+00> : vector<8xf32>
    %51 = vector.multi_reduction <add>, %50, %cst_17 [1] : vector<8x32xf32> to vector<8xf32>
    %52 = vector.shape_cast %51 : vector<8xf32> to vector<8x1xf32>
    %cst_18 = arith.constant 3.200000e+01 : f32
    %53 = vector.broadcast %cst_18 : f32 to vector<8x1xf32>
    %54 = arith.divf %52, %53 : vector<8x1xf32>
    %55 = arith.mulf %50, %50 : vector<8x32xf32>
    %cst_19 = arith.constant dense<0.000000e+00> : vector<8xf32>
    %56 = vector.multi_reduction <add>, %55, %cst_19 [1] : vector<8x32xf32> to vector<8xf32>
    %57 = vector.shape_cast %56 : vector<8xf32> to vector<8x1xf32>
    %cst_20 = arith.constant 3.200000e+01 : f32
    %58 = vector.broadcast %cst_20 : f32 to vector<8x1xf32>
    %59 = arith.divf %57, %58 : vector<8x1xf32>
    %60 = arith.mulf %54, %54 : vector<8x1xf32>
    %61 = arith.subf %59, %60 : vector<8x1xf32>
    %62 = vector.broadcast %54 : vector<8x1xf32> to vector<8x32xf32>
    %63 = arith.subf %50, %62 : vector<8x32xf32>
    %cst_21 = arith.constant 9.99999974E-6 : f32
    %64 = vector.broadcast %cst_21 : f32 to vector<8x1xf32>
    %65 = arith.addf %61, %64 : vector<8x1xf32>
    %66 = math.rsqrt %65 : vector<8x1xf32>
    %67 = vector.broadcast %66 : vector<8x1xf32> to vector<8x32xf32>
    %68 = arith.mulf %63, %67 : vector<8x32xf32>
    %69 = vector.broadcast %6 : vector<1x32xf32> to vector<8x32xf32>
    %70 = arith.mulf %68, %69 : vector<8x32xf32>
    %71 = vector.broadcast %7 : vector<1x32xf32> to vector<8x32xf32>
    %72 = arith.addf %70, %71 : vector<8x32xf32>
    %73 = vector.extract_strided_slice %1 {offsets = [6, 0], sizes = [1, 32], strides = [1, 1]} : vector<16x32xf32> to vector<1x32xf32>
    %74 = vector.extract_strided_slice %1 {offsets = [7, 0], sizes = [1, 32], strides = [1, 1]} : vector<16x32xf32> to vector<1x32xf32>
    %75 = vector.extract_strided_slice %1 {offsets = [8, 0], sizes = [1, 32], strides = [1, 1]} : vector<16x32xf32> to vector<1x32xf32>
    %76 = vector.extract_strided_slice %1 {offsets = [9, 0], sizes = [1, 32], strides = [1, 1]} : vector<16x32xf32> to vector<1x32xf32>
    %77 = vector.extract_strided_slice %1 {offsets = [10, 0], sizes = [1, 32], strides = [1, 1]} : vector<16x32xf32> to vector<1x32xf32>
    %78 = vector.extract_strided_slice %1 {offsets = [11, 0], sizes = [1, 32], strides = [1, 1]} : vector<16x32xf32> to vector<1x32xf32>
    %c48 = arith.constant 48 : index
    %c0_22 = arith.constant 0 : index
    %79 = vector.load %arg2[%c48, %c0_22] : memref<80x32xf32, #tpu.memory_space<vmem>>, vector<32x32xf32>
    %80 = arith.truncf %79 : vector<32x32xf32> to vector<32x32xbf16>
    %c64 = arith.constant 64 : index
    %c0_23 = arith.constant 0 : index
    %81 = vector.load %arg4[%c64, %c0_23] : memref<128x2048xbf16, #tpu.memory_space<vmem>>, vector<32x2048xbf16>
    %c96 = arith.constant 96 : index
    %c0_24 = arith.constant 0 : index
    %82 = vector.load %arg4[%c96, %c0_24] : memref<128x2048xbf16, #tpu.memory_space<vmem>>, vector<32x2048xbf16>
    %c1 = arith.constant 1 : index
    %c0_25 = arith.constant 0 : index
    %83 = vector.load %arg3[%c1, %c0_25] : memref<2x2048xf32, #tpu.memory_space<vmem>>, vector<1x2048xf32>
    %84 = arith.truncf %72 : vector<8x32xf32> to vector<8x32xbf16>
    %cst_26 = arith.constant dense<0.000000e+00> : vector<8x32xf32>
    %85 = tpu.matmul %84, %80, %cst_26 {dimension_numbers = #tpu.dot_dimension_numbers<[1], [0], [0], [1], [0, 0, 1, 1], [], []>} : vector<8x32xbf16>, vector<32x32xbf16>, vector<8x32xf32> -> vector<8x32xf32>
    %86 = arith.addf %85, %72 : vector<8x32xf32>
    %87 = vector.broadcast %73 : vector<1x32xf32> to vector<8x32xf32>
    %88 = arith.addf %86, %87 : vector<8x32xf32>
    %cst_27 = arith.constant dense<0.000000e+00> : vector<8xf32>
    %89 = vector.multi_reduction <add>, %88, %cst_27 [1] : vector<8x32xf32> to vector<8xf32>
    %90 = vector.shape_cast %89 : vector<8xf32> to vector<8x1xf32>
    %cst_28 = arith.constant 3.200000e+01 : f32
    %91 = vector.broadcast %cst_28 : f32 to vector<8x1xf32>
    %92 = arith.divf %90, %91 : vector<8x1xf32>
    %93 = arith.mulf %88, %88 : vector<8x32xf32>
    %cst_29 = arith.constant dense<0.000000e+00> : vector<8xf32>
    %94 = vector.multi_reduction <add>, %93, %cst_29 [1] : vector<8x32xf32> to vector<8xf32>
    %95 = vector.shape_cast %94 : vector<8xf32> to vector<8x1xf32>
    %cst_30 = arith.constant 3.200000e+01 : f32
    %96 = vector.broadcast %cst_30 : f32 to vector<8x1xf32>
    %97 = arith.divf %95, %96 : vector<8x1xf32>
    %98 = arith.mulf %92, %92 : vector<8x1xf32>
    %99 = arith.subf %97, %98 : vector<8x1xf32>
    %100 = vector.broadcast %92 : vector<8x1xf32> to vector<8x32xf32>
    %101 = arith.subf %88, %100 : vector<8x32xf32>
    %cst_31 = arith.constant 9.99999974E-6 : f32
    %102 = vector.broadcast %cst_31 : f32 to vector<8x1xf32>
    %103 = arith.addf %99, %102 : vector<8x1xf32>
    %104 = math.rsqrt %103 : vector<8x1xf32>
    %105 = vector.broadcast %104 : vector<8x1xf32> to vector<8x32xf32>
    %106 = arith.mulf %101, %105 : vector<8x32xf32>
    %107 = vector.broadcast %74 : vector<1x32xf32> to vector<8x32xf32>
    %108 = arith.mulf %106, %107 : vector<8x32xf32>
    %109 = vector.broadcast %75 : vector<1x32xf32> to vector<8x32xf32>
    %110 = arith.addf %108, %109 : vector<8x32xf32>
    %111 = arith.truncf %110 : vector<8x32xf32> to vector<8x32xbf16>
    %cst_32 = arith.constant dense<0.000000e+00> : vector<8x2048xf32>
    %112 = tpu.matmul %111, %81, %cst_32 {dimension_numbers = #tpu.dot_dimension_numbers<[1], [0], [0], [1], [0, 0, 1, 1], [], []>} : vector<8x32xbf16>, vector<32x2048xbf16>, vector<8x2048xf32> -> vector<8x2048xf32>
    %113 = vector.broadcast %83 : vector<1x2048xf32> to vector<8x2048xf32>
    %114 = arith.addf %112, %113 : vector<8x2048xf32>
    %cst_33 = arith.constant 0.000000e+00 : f32
    %115 = vector.broadcast %cst_33 : f32 to vector<8x2048xf32>
    %116 = arith.maximumf %114, %115 : vector<8x2048xf32>
    %117 = arith.truncf %116 : vector<8x2048xf32> to vector<8x2048xbf16>
    %cst_34 = arith.constant dense<0.000000e+00> : vector<8x32xf32>
    %118 = tpu.matmul %117, %82, %cst_34 {dimension_numbers = #tpu.dot_dimension_numbers<[1], [1], [0], [0], [0, 0, 1, 0], [], []>} : vector<8x2048xbf16>, vector<32x2048xbf16>, vector<8x32xf32> -> vector<8x32xf32>
    %119 = vector.broadcast %76 : vector<1x32xf32> to vector<8x32xf32>
    %120 = arith.addf %118, %119 : vector<8x32xf32>
    %121 = arith.addf %110, %120 : vector<8x32xf32>
    %cst_35 = arith.constant dense<0.000000e+00> : vector<8xf32>
    %122 = vector.multi_reduction <add>, %121, %cst_35 [1] : vector<8x32xf32> to vector<8xf32>
    %123 = vector.shape_cast %122 : vector<8xf32> to vector<8x1xf32>
    %cst_36 = arith.constant 3.200000e+01 : f32
    %124 = vector.broadcast %cst_36 : f32 to vector<8x1xf32>
    %125 = arith.divf %123, %124 : vector<8x1xf32>
    %126 = arith.mulf %121, %121 : vector<8x32xf32>
    %cst_37 = arith.constant dense<0.000000e+00> : vector<8xf32>
    %127 = vector.multi_reduction <add>, %126, %cst_37 [1] : vector<8x32xf32> to vector<8xf32>
    %128 = vector.shape_cast %127 : vector<8xf32> to vector<8x1xf32>
    %cst_38 = arith.constant 3.200000e+01 : f32
    %129 = vector.broadcast %cst_38 : f32 to vector<8x1xf32>
    %130 = arith.divf %128, %129 : vector<8x1xf32>
    %131 = arith.mulf %125, %125 : vector<8x1xf32>
    %132 = arith.subf %130, %131 : vector<8x1xf32>
    %133 = vector.broadcast %125 : vector<8x1xf32> to vector<8x32xf32>
    %134 = arith.subf %121, %133 : vector<8x32xf32>
    %cst_39 = arith.constant 9.99999974E-6 : f32
    %135 = vector.broadcast %cst_39 : f32 to vector<8x1xf32>
    %136 = arith.addf %132, %135 : vector<8x1xf32>
    %137 = math.rsqrt %136 : vector<8x1xf32>
    %138 = vector.broadcast %137 : vector<8x1xf32> to vector<8x32xf32>
    %139 = arith.mulf %134, %138 : vector<8x32xf32>
    %140 = vector.broadcast %77 : vector<1x32xf32> to vector<8x32xf32>
    %141 = arith.mulf %139, %140 : vector<8x32xf32>
    %142 = vector.broadcast %78 : vector<1x32xf32> to vector<8x32xf32>
    %143 = arith.addf %141, %142 : vector<8x32xf32>
    %144 = vector.extract_strided_slice %1 {offsets = [12, 0], sizes = [1, 32], strides = [1, 1]} : vector<16x32xf32> to vector<1x32xf32>
    %145 = vector.extract_strided_slice %1 {offsets = [13, 0], sizes = [1, 1], strides = [1, 1]} : vector<16x32xf32> to vector<1x1xf32>
    %146 = vector.broadcast %144 : vector<1x32xf32> to vector<8x32xf32>
    %147 = arith.mulf %143, %146 : vector<8x32xf32>
    %cst_40 = arith.constant dense<0.000000e+00> : vector<8xf32>
    %148 = vector.multi_reduction <add>, %147, %cst_40 [1] : vector<8x32xf32> to vector<8xf32>
    %149 = vector.shape_cast %148 : vector<8xf32> to vector<8x1xf32>
    %150 = vector.broadcast %145 : vector<1x1xf32> to vector<8x1xf32>
    %151 = arith.addf %149, %150 : vector<8x1xf32>
    %c0_41 = arith.constant 0 : index
    %c0_42 = arith.constant 0 : index
    %152 = vector.load %arg5[%c0_41, %c0_42] : memref<8x1xf32, #tpu.memory_space<vmem>>, vector<8x1xf32>
    tpu.vector_store %arg5[%c0_41, %c0_42], %151 {strides = array<i32>} : memref<8x1xf32, #tpu.memory_space<vmem>>, vector<8x1xf32>,
    return
  }
  func.func @transform_0(%arg0: i32) -> (i32, i32) {
    %c0_i32 = arith.constant 0 : i32
    %c0_i32_0 = arith.constant 0 : i32
    return %arg0, %c0_i32 : i32, i32
  }
  func.func @transform_1(%arg0: i32) -> (i32, i32) {
    %c0_i32 = arith.constant 0 : i32
    %c0_i32_0 = arith.constant 0 : i32
    %c0_i32_1 = arith.constant 0 : i32
    return %c0_i32, %c0_i32_0 : i32, i32
  }
  func.func @transform_2(%arg0: i32) -> (i32, i32) {
    %c0_i32 = arith.constant 0 : i32
    %c0_i32_0 = arith.constant 0 : i32
    %c0_i32_1 = arith.constant 0 : i32
    return %c0_i32, %c0_i32_0 : i32, i32
  }
  func.func @transform_3(%arg0: i32) -> (i32, i32) {
    %c0_i32 = arith.constant 0 : i32
    %c0_i32_0 = arith.constant 0 : i32
    %c0_i32_1 = arith.constant 0 : i32
    return %c0_i32, %c0_i32_0 : i32, i32
  }
  func.func @transform_4(%arg0: i32) -> (i32, i32) {
    %c0_i32 = arith.constant 0 : i32
    %c0_i32_0 = arith.constant 0 : i32
    return %arg0, %c0_i32 : i32, i32
  }
}

module attributes {stable_mosaic.version = 11 : i64} {
  func.func @critic_kernel(%arg0: i32, %arg1: memref<8x32xf32, #tpu.memory_space<vmem>>, %arg2: memref<80x32xf32, #tpu.memory_space<vmem>>, %arg3: memref<2x2048xf32, #tpu.memory_space<vmem>>, %arg4: memref<128x2048xbf16, #tpu.memory_space<vmem>>, %arg5: memref<8x1xf32, #tpu.memory_space<vmem>>) attributes {dimension_semantics = [#tpu.dimension_semantics<parallel>], iteration_bounds = array<i64: 1>, scalar_prefetch = 0 : i64, scratch_operands = 0 : i64, tpu.core_type = #tpu.core_type<tc>, window_params = [{transform_indices = @transform_0, window_bounds = array<i64: 8, 32>}, {pipeline_mode = #tpu.pipeline_mode<synchronous>, transform_indices = @transform_1, window_bounds = array<i64: 80, 32>}, {pipeline_mode = #tpu.pipeline_mode<synchronous>, transform_indices = @transform_2, window_bounds = array<i64: 2, 2048>}, {pipeline_mode = #tpu.pipeline_mode<synchronous>, transform_indices = @transform_3, window_bounds = array<i64: 128, 2048>}, {transform_indices = @transform_4, window_bounds = array<i64: 8, 1>}]} {
    %c0 = arith.constant 0 : index
    %c0_0 = arith.constant 0 : index
    %0 = vector.load %arg1[%c0, %c0_0] : memref<8x32xf32, #tpu.memory_space<vmem>>, vector<8x32xf32>
    %c0_1 = arith.constant 0 : index
    %c0_2 = arith.constant 0 : index
    %1 = vector.load %arg2[%c0_1, %c0_2] : memref<80x32xf32, #tpu.memory_space<vmem>>, vector<16x32xf32>
    %2 = vector.extract_strided_slice %1 {offsets = [0, 0], sizes = [1, 32], strides = [1, 1]} : vector<16x32xf32> to vector<1x32xf32>
    %3 = vector.extract_strided_slice %1 {offsets = [1, 0], sizes = [1, 32], strides = [1, 1]} : vector<16x32xf32> to vector<1x32xf32>
    %4 = vector.extract_strided_slice %1 {offsets = [2, 0], sizes = [1, 32], strides = [1, 1]} : vector<16x32xf32> to vector<1x32xf32>
    %5 = vector.extract_strided_slice %1 {offsets = [3, 0], sizes = [1, 32], strides = [1, 1]} : vector<16x32xf32> to vector<1x32xf32>
    %6 = vector.extract_strided_slice %1 {offsets = [4, 0], sizes = [1, 32], strides = [1, 1]} : vector<16x32xf32> to vector<1x32xf32>
    %7 = vector.extract_strided_slice %1 {offsets = [5, 0], sizes = [1, 32], strides = [1, 1]} : vector<16x32xf32> to vector<1x32xf32>
    %c16 = arith.constant 16 : index
    %c0_3 = arith.constant 0 : index
    %8 = vector.load %arg2[%c16, %c0_3] : memref<80x32xf32, #tpu.memory_space<vmem>>, vector<32x32xf32>
    %9 = arith.truncf %8 : vector<32x32xf32> to vector<32x32xbf16>
    %c0_4 = arith.constant 0 : index
    %c0_5 = arith.constant 0 : index
    %10 = vector.load %arg4[%c0_4, %c0_5] : memref<128x2048xbf16, #tpu.memory_space<vmem>>, vector<32x2048xbf16>
    %c32 = arith.constant 32 : index
    %c0_6 = arith.constant 0 : index
    %11 = vector.load %arg4[%c32, %c0_6] : memref<128x2048xbf16, #tpu.memory_space<vmem>>, vector<32x2048xbf16>
    %c0_7 = arith.constant 0 : index
    %c0_8 = arith.constant 0 : index
    %12 = vector.load %arg3[%c0_7, %c0_8] : memref<2x2048xf32, #tpu.memory_space<vmem>>, vector<1x2048xf32>
    %13 = arith.truncf %0 : vector<8x32xf32> to vector<8x32xbf16>
    %cst = arith.constant dense<0.000000e+00> : vector<8x32xf32>
    %14 = tpu.matmul %13, %9, %cst {dimension_numbers = #tpu.dot_dimension_numbers<[1], [0], [0], [1], [0, 0, 1, 1], [], []>} : vector<8x32xbf16>, vector<32x32xbf16>, vector<8x32xf32> -> vector<8x32xf32>
    %15 = arith.addf %14, %0 : vector<8x32xf32>
    %16 = vector.broadcast %2 : vector<1x32xf32> to vector<8x32xf32>
    %17 = arith.addf %15, %16 : vector<8x32xf32>
    %cst_9 = arith.constant dense<0.000000e+00> : vector<8xf32>
    %18 = vector.multi_reduction <add>, %17, %cst_9 [1] : vector<8x32xf32> to vector<8xf32>
    %19 = vector.shape_cast %18 : vector<8xf32> to vector<8x1xf32>
    %cst_10 = arith.constant 3.200000e+01 : f32
    %20 = vector.broadcast %cst_10 : f32 to vector<8x1xf32>
    %21 = arith.divf %19, %20 : vector<8x1xf32>
    %22 = arith.mulf %17, %17 : vector<8x32xf32>
    %cst_11 = arith.constant dense<0.000000e+00> : vector<8xf32>
    %23 = vector.multi_reduction <add>, %22, %cst_11 [1] : vector<8x32xf32> to vector<8xf32>
    %24 = vector.shape_cast %23 : vector<8xf32> to vector<8x1xf32>
    %cst_12 = arith.constant 3.200000e+01 : f32
    %25 = vector.broadcast %cst_12 : f32 to vector<8x1xf32>
    %26 = arith.divf %24, %25 : vector<8x1xf32>
    %27 = arith.mulf %21, %21 : vector<8x1xf32>
    %28 = arith.subf %26, %27 : vector<8x1xf32>
    %29 = vector.broadcast %21 : vector<8x1xf32> to vector<8x32xf32>
    %30 = arith.subf %17, %29 : vector<8x32xf32>
    %cst_13 = arith.constant 9.99999974E-6 : f32
    %31 = vector.broadcast %cst_13 : f32 to vector<8x1xf32>
    %32 = arith.addf %28, %31 : vector<8x1xf32>
    %33 = math.rsqrt %32 : vector<8x1xf32>
    %34 = vector.broadcast %33 : vector<8x1xf32> to vector<8x32xf32>
    %35 = arith.mulf %30, %34 : vector<8x32xf32>
    %36 = vector.broadcast %3 : vector<1x32xf32> to vector<8x32xf32>
    %37 = arith.mulf %35, %36 : vector<8x32xf32>
    %38 = vector.broadcast %4 : vector<1x32xf32> to vector<8x32xf32>
    %39 = arith.addf %37, %38 : vector<8x32xf32>
    %40 = arith.truncf %39 : vector<8x32xf32> to vector<8x32xbf16>
    %cst_14 = arith.constant dense<0.000000e+00> : vector<8x2048xf32>
    %41 = tpu.matmul %40, %10, %cst_14 {dimension_numbers = #tpu.dot_dimension_numbers<[1], [0], [0], [1], [0, 0, 1, 1], [], []>} : vector<8x32xbf16>, vector<32x2048xbf16>, vector<8x2048xf32> -> vector<8x2048xf32>
    %42 = vector.broadcast %12 : vector<1x2048xf32> to vector<8x2048xf32>
    %43 = arith.addf %41, %42 : vector<8x2048xf32>
    %cst_15 = arith.constant 0.000000e+00 : f32
    %44 = vector.broadcast %cst_15 : f32 to vector<8x2048xf32>
    %45 = arith.maximumf %43, %44 : vector<8x2048xf32>
    %46 = arith.truncf %45 : vector<8x2048xf32> to vector<8x2048xbf16>
    %cst_16 = arith.constant dense<0.000000e+00> : vector<8x32xf32>
    %47 = tpu.matmul %46, %11, %cst_16 {dimension_numbers = #tpu.dot_dimension_numbers<[1], [1], [0], [0], [0, 0, 1, 0], [], []>} : vector<8x2048xbf16>, vector<32x2048xbf16>, vector<8x32xf32> -> vector<8x32xf32>
    %48 = vector.broadcast %5 : vector<1x32xf32> to vector<8x32xf32>
    %49 = arith.addf %47, %48 : vector<8x32xf32>
    %50 = arith.addf %39, %49 : vector<8x32xf32>
    %cst_17 = arith.constant dense<0.000000e+00> : vector<8xf32>
    %51 = vector.multi_reduction <add>, %50, %cst_17 [1] : vector<8x32xf32> to vector<8xf32>
    %52 = vector.shape_cast %51 : vector<8xf32> to vector<8x1xf32>
    %cst_18 = arith.constant 3.200000e+01 : f32
    %53 = vector.broadcast %cst_18 : f32 to vector<8x1xf32>
    %54 = arith.divf %52, %53 : vector<8x1xf32>
    %55 = arith.mulf %50, %50 : vector<8x32xf32>
    %cst_19 = arith.constant dense<0.000000e+00> : vector<8xf32>
    %56 = vector.multi_reduction <add>, %55, %cst_19 [1] : vector<8x32xf32> to vector<8xf32>
    %57 = vector.shape_cast %56 : vector<8xf32> to vector<8x1xf32>
    %cst_20 = arith.constant 3.200000e+01 : f32
    %58 = vector.broadcast %cst_20 : f32 to vector<8x1xf32>
    %59 = arith.divf %57, %58 : vector<8x1xf32>
    %60 = arith.mulf %54, %54 : vector<8x1xf32>
    %61 = arith.subf %59, %60 : vector<8x1xf32>
    %62 = vector.broadcast %54 : vector<8x1xf32> to vector<8x32xf32>
    %63 = arith.subf %50, %62 : vector<8x32xf32>
    %cst_21 = arith.constant 9.99999974E-6 : f32
    %64 = vector.broadcast %cst_21 : f32 to vector<8x1xf32>
    %65 = arith.addf %61, %64 : vector<8x1xf32>
    %66 = math.rsqrt %65 : vector<8x1xf32>
    %67 = vector.broadcast %66 : vector<8x1xf32> to vector<8x32xf32>
    %68 = arith.mulf %63, %67 : vector<8x32xf32>
    %69 = vector.broadcast %6 : vector<1x32xf32> to vector<8x32xf32>
    %70 = arith.mulf %68, %69 : vector<8x32xf32>
    %71 = vector.broadcast %7 : vector<1x32xf32> to vector<8x32xf32>
    %72 = arith.addf %70, %71 : vector<8x32xf32>
    %73 = vector.extract_strided_slice %1 {offsets = [6, 0], sizes = [1, 32], strides = [1, 1]} : vector<16x32xf32> to vector<1x32xf32>
    %74 = vector.extract_strided_slice %1 {offsets = [7, 0], sizes = [1, 32], strides = [1, 1]} : vector<16x32xf32> to vector<1x32xf32>
    %75 = vector.extract_strided_slice %1 {offsets = [8, 0], sizes = [1, 32], strides = [1, 1]} : vector<16x32xf32> to vector<1x32xf32>
    %76 = vector.extract_strided_slice %1 {offsets = [9, 0], sizes = [1, 32], strides = [1, 1]} : vector<16x32xf32> to vector<1x32xf32>
    %77 = vector.extract_strided_slice %1 {offsets = [10, 0], sizes = [1, 32], strides = [1, 1]} : vector<16x32xf32> to vector<1x32xf32>
    %78 = vector.extract_strided_slice %1 {offsets = [11, 0], sizes = [1, 32], strides = [1, 1]} : vector<16x32xf32> to vector<1x32xf32>
    %c48 = arith.constant 48 : index
    %c0_22 = arith.constant 0 : index
    %79 = vector.load %arg2[%c48, %c0_22] : memref<80x32xf32, #tpu.memory_space<vmem>>, vector<32x32xf32>
    %80 = arith.truncf %79 : vector<32x32xf32> to vector<32x32xbf16>
    %c64 = arith.constant 64 : index
    %c0_23 = arith.constant 0 : index
    %81 = vector.load %arg4[%c64, %c0_23] : memref<128x2048xbf16, #tpu.memory_space<vmem>>, vector<32x2048xbf16>
    %c96 = arith.constant 96 : index
    %c0_24 = arith.constant 0 : index
    %82 = vector.load %arg4[%c96, %c0_24] : memref<128x2048xbf16, #tpu.memory_space<vmem>>, vector<32x2048xbf16>
    %c1 = arith.constant 1 : index
    %c0_25 = arith.constant 0 : index
    %83 = vector.load %arg3[%c1, %c0_25] : memref<2x2048xf32, #tpu.memory_space<vmem>>, vector<1x2048xf32>
    %84 = arith.truncf %72 : vector<8x32xf32> to vector<8x32xbf16>
    %cst_26 = arith.constant dense<0.000000e+00> : vector<8x32xf32>
    %85 = tpu.matmul %84, %80, %cst_26 {dimension_numbers = #tpu.dot_dimension_numbers<[1], [0], [0], [1], [0, 0, 1, 1], [], []>} : vector<8x32xbf16>, vector<32x32xbf16>, vector<8x32xf32> -> vector<8x32xf32>
    %86 = arith.addf %85, %72 : vector<8x32xf32>
    %87 = vector.broadcast %73 : vector<1x32xf32> to vector<8x32xf32>
    %88 = arith.addf %86, %87 : vector<8x32xf32>
    %cst_27 = arith.constant dense<0.000000e+00> : vector<8xf32>
    %89 = vector.multi_reduction <add>, %88, %cst_27 [1] : vector<8x32xf32> to vector<8xf32>
    %90 = vector.shape_cast %89 : vector<8xf32> to vector<8x1xf32>
    %cst_28 = arith.constant 3.200000e+01 : f32
    %91 = vector.broadcast %cst_28 : f32 to vector<8x1xf32>
    %92 = arith.divf %90, %91 : vector<8x1xf32>
    %93 = arith.mulf %88, %88 : vector<8x32xf32>
    %cst_29 = arith.constant dense<0.000000e+00> : vector<8xf32>
    %94 = vector.multi_reduction <add>, %93, %cst_29 [1] : vector<8x32xf32> to vector<8xf32>
    %95 = vector.shape_cast %94 : vector<8xf32> to vector<8x1xf32>
    %cst_30 = arith.constant 3.200000e+01 : f32
    %96 = vector.broadcast %cst_30 : f32 to vector<8x1xf32>
    %97 = arith.divf %95, %96 : vector<8x1xf32>
    %98 = arith.mulf %92, %92 : vector<8x1xf32>
    %99 = arith.subf %97, %98 : vector<8x1xf32>
    %100 = vector.broadcast %92 : vector<8x1xf32> to vector<8x32xf32>
    %101 = arith.subf %88, %100 : vector<8x32xf32>
    %cst_31 = arith.constant 9.99999974E-6 : f32
    %102 = vector.broadcast %cst_31 : f32 to vector<8x1xf32>
    %103 = arith.addf %99, %102 : vector<8x1xf32>
    %104 = math.rsqrt %103 : vector<8x1xf32>
    %105 = vector.broadcast %104 : vector<8x1xf32> to vector<8x32xf32>
    %106 = arith.mulf %101, %105 : vector<8x32xf32>
    %107 = vector.broadcast %74 : vector<1x32xf32> to vector<8x32xf32>
    %108 = arith.mulf %106, %107 : vector<8x32xf32>
    %109 = vector.broadcast %75 : vector<1x32xf32> to vector<8x32xf32>
    %110 = arith.addf %108, %109 : vector<8x32xf32>
    %111 = arith.truncf %110 : vector<8x32xf32> to vector<8x32xbf16>
    %cst_32 = arith.constant dense<0.000000e+00> : vector<8x2048xf32>
    %112 = tpu.matmul %111, %81, %cst_32 {dimension_numbers = #tpu.dot_dimension_numbers<[1], [0], [0], [1], [0, 0, 1, 1], [], []>} : vector<8x32xbf16>, vector<32x2048xbf16>, vector<8x2048xf32> -> vector<8x2048xf32>
    %113 = vector.broadcast %83 : vector<1x2048xf32> to vector<8x2048xf32>
    %114 = arith.addf %112, %113 : vector<8x2048xf32>
    %cst_33 = arith.constant 0.000000e+00 : f32
    %115 = vector.broadcast %cst_33 : f32 to vector<8x2048xf32>
    %116 = arith.maximumf %114, %115 : vector<8x2048xf32>
    %117 = arith.truncf %116 : vector<8x2048xf32> to vector<8x2048xbf16>
    %cst_34 = arith.constant dense<0.000000e+00> : vector<8x32xf32>
    %118 = tpu.matmul %117, %82, %cst_34 {dimension_numbers = #tpu.dot_dimension_numbers<[1], [1], [0], [0], [0, 0, 1, 0], [], []>} : vector<8x2048xbf16>, vector<32x2048xbf16>, vector<8x32xf32> -> vector<8x32xf32>
    %119 = vector.broadcast %76 : vector<1x32xf32> to vector<8x32xf32>
    %120 = arith.addf %118, %119 : vector<8x32xf32>
    %121 = arith.addf %110, %120 : vector<8x32xf32>
    %cst_35 = arith.constant dense<0.000000e+00> : vector<8xf32>
    %122 = vector.multi_reduction <add>, %121, %cst_35 [1] : vector<8x32xf32> to vector<8xf32>
    %123 = vector.shape_cast %122 : vector<8xf32> to vector<8x1xf32>
    %cst_36 = arith.constant 3.200000e+01 : f32
    %124 = vector.broadcast %cst_36 : f32 to vector<8x1xf32>
    %125 = arith.divf %123, %124 : vector<8x1xf32>
    %126 = arith.mulf %121, %121 : vector<8x32xf32>
    %cst_37 = arith.constant dense<0.000000e+00> : vector<8xf32>
    %127 = vector.multi_reduction <add>, %126, %cst_37 [1] : vector<8x32xf32> to vector<8xf32>
    %128 = vector.shape_cast %127 : vector<8xf32> to vector<8x1xf32>
    %cst_38 = arith.constant 3.200000e+01 : f32
    %129 = vector.broadcast %cst_38 : f32 to vector<8x1xf32>
    %130 = arith.divf %128, %129 : vector<8x1xf32>
    %131 = arith.mulf %125, %125 : vector<8x1xf32>
    %132 = arith.subf %130, %131 : vector<8x1xf32>
    %133 = vector.broadcast %125 : vector<8x1xf32> to vector<8x32xf32>
    %134 = arith.subf %121, %133 : vector<8x32xf32>
    %cst_39 = arith.constant 9.99999974E-6 : f32
    %135 = vector.broadcast %cst_39 : f32 to vector<8x1xf32>
    %136 = arith.addf %132, %135 : vector<8x1xf32>
    %137 = math.rsqrt %136 : vector<8x1xf32>
    %138 = vector.broadcast %137 : vector<8x1xf32> to vector<8x32xf32>
    %139 = arith.mulf %134, %138 : vector<8x32xf32>
    %140 = vector.broadcast %77 : vector<1x32xf32> to vector<8x32xf32>
    %141 = arith.mulf %139, %140 : vector<8x32xf32>
    %142 = vector.broadcast %78 : vector<1x32xf32> to vector<8x32xf32>
    %143 = arith.addf %141, %142 : vector<8x32xf32>
    %144 = vector.extract_strided_slice %1 {offsets = [12, 0], sizes = [1, 32], strides = [1, 1]} : vector<16x32xf32> to vector<1x32xf32>
    %145 = vector.extract_strided_slice %1 {offsets = [13, 0], sizes = [1, 1], strides = [1, 1]} : vector<16x32xf32> to vector<1x1xf32>
    %146 = vector.broadcast %144 : vector<1x32xf32> to vector<8x32xf32>
    %147 = arith.mulf %143, %146 : vector<8x32xf32>
    %cst_40 = arith.constant dense<0.000000e+00> : vector<8xf32>
    %148 = vector.multi_reduction <add>, %147, %cst_40 [1] : vector<8x32xf32> to vector<8xf32>
    %149 = vector.shape_cast %148 : vector<8xf32> to vector<8x1xf32>
    %150 = vector.broadcast %145 : vector<1x1xf32> to vector<8x1xf32>
    %151 = arith.addf %149, %150 : vector<8x1xf32>
    %c0_41 = arith.constant 0 : index
    %c0_42 = arith.constant 0 : index
    %152 = vector.load %arg5[%c0_41, %c0_42] : memref<8x1xf32, #tpu.memory_space<vmem>>, vector<8x1xf32>
    tpu.vector_store %arg5[%c0_41, %c0_42], %151 {strides = array<i32>} : memref<8x1xf32, #tpu.memory_space<vmem>>, vector<8x1xf32>,
    return
  }
  func.func @transform_0(%arg0: i32) -> (i32, i32) {
    %c0_i32 = arith.constant 0 : i32
    %c0_i32_0 = arith.constant 0 : i32
    return %arg0, %c0_i32 : i32, i32
  }
  func.func @transform_1(%arg0: i32) -> (i32, i32) {
    %c0_i32 = arith.constant 0 : i32
    %c0_i32_0 = arith.constant 0 : i32
    %c0_i32_1 = arith.constant 0 : i32
    return %c0_i32, %c0_i32_0 : i32, i32
  }
  func.func @transform_2(%arg0: i32) -> (i32, i32) {
    %c0_i32 = arith.constant 0 : i32
    %c0_i32_0 = arith.constant 0 : i32
    %c0_i32_1 = arith.constant 0 : i32
    return %c0_i32, %c0_i32_0 : i32, i32
  }
  func.func @transform_3(%arg0: i32) -> (i32, i32) {
    %c0_i32 = arith.constant 0 : i32
    %c0_i32_0 = arith.constant 0 : i32
    %c0_i32_1 = arith.constant 0 : i32
    return %c0_i32, %c0_i32_0 : i32, i32
  }
  func.func @transform_4(%arg0: i32) -> (i32, i32) {
    %c0_i32 = arith.constant 0 : i32
    %c0_i32_0 = arith.constant 0 : i32
    return %arg0, %c0_i32 : i32, i32
  }
}

</mosaic_0001>

<llo_original>
// kernel: tpu_custom_call.1
$region0: #{tpu_custom_call.1}
  #allocation0 [shape = 'u32[]', space=smem, size = 0x4, offset = 0x4, fixed_abs, tag = 'smem constant byte address 0x4 - core index']
  #allocation1 [shape = 'u32[72,128]{1,0:T(1,128)}', space=vmem, size = 0x9000, scoped, tag = 'internal scratch']
  %s0 = inlined_call_operand.vmem [shape: f32[8,32], index: 0, kind: input, shape index: {}]
  %s1 = inlined_call_operand.vmem [shape: f32[80,32], index: 1, kind: input, shape index: {}]
  %s2 = inlined_call_operand.vmem [shape: f32[2,2048], index: 2, kind: input, shape index: {}]
  %s3 = inlined_call_operand.hbm [shape: bf16[128,2048], index: 3, kind: input, shape index: {}]
  %s4 = inlined_call_operand.vmem [shape: f32[8,1], index: 4, kind: output, shape index: {}]
  %s5 = sld [smem:[#allocation0]]
  $region30: #{tpu_custom_call.1} parent=0
    _
  %s7 = ssub.s32 1, %s5
  %s8 = scalar_select 0, %s7, %s5
  $region1: #{tpu_custom_call.1} parent=0
    #allocation2 [shape = 'u8[524288]{0}', space=vmem, size = 0x80000, scoped, tag = 'input window, operand 3, single buffered']
    #allocation3 [shape = 's32[1]{0}', space=sflag, size = 0x4, scoped, tag = 'scoped memory for tpu_custom_call.1']
    %9 = vsyncpa [#allocation3], 0
    // Predicated region
    $region2: #{tpu_custom_call.1} parent=1 // pred_check
      _
    $region3: #{tpu_custom_call.1} parent=1 // pred_check_branch
      %11 = sbr.rel (0) target = $region5
    $region4: #{tpu_custom_call.1} parent=1 // pred_region
      _
    $region5: #{tpu_custom_call.1} parent=1 // pred_fallthru
      _
    // Predicated region
    $region6: #{tpu_custom_call.1} parent=1 // pred_check
      _
    $region7: #{tpu_custom_call.1} parent=1 // pred_check_branch
      %13 = sbr.rel (0) target = $region9
    $region8: #{tpu_custom_call.1} parent=1 // pred_region
      _
    $region9: #{tpu_custom_call.1} parent=1 // pred_fallthru
      _
    // Predicated region
    $region10: #{tpu_custom_call.1} parent=1 // pred_check
      _
    $region11: #{tpu_custom_call.1} parent=1 // pred_check_branch
      %15 = sbr.rel (0) target = $region13
    $region12: #{tpu_custom_call.1} parent=1 // pred_region
      _
    $region13: #{tpu_custom_call.1} parent=1 // pred_fallthru
      _
    // Predicated region
    $region14: #{tpu_custom_call.1} parent=1 // pred_check
      _
    $region15: #{tpu_custom_call.1} parent=1 // pred_check_branch
      %17 = sbr.rel (0) target = $region17
    $region16: #{tpu_custom_call.1} parent=1 // pred_region
      %19 = vsyncadd [#allocation3], 0
      %s20 = sshll.u32 %s3, 4
      %s21 = int_to_ptr.hbm [resolvable:$true] %s20
      %s22 = sshll.u32 [#allocation2], 4
      %s23 = int_to_ptr.vmem [resolvable:$true] %s22
      %28 = dma.hbm_to_vmem [thread:$0]  %s21, 16384, %s23, [#allocation3], 1024, 1024, 64
    $region17: #{tpu_custom_call.1} parent=1 // pred_fallthru
      _
    // Predicated region
    $region18: #{tpu_custom_call.1} parent=1 // pred_check
      _
    $region19: #{tpu_custom_call.1} parent=1 // pred_check_branch
      %30 = sbr.rel (0) target = $region21
    $region20: #{tpu_custom_call.1} parent=1 // pred_region
      %32 = dma.done [#allocation3], 16384
    $region21: #{tpu_custom_call.1} parent=1 // pred_fallthru
      _
    %v34 = vld [vmem:[%s0] sm:$0xff]
    %v35 = vld [vmem:[%s1] sm:$0xff]
    %v36 = vld [vmem:[%s1 + $0x8] sm:$0xff]
    %v37 = vld [vmem:[%s1 + $0x10] sm:$0xff]
    %v38 = vld [vmem:[%s1 + $0x18] sm:$0xff]
    %v39 = vld [vmem:[%s1 + $0x20] sm:$0xff]
    %v40 = vld [vmem:[%s1 + $0x28] sm:$0xff]
    %v41 = vpack.c.bf16 %v38, %v37
    %v42 = vpack.c.bf16 %v40, %v39
    %v43 = vld [vmem:[#allocation2] sm:$0xff]
    %v44 = vld [vmem:[#allocation2 + $0x8] sm:$0xff]
    %v45 = vld [vmem:[#allocation2 + $0x10] sm:$0xff]
    %v46 = vld [vmem:[#allocation2 + $0x18] sm:$0xff]
    %v47 = vld [vmem:[#allocation2 + $0x20] sm:$0xff]
    %v48 = vld [vmem:[#allocation2 + $0x28] sm:$0xff]
    %v49 = vld [vmem:[#allocation2 + $0x30] sm:$0xff]
    %v50 = vld [vmem:[#allocation2 + $0x38] sm:$0xff]
    %v51 = vld [vmem:[#allocation2 + $0x40] sm:$0xff]
    %v52 = vld [vmem:[#allocation2 + $0x48] sm:$0xff]
    %v53 = vld [vmem:[#allocation2 + $0x50] sm:$0xff]
    %v54 = vld [vmem:[#allocation2 + $0x58] sm:$0xff]
    %v55 = vld [vmem:[#allocation2 + $0x60] sm:$0xff]
    %v56 = vld [vmem:[#allocation2 + $0x68] sm:$0xff]
    %v57 = vld [vmem:[#allocation2 + $0x70] sm:$0xff]
    %v58 = vld [vmem:[#allocation2 + $0x78] sm:$0xff]
    %v59 = vld [vmem:[#allocation2 + $0x80] sm:$0xff]
    %v60 = vld [vmem:[#allocation2 + $0x88] sm:$0xff]
    %v61 = vld [vmem:[#allocation2 + $0x90] sm:$0xff]
    %v62 = vld [vmem:[#allocation2 + $0x98] sm:$0xff]
    %v63 = vld [vmem:[#allocation2 + $0xa0] sm:$0xff]
    %v64 = vld [vmem:[#allocation2 + $0xa8] sm:$0xff]
    %v65 = vld [vmem:[#allocation2 + $0xb0] sm:$0xff]
    %v66 = vld [vmem:[#allocation2 + $0xb8] sm:$0xff]
    %v67 = vld [vmem:[#allocation2 + $0xc0] sm:$0xff]
    %v68 = vld [vmem:[#allocation2 + $0xc8] sm:$0xff]
    %v69 = vld [vmem:[#allocation2 + $0xd0] sm:$0xff]
    %v70 = vld [vmem:[#allocation2 + $0xd8] sm:$0xff]
    %v71 = vld [vmem:[#allocation2 + $0xe0] sm:$0xff]
    %v72 = vld [vmem:[#allocation2 + $0xe8] sm:$0xff]
    %v73 = vld [vmem:[#allocation2 + $0xf0] sm:$0xff]
    %v74 = vld [vmem:[#allocation2 + $0xf8] sm:$0xff]
    %v75 = vld [vmem:[#allocation2 + $0x100] sm:$0xff]
    %v76 = vld [vmem:[#allocation2 + $0x108] sm:$0xff]
    %v77 = vld [vmem:[#allocation2 + $0x110] sm:$0xff]
    %v78 = vld [vmem:[#allocation2 + $0x118] sm:$0xff]
    %v79 = vld [vmem:[#allocation2 + $0x120] sm:$0xff]
    %v80 = vld [vmem:[#allocation2 + $0x128] sm:$0xff]
    %v81 = vld [vmem:[#allocation2 + $0x130] sm:$0xff]
    %v82 = vld [vmem:[#allocation2 + $0x138] sm:$0xff]
    %v83 = vld [vmem:[#allocation2 + $0x140] sm:$0xff]
    %v84 = vld [vmem:[#allocation2 + $0x148] sm:$0xff]
    %v85 = vld [vmem:[#allocation2 + $0x150] sm:$0xff]
    %v86 = vld [vmem:[#allocation2 + $0x158] sm:$0xff]
    %v87 = vld [vmem:[#allocation2 + $0x160] sm:$0xff]
    %v88 = vld [vmem:[#allocation2 + $0x168] sm:$0xff]
    %v89 = vld [vmem:[#allocation2 + $0x170] sm:$0xff]
    %v90 = vld [vmem:[#allocation2 + $0x178] sm:$0xff]
    %v91 = vld [vmem:[#allocation2 + $0x180] sm:$0xff]
    %v92 = vld [vmem:[#allocation2 + $0x188] sm:$0xff]
    %v93 = vld [vmem:[#allocation2 + $0x190] sm:$0xff]
    %v94 = vld [vmem:[#allocation2 + $0x198] sm:$0xff]
    %v95 = vld [vmem:[#allocation2 + $0x1a0] sm:$0xff]
    %v96 = vld [vmem:[#allocation2 + $0x1a8] sm:$0xff]
    %v97 = vld [vmem:[#allocation2 + $0x1b0] sm:$0xff]
    %v98 = vld [vmem:[#allocation2 + $0x1b8] sm:$0xff]
    %v99 = vld [vmem:[#allocation2 + $0x1c0] sm:$0xff]
    %v100 = vld [vmem:[#allocation2 + $0x1c8] sm:$0xff]
    %v101 = vld [vmem:[#allocation2 + $0x1d0] sm:$0xff]
    %v102 = vld [vmem:[#allocation2 + $0x1d8] sm:$0xff]
    %v103 = vld [vmem:[#allocation2 + $0x1e0] sm:$0xff]
    %v104 = vld [vmem:[#allocation2 + $0x1e8] sm:$0xff]
    %v105 = vld [vmem:[#allocation2 + $0x1f0] sm:$0xff]
    %v106 = vld [vmem:[#allocation2 + $0x1f8] sm:$0xff]
    %v107 = vld [vmem:[%s2] ss:$2 sm:$0xff]
    %s108 = scalar_lea.vmem %s2, 16
    %v109 = vld [vmem:[%s108] ss:$2 sm:$0xff]
    %v110 = vpack.c.bf16 %v34, %v34
    %vm111 = vcmask 261120
    %v113 = vsel %vm111, %v110, 0
    %115 = vmatpush.bf16.msra.mxu0 0
    %116 = vmatpush.bf16.msra.mxu0 0
    %117 = vmatpush.bf16.msra.mxu0 0
    %118 = vmatpush.bf16.msra.mxu0 0
    %119 = vmatpush.bf16.msra.mxu0 0
    %120 = vmatpush.bf16.msra.mxu0 0
    %121 = vmatpush.bf16.msra.mxu0 %v42
    %122 = vmatpush.bf16.msra.mxu0 %v41
    %123 = vmatmul.bf16.gmra.mxu0 %v113
    %v124 = vpop.f32.mrf.mxu0
    %v125 = vadd.f32 %v34, %v124
    %v126 = vpop.f32.mrf.mxu0
    %127 = vdwg.mxu0
    %v128 = vperm.slane %v35, 0
    %v129 = vadd.f32 %v125, %v128
    %v130 = vsel %vm111, %v129, 0.0
    %131 = vadd.xlane.f32.xlu0 %v130
    %v132 = vpop.xlane.xlu0 %131
    %v133 = vrcp.pop 32.0
    %v134 = vmul.f32 32.0, %v133
    %v135 = vsub.f32 1.0, %v134
    %v136 = vmul.f32 %v133, %v135
    %v137 = vadd.f32 %v133, %v136
    %vm138 = vweird.f32 %v133
    %v139 = vsel %vm138, %v133, %v137
    %v140 = vmul.f32 %v132, %v139
    %v141 = vmul.f32 %v129, %v129
    %v142 = vsel %vm111, %v141, 0.0
    %143 = vadd.xlane.f32.xlu0 %v142
    %v144 = vpop.xlane.xlu0 %143
    %v145 = vmul.f32 %v144, %v139
    %v146 = vmul.f32 %v140, %v140
    %v147 = vsub.f32 %v145, %v146
    %v148 = vsub.f32 %v129, %v140
    %v149 = vadd.f32 %v147, 1e-05
    %v150 = vrsqrt.pop %v149
    %v151 = vmul.f32 %v150, %v149
    %v152 = vmul.f32 %v151, %v150
    %v153 = vmul.f32 0.5, %v152
    %v154 = vsub.f32 1.5, %v153
    %v155 = vmul.f32 %v150, %v154
    %vm156 = vweird.f32 %v149
    %vm157 = vweird.f32 %v150
    %vm158 = vmor %vm156, %vm157
    %v159 = vsel %vm158, %v150, %v155
    %v160 = vmul.f32 %v148, %v159
    %v161 = vperm.slane %v35, 1
    %v162 = vmul.f32 %v160, %v161
    %v163 = vperm.slane %v35, 2
    %v164 = vadd.f32 %v162, %v163
    %v165 = vpack.c.bf16 %v164, %v164
    %v168 = vperm.slane %v107, 0
    %v169 = vperm.slane %v107, 1
    %v170 = vperm.slane %v107, 2
    %v171 = vperm.slane %v107, 3
    %v172 = vperm.slane %v107, 4
    %v173 = vperm.slane %v107, 5
    %v174 = vperm.slane %v107, 6
    %v175 = vperm.slane %v107, 7
    %v176 = vperm.slane %v109, 0
    %v177 = vperm.slane %v109, 1
    %v178 = vperm.slane %v109, 2
    %v179 = vperm.slane %v109, 3
    %v180 = vperm.slane %v109, 4
    %v181 = vperm.slane %v109, 5
    %v182 = vperm.slane %v109, 6
    %v183 = vperm.slane %v109, 7
    %v232 = vunpack.c.l.b16 %v43
    %v233 = vunpack.c.h.b16 %v43
    %v234 = vunpack.c.l.b16 %v44
    %v235 = vunpack.c.h.b16 %v44
    %v236 = vunpack.c.l.b16 %v45
    %v237 = vunpack.c.h.b16 %v45
    %v238 = vunpack.c.l.b16 %v46
    %v239 = vunpack.c.h.b16 %v46
    %v240 = vunpack.c.l.b16 %v47
    %v241 = vunpack.c.h.b16 %v47
    %v242 = vunpack.c.l.b16 %v48
    %v243 = vunpack.c.h.b16 %v48
    %v244 = vunpack.c.l.b16 %v49
    %v245 = vunpack.c.h.b16 %v49
    %v246 = vunpack.c.l.b16 %v50
    %v247 = vunpack.c.h.b16 %v50
    %v248 = vunpack.c.l.b16 %v51
    %v249 = vunpack.c.h.b16 %v51
    %v250 = vunpack.c.l.b16 %v52
    %v251 = vunpack.c.h.b16 %v52
    %v252 = vunpack.c.l.b16 %v53
    %v253 = vunpack.c.h.b16 %v53
    %v254 = vunpack.c.l.b16 %v54
    %v255 = vunpack.c.h.b16 %v54
    %v256 = vunpack.c.l.b16 %v55
    %v257 = vunpack.c.h.b16 %v55
    %v258 = vunpack.c.l.b16 %v56
    %v259 = vunpack.c.h.b16 %v56
    %v260 = vunpack.c.l.b16 %v57
    %v261 = vunpack.c.h.b16 %v57
    %v262 = vunpack.c.l.b16 %v58
    %v263 = vunpack.c.h.b16 %v58
    %v264 = vunpack.c.l.b16 %v59
    %v265 = vunpack.c.h.b16 %v59
    %v266 = vunpack.c.l.b16 %v60
    %v267 = vunpack.c.h.b16 %v60
    %v268 = vunpack.c.l.b16 %v61
    %v269 = vunpack.c.h.b16 %v61
    %v270 = vunpack.c.l.b16 %v62
    %v271 = vunpack.c.h.b16 %v62
    %v272 = vunpack.c.l.b16 %v63
    %v273 = vunpack.c.h.b16 %v63
    %v274 = vunpack.c.l.b16 %v64
    %v275 = vunpack.c.h.b16 %v64
    %v276 = vunpack.c.l.b16 %v65
    %v277 = vunpack.c.h.b16 %v65
    %v278 = vunpack.c.l.b16 %v66
    %v279 = vunpack.c.h.b16 %v66
    %v280 = vunpack.c.l.b16 %v67
    %v281 = vunpack.c.h.b16 %v67
    %v282 = vunpack.c.l.b16 %v68
    %v283 = vunpack.c.h.b16 %v68
    %v284 = vunpack.c.l.b16 %v69
    %v285 = vunpack.c.h.b16 %v69
    %v286 = vunpack.c.l.b16 %v70
    %v287 = vunpack.c.h.b16 %v70
    %v288 = vunpack.c.l.b16 %v71
    %v289 = vunpack.c.h.b16 %v71
    %v290 = vunpack.c.l.b16 %v72
    %v291 = vunpack.c.h.b16 %v72
    %v292 = vunpack.c.l.b16 %v73
    %v293 = vunpack.c.h.b16 %v73
    %v294 = vunpack.c.l.b16 %v74
    %v295 = vunpack.c.h.b16 %v74
    %v296 = vpack.c.b16 %v248, %v232
    %v297 = vpack.c.b16 %v249, %v233
    %v298 = vpack.c.b16 %v250, %v234
    %v299 = vpack.c.b16 %v251, %v235
    %v300 = vpack.c.b16 %v252, %v236
    %v301 = vpack.c.b16 %v253, %v237
    %v302 = vpack.c.b16 %v254, %v238
    %v303 = vpack.c.b16 %v255, %v239
    %v304 = vpack.c.b16 %v256, %v240
    %v305 = vpack.c.b16 %v257, %v241
    %v306 = vpack.c.b16 %v258, %v242
    %v307 = vpack.c.b16 %v259, %v243
    %v308 = vpack.c.b16 %v260, %v244
    %v309 = vpack.c.b16 %v261, %v245
    %v310 = vpack.c.b16 %v262, %v246
    %v311 = vpack.c.b16 %v263, %v247
    %v312 = vpack.c.b16 %v280, %v264
    %v313 = vpack.c.b16 %v281, %v265
    %v314 = vpack.c.b16 %v282, %v266
    %v315 = vpack.c.b16 %v283, %v267
    %v316 = vpack.c.b16 %v284, %v268
    %v317 = vpack.c.b16 %v285, %v269
    %v318 = vpack.c.b16 %v286, %v270
    %v319 = vpack.c.b16 %v287, %v271
    %v320 = vpack.c.b16 %v288, %v272
    %v321 = vpack.c.b16 %v289, %v273
    %v322 = vpack.c.b16 %v290, %v274
    %v323 = vpack.c.b16 %v291, %v275
    %v324 = vpack.c.b16 %v292, %v276
    %v325 = vpack.c.b16 %v293, %v277
    %v326 = vpack.c.b16 %v294, %v278
    %v327 = vpack.c.b16 %v295, %v279
    %v361 = vsel %vm111, %v165, 0
    %363 = vmatpush.bf16.msra.mxu0 0
    %364 = vmatpush.bf16.msra.mxu0 0
    %365 = vmatpush.bf16.msra.mxu0 0
    %366 = vmatpush.bf16.msra.mxu0 0
    %367 = vmatpush.bf16.msra.mxu0 0
    %368 = vmatpush.bf16.msra.mxu0 0
    %369 = vmatpush.bf16.msra.mxu0 %v312
    %370 = vmatpush.bf16.msra.mxu0 %v296
    %371 = vmatmul.bf16.gmra.mxu0 %v361
    %v372 = vpop.f32.mrf.mxu0
    %v373 = vadd.f32 %v168, %v372
    %v374 = vpop.f32.mrf.mxu0
    %375 = vdwg.mxu0
    %376 = vmatpush.bf16.msra.mxu0 0
    %377 = vmatpush.bf16.msra.mxu0 0
    %378 = vmatpush.bf16.msra.mxu0 0
    %379 = vmatpush.bf16.msra.mxu0 0
    %380 = vmatpush.bf16.msra.mxu0 0
    %381 = vmatpush.bf16.msra.mxu0 0
    %382 = vmatpush.bf16.msra.mxu0 %v313
    %383 = vmatpush.bf16.msra.mxu0 %v297
    %384 = vmatmul.bf16.gmra.mxu0 %v361
    %v385 = vpop.f32.mrf.mxu0
    %v386 = vadd.f32 %v169, %v385
    %v387 = vpop.f32.mrf.mxu0
    %388 = vdwg.mxu0
    %389 = vmatpush.bf16.msra.mxu0 0
    %390 = vmatpush.bf16.msra.mxu0 0
    %391 = vmatpush.bf16.msra.mxu0 0
    %392 = vmatpush.bf16.msra.mxu0 0
    %393 = vmatpush.bf16.msra.mxu0 0
    %394 = vmatpush.bf16.msra.mxu0 0
    %395 = vmatpush.bf16.msra.mxu0 %v314
    %396 = vmatpush.bf16.msra.mxu0 %v298
    %397 = vmatmul.bf16.gmra.mxu0 %v361
    %v398 = vpop.f32.mrf.mxu0
    %v399 = vadd.f32 %v170, %v398
    %v400 = vpop.f32.mrf.mxu0
    %401 = vdwg.mxu0
    %402 = vmatpush.bf16.msra.mxu0 0
    %403 = vmatpush.bf16.msra.mxu0 0
    %404 = vmatpush.bf16.msra.mxu0 0
    %405 = vmatpush.bf16.msra.mxu0 0
    %406 = vmatpush.bf16.msra.mxu0 0
    %407 = vmatpush.bf16.msra.mxu0 0
    %408 = vmatpush.bf16.msra.mxu0 %v315
    %409 = vmatpush.bf16.msra.mxu0 %v299
    %410 = vmatmul.bf16.gmra.mxu0 %v361
    %v411 = vpop.f32.mrf.mxu0
    %v412 = vadd.f32 %v171, %v411
    %v413 = vpop.f32.mrf.mxu0
    %414 = vdwg.mxu0
    %415 = vmatpush.bf16.msra.mxu0 0
    %416 = vmatpush.bf16.msra.mxu0 0
    %417 = vmatpush.bf16.msra.mxu0 0
    %418 = vmatpush.bf16.msra.mxu0 0
    %419 = vmatpush.bf16.msra.mxu0 0
    %420 = vmatpush.bf16.msra.mxu0 0
    %421 = vmatpush.bf16.msra.mxu0 %v316
    %422 = vmatpush.bf16.msra.mxu0 %v300
    %423 = vmatmul.bf16.gmra.mxu0 %v361
    %v424 = vpop.f32.mrf.mxu0
    %v425 = vadd.f32 %v172, %v424
    %v426 = vpop.f32.mrf.mxu0
    %427 = vdwg.mxu0
    %428 = vmatpush.bf16.msra.mxu0 0
    %429 = vmatpush.bf16.msra.mxu0 0
    %430 = vmatpush.bf16.msra.mxu0 0
    %431 = vmatpush.bf16.msra.mxu0 0
    %432 = vmatpush.bf16.msra.mxu0 0
    %433 = vmatpush.bf16.msra.mxu0 0
    %434 = vmatpush.bf16.msra.mxu0 %v317
    %435 = vmatpush.bf16.msra.mxu0 %v301
    %436 = vmatmul.bf16.gmra.mxu0 %v361
    %v437 = vpop.f32.mrf.mxu0
    %v438 = vadd.f32 %v173, %v437
    %v439 = vpop.f32.mrf.mxu0
    %440 = vdwg.mxu0
    %441 = vmatpush.bf16.msra.mxu0 0
    %442 = vmatpush.bf16.msra.mxu0 0
    %443 = vmatpush.bf16.msra.mxu0 0
    %444 = vmatpush.bf16.msra.mxu0 0
    %445 = vmatpush.bf16.msra.mxu0 0
    %446 = vmatpush.bf16.msra.mxu0 0
    %447 = vmatpush.bf16.msra.mxu0 %v318
    %448 = vmatpush.bf16.msra.mxu0 %v302
    %449 = vmatmul.bf16.gmra.mxu0 %v361
    %v450 = vpop.f32.mrf.mxu0
    %v451 = vadd.f32 %v174, %v450
    %v452 = vpop.f32.mrf.mxu0
    %453 = vdwg.mxu0
    %454 = vmatpush.bf16.msra.mxu0 0
    %455 = vmatpush.bf16.msra.mxu0 0
    %456 = vmatpush.bf16.msra.mxu0 0
    %457 = vmatpush.bf16.msra.mxu0 0
    %458 = vmatpush.bf16.msra.mxu0 0
    %459 = vmatpush.bf16.msra.mxu0 0
    %460 = vmatpush.bf16.msra.mxu0 %v319
    %461 = vmatpush.bf16.msra.mxu0 %v303
    %462 = vmatmul.bf16.gmra.mxu0 %v361
    %v463 = vpop.f32.mrf.mxu0
    %v464 = vadd.f32 %v175, %v463
    %v465 = vpop.f32.mrf.mxu0
    %466 = vdwg.mxu0
    %467 = vmatpush.bf16.msra.mxu0 0
    %468 = vmatpush.bf16.msra.mxu0 0
    %469 = vmatpush.bf16.msra.mxu0 0
    %470 = vmatpush.bf16.msra.mxu0 0
    %471 = vmatpush.bf16.msra.mxu0 0
    %472 = vmatpush.bf16.msra.mxu0 0
    %473 = vmatpush.bf16.msra.mxu0 %v320
    %474 = vmatpush.bf16.msra.mxu0 %v304
    %475 = vmatmul.bf16.gmra.mxu0 %v361
    %v476 = vpop.f32.mrf.mxu0
    %v477 = vadd.f32 %v176, %v476
    %v478 = vpop.f32.mrf.mxu0
    %479 = vdwg.mxu0
    %480 = vmatpush.bf16.msra.mxu0 0
    %481 = vmatpush.bf16.msra.mxu0 0
    %482 = vmatpush.bf16.msra.mxu0 0
    %483 = vmatpush.bf16.msra.mxu0 0
    %484 = vmatpush.bf16.msra.mxu0 0
    %485 = vmatpush.bf16.msra.mxu0 0
    %486 = vmatpush.bf16.msra.mxu0 %v321
    %487 = vmatpush.bf16.msra.mxu0 %v305
    %488 = vmatmul.bf16.gmra.mxu0 %v361
    %v489 = vpop.f32.mrf.mxu0
    %v490 = vadd.f32 %v177, %v489
    %v491 = vpop.f32.mrf.mxu0
    %492 = vdwg.mxu0
    %493 = vmatpush.bf16.msra.mxu0 0
    %494 = vmatpush.bf16.msra.mxu0 0
    %495 = vmatpush.bf16.msra.mxu0 0
    %496 = vmatpush.bf16.msra.mxu0 0
    %497 = vmatpush.bf16.msra.mxu0 0
    %498 = vmatpush.bf16.msra.mxu0 0
    %499 = vmatpush.bf16.msra.mxu0 %v322
    %500 = vmatpush.bf16.msra.mxu0 %v306
    %501 = vmatmul.bf16.gmra.mxu0 %v361
    %v502 = vpop.f32.mrf.mxu0
    %v503 = vadd.f32 %v178, %v502
    %v504 = vpop.f32.mrf.mxu0
    %505 = vdwg.mxu0
    %506 = vmatpush.bf16.msra.mxu0 0
    %507 = vmatpush.bf16.msra.mxu0 0
    %508 = vmatpush.bf16.msra.mxu0 0
    %509 = vmatpush.bf16.msra.mxu0 0
    %510 = vmatpush.bf16.msra.mxu0 0
    %511 = vmatpush.bf16.msra.mxu0 0
    %512 = vmatpush.bf16.msra.mxu0 %v323
    %513 = vmatpush.bf16.msra.mxu0 %v307
    %514 = vmatmul.bf16.gmra.mxu0 %v361
    %v515 = vpop.f32.mrf.mxu0
    %v516 = vadd.f32 %v179, %v515
    %v517 = vpop.f32.mrf.mxu0
    %518 = vdwg.mxu0
    %519 = vmatpush.bf16.msra.mxu0 0
    %520 = vmatpush.bf16.msra.mxu0 0
    %521 = vmatpush.bf16.msra.mxu0 0
    %522 = vmatpush.bf16.msra.mxu0 0
    %523 = vmatpush.bf16.msra.mxu0 0
    %524 = vmatpush.bf16.msra.mxu0 0
    %525 = vmatpush.bf16.msra.mxu0 %v324
    %526 = vmatpush.bf16.msra.mxu0 %v308
    %527 = vmatmul.bf16.gmra.mxu0 %v361
    %v528 = vpop.f32.mrf.mxu0
    %v529 = vadd.f32 %v180, %v528
    %v530 = vpop.f32.mrf.mxu0
    %531 = vdwg.mxu0
    %532 = vmatpush.bf16.msra.mxu0 0
    %533 = vmatpush.bf16.msra.mxu0 0
    %534 = vmatpush.bf16.msra.mxu0 0
    %535 = vmatpush.bf16.msra.mxu0 0
    %536 = vmatpush.bf16.msra.mxu0 0
    %537 = vmatpush.bf16.msra.mxu0 0
    %538 = vmatpush.bf16.msra.mxu0 %v325
    %539 = vmatpush.bf16.msra.mxu0 %v309
    %540 = vmatmul.bf16.gmra.mxu0 %v361
    %v541 = vpop.f32.mrf.mxu0
    %v542 = vadd.f32 %v181, %v541
    %v543 = vpop.f32.mrf.mxu0
    %544 = vdwg.mxu0
    %545 = vmatpush.bf16.msra.mxu0 0
    %546 = vmatpush.bf16.msra.mxu0 0
    %547 = vmatpush.bf16.msra.mxu0 0
    %548 = vmatpush.bf16.msra.mxu0 0
    %549 = vmatpush.bf16.msra.mxu0 0
    %550 = vmatpush.bf16.msra.mxu0 0
    %551 = vmatpush.bf16.msra.mxu0 %v326
    %552 = vmatpush.bf16.msra.mxu0 %v310
    %553 = vmatmul.bf16.gmra.mxu0 %v361
    %v554 = vpop.f32.mrf.mxu0
    %v555 = vadd.f32 %v182, %v554
    %v556 = vpop.f32.mrf.mxu0
    %557 = vdwg.mxu0
    %558 = vmatpush.bf16.msra.mxu0 0
    %559 = vmatpush.bf16.msra.mxu0 0
    %560 = vmatpush.bf16.msra.mxu0 0
    %561 = vmatpush.bf16.msra.mxu0 0
    %562 = vmatpush.bf16.msra.mxu0 0
    %563 = vmatpush.bf16.msra.mxu0 0
    %564 = vmatpush.bf16.msra.mxu0 %v327
    %565 = vmatpush.bf16.msra.mxu0 %v311
    %566 = vmatmul.bf16.gmra.mxu0 %v361
    %v567 = vpop.f32.mrf.mxu0
    %v568 = vadd.f32 %v183, %v567
    %v569 = vpop.f32.mrf.mxu0
    %570 = vdwg.mxu0
    %v571 = vmax.f32 %v373, 0.0
    %v572 = vmax.f32 %v386, 0.0
    %v573 = vmax.f32 %v399, 0.0
    %v574 = vmax.f32 %v412, 0.0
    %v575 = vmax.f32 %v425, 0.0
    %v576 = vmax.f32 %v438, 0.0
    %v577 = vmax.f32 %v451, 0.0
    %v578 = vmax.f32 %v464, 0.0
    %v579 = vmax.f32 %v477, 0.0
    %v580 = vmax.f32 %v490, 0.0
    %v581 = vmax.f32 %v503, 0.0
    %v582 = vmax.f32 %v516, 0.0
    %v583 = vmax.f32 %v529, 0.0
    %v584 = vmax.f32 %v542, 0.0
    %v585 = vmax.f32 %v555, 0.0
    %v586 = vmax.f32 %v568, 0.0
    %v587 = vpack.c.bf16 %v571, %v571
    %v588 = vpack.c.bf16 %v572, %v572
    %v589 = vpack.c.bf16 %v573, %v573
    %v590 = vpack.c.bf16 %v574, %v574
    %v591 = vpack.c.bf16 %v575, %v575
    %v592 = vpack.c.bf16 %v576, %v576
    %v593 = vpack.c.bf16 %v577, %v577
    %v594 = vpack.c.bf16 %v578, %v578
    %v595 = vpack.c.bf16 %v579, %v579
    %v596 = vpack.c.bf16 %v580, %v580
    %v597 = vpack.c.bf16 %v581, %v581
    %v598 = vpack.c.bf16 %v582, %v582
    %v599 = vpack.c.bf16 %v583, %v583
    %v600 = vpack.c.bf16 %v584, %v584
    %v601 = vpack.c.bf16 %v585, %v585
    %v602 = vpack.c.bf16 %v586, %v586
    %v603 = vperm.slane %v35, 3
    %v636 = vunpack.c.l.b16 %v75
    %v637 = vunpack.c.h.b16 %v75
    %v638 = vunpack.c.l.b16 %v76
    %v639 = vunpack.c.h.b16 %v76
    %v640 = vunpack.c.l.b16 %v77
    %v641 = vunpack.c.h.b16 %v77
    %v642 = vunpack.c.l.b16 %v78
    %v643 = vunpack.c.h.b16 %v78
    %v644 = vunpack.c.l.b16 %v79
    %v645 = vunpack.c.h.b16 %v79
    %v646 = vunpack.c.l.b16 %v80
    %v647 = vunpack.c.h.b16 %v80
    %v648 = vunpack.c.l.b16 %v81
    %v649 = vunpack.c.h.b16 %v81
    %v650 = vunpack.c.l.b16 %v82
    %v651 = vunpack.c.h.b16 %v82
    %v652 = vunpack.c.l.b16 %v83
    %v653 = vunpack.c.h.b16 %v83
    %v654 = vunpack.c.l.b16 %v84
    %v655 = vunpack.c.h.b16 %v84
    %v656 = vunpack.c.l.b16 %v85
    %v657 = vunpack.c.h.b16 %v85
    %v658 = vunpack.c.l.b16 %v86
    %v659 = vunpack.c.h.b16 %v86
    %v660 = vunpack.c.l.b16 %v87
    %v661 = vunpack.c.h.b16 %v87
    %v662 = vunpack.c.l.b16 %v88
    %v663 = vunpack.c.h.b16 %v88
    %v664 = vunpack.c.l.b16 %v89
    %v665 = vunpack.c.h.b16 %v89
    %v666 = vunpack.c.l.b16 %v90
    %v667 = vunpack.c.h.b16 %v90
    %v668 = vunpack.c.l.b16 %v91
    %v669 = vunpack.c.h.b16 %v91
    %v670 = vunpack.c.l.b16 %v92
    %v671 = vunpack.c.h.b16 %v92
    %v672 = vunpack.c.l.b16 %v93
    %v673 = vunpack.c.h.b16 %v93
    %v674 = vunpack.c.l.b16 %v94
    %v675 = vunpack.c.h.b16 %v94
    %v676 = vunpack.c.l.b16 %v95
    %v677 = vunpack.c.h.b16 %v95
    %v678 = vunpack.c.l.b16 %v96
    %v679 = vunpack.c.h.b16 %v96
    %v680 = vunpack.c.l.b16 %v97
    %v681 = vunpack.c.h.b16 %v97
    %v682 = vunpack.c.l.b16 %v98
    %v683 = vunpack.c.h.b16 %v98
    %v684 = vunpack.c.l.b16 %v99
    %v685 = vunpack.c.h.b16 %v99
    %v686 = vunpack.c.l.b16 %v100
    %v687 = vunpack.c.h.b16 %v100
    %v688 = vunpack.c.l.b16 %v101
    %v689 = vunpack.c.h.b16 %v101
    %v690 = vunpack.c.l.b16 %v102
    %v691 = vunpack.c.h.b16 %v102
    %v692 = vunpack.c.l.b16 %v103
    %v693 = vunpack.c.h.b16 %v103
    %v694 = vunpack.c.l.b16 %v104
    %v695 = vunpack.c.h.b16 %v104
    %v696 = vunpack.c.l.b16 %v105
    %v697 = vunpack.c.h.b16 %v105
    %v698 = vunpack.c.l.b16 %v106
    %v699 = vunpack.c.h.b16 %v106
    %v700 = vpack.c.b16 %v652, %v636
    %v701 = vpack.c.b16 %v653, %v637
    %v702 = vpack.c.b16 %v654, %v638
    %v703 = vpack.c.b16 %v655, %v639
    %v704 = vpack.c.b16 %v656, %v640
    %v705 = vpack.c.b16 %v657, %v641
    %v706 = vpack.c.b16 %v658, %v642
    %v707 = vpack.c.b16 %v659, %v643
    %v708 = vpack.c.b16 %v660, %v644
    %v709 = vpack.c.b16 %v661, %v645
    %v710 = vpack.c.b16 %v662, %v646
    %v711 = vpack.c.b16 %v663, %v647
    %v712 = vpack.c.b16 %v664, %v648
    %v713 = vpack.c.b16 %v665, %v649
    %v714 = vpack.c.b16 %v666, %v650
    %v715 = vpack.c.b16 %v667, %v651
    %v716 = vpack.c.b16 %v684, %v668
    %v717 = vpack.c.b16 %v685, %v669
    %v718 = vpack.c.b16 %v686, %v670
    %v719 = vpack.c.b16 %v687, %v671
    %v720 = vpack.c.b16 %v688, %v672
    %v721 = vpack.c.b16 %v689, %v673
    %v722 = vpack.c.b16 %v690, %v674
    %v723 = vpack.c.b16 %v691, %v675
    %v724 = vpack.c.b16 %v692, %v676
    %v725 = vpack.c.b16 %v693, %v677
    %v726 = vpack.c.b16 %v694, %v678
    %v727 = vpack.c.b16 %v695, %v679
    %v728 = vpack.c.b16 %v696, %v680
    %v729 = vpack.c.b16 %v697, %v681
    %v730 = vpack.c.b16 %v698, %v682
    %v731 = vpack.c.b16 %v699, %v683
    %764 = vmatpush.bf16.xpose.msra.mxu0 0
    %765 = vmatpush.bf16.xpose.msra.mxu0 0
    %766 = vmatpush.bf16.xpose.msra.mxu0 0
    %767 = vmatpush.bf16.xpose.msra.mxu0 0
    %768 = vmatpush.bf16.xpose.msra.mxu0 0
    %769 = vmatpush.bf16.xpose.msra.mxu0 0
    %770 = vmatpush.bf16.xpose.msra.mxu0 %v716
    %771 = vmatpush.bf16.xpose.msra.mxu0 %v700
    %772 = vmatmul.bf16.gmra.mxu0 %v587
    %v773 = vpop.f32.mrf.mxu0
    %v774 = vadd.f32 %v603, %v773
    %v775 = vpop.f32.mrf.mxu0
    %776 = vdwg.mxu0
    %777 = vmatpush.bf16.xpose.msra.mxu0 0
    %778 = vmatpush.bf16.xpose.msra.mxu0 0
    %779 = vmatpush.bf16.xpose.msra.mxu0 0
    %780 = vmatpush.bf16.xpose.msra.mxu0 0
    %781 = vmatpush.bf16.xpose.msra.mxu0 0
    %782 = vmatpush.bf16.xpose.msra.mxu0 0
    %783 = vmatpush.bf16.xpose.msra.mxu0 %v717
    %784 = vmatpush.bf16.xpose.msra.mxu0 %v701
    %785 = vmatmul.bf16.gmra.mxu0 %v588
    %v786 = vpop.f32.mrf.mxu0
    %v787 = vadd.f32 %v774, %v786
    %v788 = vpop.f32.mrf.mxu0
    %789 = vdwg.mxu0
    %790 = vmatpush.bf16.xpose.msra.mxu0 0
    %791 = vmatpush.bf16.xpose.msra.mxu0 0
    %792 = vmatpush.bf16.xpose.msra.mxu0 0
    %793 = vmatpush.bf16.xpose.msra.mxu0 0
    %794 = vmatpush.bf16.xpose.msra.mxu0 0
    %795 = vmatpush.bf16.xpose.msra.mxu0 0
    %796 = vmatpush.bf16.xpose.msra.mxu0 %v718
    %797 = vmatpush.bf16.xpose.msra.mxu0 %v702
    %798 = vmatmul.bf16.gmra.mxu0 %v589
    %v799 = vpop.f32.mrf.mxu0
    %v800 = vadd.f32 %v787, %v799
    %v801 = vpop.f32.mrf.mxu0
    %802 = vdwg.mxu0
    %803 = vmatpush.bf16.xpose.msra.mxu0 0
    %804 = vmatpush.bf16.xpose.msra.mxu0 0
    %805 = vmatpush.bf16.xpose.msra.mxu0 0
    %806 = vmatpush.bf16.xpose.msra.mxu0 0
    %807 = vmatpush.bf16.xpose.msra.mxu0 0
    %808 = vmatpush.bf16.xpose.msra.mxu0 0
    %809 = vmatpush.bf16.xpose.msra.mxu0 %v719
    %810 = vmatpush.bf16.xpose.msra.mxu0 %v703
    %811 = vmatmul.bf16.gmra.mxu0 %v590
    %v812 = vpop.f32.mrf.mxu0
    %v813 = vadd.f32 %v800, %v812
    %v814 = vpop.f32.mrf.mxu0
    %815 = vdwg.mxu0
    %816 = vmatpush.bf16.xpose.msra.mxu0 0
    %817 = vmatpush.bf16.xpose.msra.mxu0 0
    %818 = vmatpush.bf16.xpose.msra.mxu0 0
    %819 = vmatpush.bf16.xpose.msra.mxu0 0
    %820 = vmatpush.bf16.xpose.msra.mxu0 0
    %821 = vmatpush.bf16.xpose.msra.mxu0 0
    %822 = vmatpush.bf16.xpose.msra.mxu0 %v720
    %823 = vmatpush.bf16.xpose.msra.mxu0 %v704
    %824 = vmatmul.bf16.gmra.mxu0 %v591
    %v825 = vpop.f32.mrf.mxu0
    %v826 = vadd.f32 %v813, %v825
    %v827 = vpop.f32.mrf.mxu0
    %828 = vdwg.mxu0
    %829 = vmatpush.bf16.xpose.msra.mxu0 0
    %830 = vmatpush.bf16.xpose.msra.mxu0 0
    %831 = vmatpush.bf16.xpose.msra.mxu0 0
    %832 = vmatpush.bf16.xpose.msra.mxu0 0
    %833 = vmatpush.bf16.xpose.msra.mxu0 0
    %834 = vmatpush.bf16.xpose.msra.mxu0 0
    %835 = vmatpush.bf16.xpose.msra.mxu0 %v721
    %836 = vmatpush.bf16.xpose.msra.mxu0 %v705
    %837 = vmatmul.bf16.gmra.mxu0 %v592
    %v838 = vpop.f32.mrf.mxu0
    %v839 = vadd.f32 %v826, %v838
    %v840 = vpop.f32.mrf.mxu0
    %841 = vdwg.mxu0
    %842 = vmatpush.bf16.xpose.msra.mxu0 0
    %843 = vmatpush.bf16.xpose.msra.mxu0 0
    %844 = vmatpush.bf16.xpose.msra.mxu0 0
    %845 = vmatpush.bf16.xpose.msra.mxu0 0
    %846 = vmatpush.bf16.xpose.msra.mxu0 0
    %847 = vmatpush.bf16.xpose.msra.mxu0 0
    %848 = vmatpush.bf16.xpose.msra.mxu0 %v722
    %849 = vmatpush.bf16.xpose.msra.mxu0 %v706
    %850 = vmatmul.bf16.gmra.mxu0 %v593
    %v851 = vpop.f32.mrf.mxu0
    %v852 = vadd.f32 %v839, %v851
    %v853 = vpop.f32.mrf.mxu0
    %854 = vdwg.mxu0
    %855 = vmatpush.bf16.xpose.msra.mxu0 0
    %856 = vmatpush.bf16.xpose.msra.mxu0 0
    %857 = vmatpush.bf16.xpose.msra.mxu0 0
    %858 = vmatpush.bf16.xpose.msra.mxu0 0
    %859 = vmatpush.bf16.xpose.msra.mxu0 0
    %860 = vmatpush.bf16.xpose.msra.mxu0 0
    %861 = vmatpush.bf16.xpose.msra.mxu0 %v723
    %862 = vmatpush.bf16.xpose.msra.mxu0 %v707
    %863 = vmatmul.bf16.gmra.mxu0 %v594
    %v864 = vpop.f32.mrf.mxu0
    %v865 = vadd.f32 %v852, %v864
    %v866 = vpop.f32.mrf.mxu0
    %867 = vdwg.mxu0
    %868 = vmatpush.bf16.xpose.msra.mxu0 0
    %869 = vmatpush.bf16.xpose.msra.mxu0 0
    %870 = vmatpush.bf16.xpose.msra.mxu0 0
    %871 = vmatpush.bf16.xpose.msra.mxu0 0
    %872 = vmatpush.bf16.xpose.msra.mxu0 0
    %873 = vmatpush.bf16.xpose.msra.mxu0 0
    %874 = vmatpush.bf16.xpose.msra.mxu0 %v724
    %875 = vmatpush.bf16.xpose.msra.mxu0 %v708
    %876 = vmatmul.bf16.gmra.mxu0 %v595
    %v877 = vpop.f32.mrf.mxu0
    %v878 = vadd.f32 %v865, %v877
    %v879 = vpop.f32.mrf.mxu0
    %880 = vdwg.mxu0
    %881 = vmatpush.bf16.xpose.msra.mxu0 0
    %882 = vmatpush.bf16.xpose.msra.mxu0 0
    %883 = vmatpush.bf16.xpose.msra.mxu0 0
    %884 = vmatpush.bf16.xpose.msra.mxu0 0
    %885 = vmatpush.bf16.xpose.msra.mxu0 0
    %886 = vmatpush.bf16.xpose.msra.mxu0 0
    %887 = vmatpush.bf16.xpose.msra.mxu0 %v725
    %888 = vmatpush.bf16.xpose.msra.mxu0 %v709
    %889 = vmatmul.bf16.gmra.mxu0 %v596
    %v890 = vpop.f32.mrf.mxu0
    %v891 = vadd.f32 %v878, %v890
    %v892 = vpop.f32.mrf.mxu0
    %893 = vdwg.mxu0
    %894 = vmatpush.bf16.xpose.msra.mxu0 0
    %895 = vmatpush.bf16.xpose.msra.mxu0 0
    %896 = vmatpush.bf16.xpose.msra.mxu0 0
    %897 = vmatpush.bf16.xpose.msra.mxu0 0
    %898 = vmatpush.bf16.xpose.msra.mxu0 0
    %899 = vmatpush.bf16.xpose.msra.mxu0 0
    %900 = vmatpush.bf16.xpose.msra.mxu0 %v726
    %901 = vmatpush.bf16.xpose.msra.mxu0 %v710
    %902 = vmatmul.bf16.gmra.mxu0 %v597
    %v903 = vpop.f32.mrf.mxu0
    %v904 = vadd.f32 %v891, %v903
    %v905 = vpop.f32.mrf.mxu0
    %906 = vdwg.mxu0
    %907 = vmatpush.bf16.xpose.msra.mxu0 0
    %908 = vmatpush.bf16.xpose.msra.mxu0 0
    %909 = vmatpush.bf16.xpose.msra.mxu0 0
    %910 = vmatpush.bf16.xpose.msra.mxu0 0
    %911 = vmatpush.bf16.xpose.msra.mxu0 0
    %912 = vmatpush.bf16.xpose.msra.mxu0 0
    %913 = vmatpush.bf16.xpose.msra.mxu0 %v727
    %914 = vmatpush.bf16.xpose.msra.mxu0 %v711
    %915 = vmatmul.bf16.gmra.mxu0 %v598
    %v916 = vpop.f32.mrf.mxu0
    %v917 = vadd.f32 %v904, %v916
    %v918 = vpop.f32.mrf.mxu0
    %919 = vdwg.mxu0
    %920 = vmatpush.bf16.xpose.msra.mxu0 0
    %921 = vmatpush.bf16.xpose.msra.mxu0 0
    %922 = vmatpush.bf16.xpose.msra.mxu0 0
    %923 = vmatpush.bf16.xpose.msra.mxu0 0
    %924 = vmatpush.bf16.xpose.msra.mxu0 0
    %925 = vmatpush.bf16.xpose.msra.mxu0 0
    %926 = vmatpush.bf16.xpose.msra.mxu0 %v728
    %927 = vmatpush.bf16.xpose.msra.mxu0 %v712
    %928 = vmatmul.bf16.gmra.mxu0 %v599
    %v929 = vpop.f32.mrf.mxu0
    %v930 = vadd.f32 %v917, %v929
    %v931 = vpop.f32.mrf.mxu0
    %932 = vdwg.mxu0
    %933 = vmatpush.bf16.xpose.msra.mxu0 0
    %934 = vmatpush.bf16.xpose.msra.mxu0 0
    %935 = vmatpush.bf16.xpose.msra.mxu0 0
    %936 = vmatpush.bf16.xpose.msra.mxu0 0
    %937 = vmatpush.bf16.xpose.msra.mxu0 0
    %938 = vmatpush.bf16.xpose.msra.mxu0 0
    %939 = vmatpush.bf16.xpose.msra.mxu0 %v729
    %940 = vmatpush.bf16.xpose.msra.mxu0 %v713
    %941 = vmatmul.bf16.gmra.mxu0 %v600
    %v942 = vpop.f32.mrf.mxu0
    %v943 = vadd.f32 %v930, %v942
    %v944 = vpop.f32.mrf.mxu0
    %945 = vdwg.mxu0
    %946 = vmatpush.bf16.xpose.msra.mxu0 0
    %947 = vmatpush.bf16.xpose.msra.mxu0 0
    %948 = vmatpush.bf16.xpose.msra.mxu0 0
    %949 = vmatpush.bf16.xpose.msra.mxu0 0
    %950 = vmatpush.bf16.xpose.msra.mxu0 0
    %951 = vmatpush.bf16.xpose.msra.mxu0 0
    %952 = vmatpush.bf16.xpose.msra.mxu0 %v730
    %953 = vmatpush.bf16.xpose.msra.mxu0 %v714
    %954 = vmatmul.bf16.gmra.mxu0 %v601
    %v955 = vpop.f32.mrf.mxu0
    %v956 = vadd.f32 %v943, %v955
    %v957 = vpop.f32.mrf.mxu0
    %958 = vdwg.mxu0
    %959 = vmatpush.bf16.xpose.msra.mxu0 0
    %960 = vmatpush.bf16.xpose.msra.mxu0 0
    %961 = vmatpush.bf16.xpose.msra.mxu0 0
    %962 = vmatpush.bf16.xpose.msra.mxu0 0
    %963 = vmatpush.bf16.xpose.msra.mxu0 0
    %964 = vmatpush.bf16.xpose.msra.mxu0 0
    %965 = vmatpush.bf16.xpose.msra.mxu0 %v731
    %966 = vmatpush.bf16.xpose.msra.mxu0 %v715
    %967 = vmatmul.bf16.gmra.mxu0 %v602
    %v968 = vpop.f32.mrf.mxu0
    %v969 = vadd.f32 %v956, %v968
    %v970 = vpop.f32.mrf.mxu0
    %971 = vdwg.mxu0
    %v972 = vadd.f32 %v164, %v969
    %v973 = vsel %vm111, %v972, 0.0
    %974 = vadd.xlane.f32.xlu0 %v973
    %v975 = vpop.xlane.xlu0 %974
    %v976 = vmul.f32 %v975, %v139
    %v977 = vmul.f32 %v972, %v972
    %v978 = vsel %vm111, %v977, 0.0
    %979 = vadd.xlane.f32.xlu0 %v978
    %v980 = vpop.xlane.xlu0 %979
    %v981 = vmul.f32 %v980, %v139
    %v982 = vmul.f32 %v976, %v976
    %v983 = vsub.f32 %v981, %v982
    %v984 = vsub.f32 %v972, %v976
    %v985 = vadd.f32 %v983, 1e-05
    %v986 = vrsqrt.pop %v985
    %v987 = vmul.f32 %v986, %v985
    %v988 = vmul.f32 %v987, %v986
    %v989 = vmul.f32 0.5, %v988
    %v990 = vsub.f32 1.5, %v989
    %v991 = vmul.f32 %v986, %v990
    %vm992 = vweird.f32 %v985
    %vm993 = vweird.f32 %v986
    %vm994 = vmor %vm992, %vm993
    %v995 = vsel %vm994, %v986, %v991
    %v996 = vmul.f32 %v984, %v995
    %v997 = vperm.slane %v35, 4
    %v998 = vmul.f32 %v996, %v997
    %v999 = vperm.slane %v35, 5
    %v1000 = vadd.f32 %v998, %v999
    %v1001 = vld [vmem:[%s1 + $0x30] sm:$0xff]
    %v1002 = vld [vmem:[%s1 + $0x38] sm:$0xff]
    %v1003 = vld [vmem:[%s1 + $0x40] sm:$0xff]
    %v1004 = vld [vmem:[%s1 + $0x48] sm:$0xff]
    %v1005 = vpack.c.bf16 %v1002, %v1001
    %v1006 = vpack.c.bf16 %v1004, %v1003
    %v1007 = vld [vmem:[#allocation2 + $0x200] sm:$0xff]
    %v1008 = vld [vmem:[#allocation2 + $0x208] sm:$0xff]
    %v1009 = vld [vmem:[#allocation2 + $0x210] sm:$0xff]
    %v1010 = vld [vmem:[#allocation2 + $0x218] sm:$0xff]
    %v1011 = vld [vmem:[#allocation2 + $0x220] sm:$0xff]
    %v1012 = vld [vmem:[#allocation2 + $0x228] sm:$0xff]
    %v1013 = vld [vmem:[#allocation2 + $0x230] sm:$0xff]
    %v1014 = vld [vmem:[#allocation2 + $0x238] sm:$0xff]
    %v1015 = vld [vmem:[#allocation2 + $0x240] sm:$0xff]
    %v1016 = vld [vmem:[#allocation2 + $0x248] sm:$0xff]
    %v1017 = vld [vmem:[#allocation2 + $0x250] sm:$0xff]
    %v1018 = vld [vmem:[#allocation2 + $0x258] sm:$0xff]
    %v1019 = vld [vmem:[#allocation2 + $0x260] sm:$0xff]
    %v1020 = vld [vmem:[#allocation2 + $0x268] sm:$0xff]
    %v1021 = vld [vmem:[#allocation2 + $0x270] sm:$0xff]
    %v1022 = vld [vmem:[#allocation2 + $0x278] sm:$0xff]
    %v1023 = vld [vmem:[#allocation2 + $0x280] sm:$0xff]
    %v1024 = vld [vmem:[#allocation2 + $0x288] sm:$0xff]
    %v1025 = vld [vmem:[#allocation2 + $0x290] sm:$0xff]
    %v1026 = vld [vmem:[#allocation2 + $0x298] sm:$0xff]
    %v1027 = vld [vmem:[#allocation2 + $0x2a0] sm:$0xff]
    %v1028 = vld [vmem:[#allocation2 + $0x2a8] sm:$0xff]
    %v1029 = vld [vmem:[#allocation2 + $0x2b0] sm:$0xff]
    %v1030 = vld [vmem:[#allocation2 + $0x2b8] sm:$0xff]
    %v1031 = vld [vmem:[#allocation2 + $0x2c0] sm:$0xff]
    %v1032 = vld [vmem:[#allocation2 + $0x2c8] sm:$0xff]
    %v1033 = vld [vmem:[#allocation2 + $0x2d0] sm:$0xff]
    %v1034 = vld [vmem:[#allocation2 + $0x2d8] sm:$0xff]
    %v1035 = vld [vmem:[#allocation2 + $0x2e0] sm:$0xff]
    %v1036 = vld [vmem:[#allocation2 + $0x2e8] sm:$0xff]
    %v1037 = vld [vmem:[#allocation2 + $0x2f0] sm:$0xff]
    %v1038 = vld [vmem:[#allocation2 + $0x2f8] sm:$0xff]
    %v1039 = vld [vmem:[#allocation2 + $0x300] sm:$0xff]
    %v1040 = vld [vmem:[#allocation2 + $0x308] sm:$0xff]
    %v1041 = vld [vmem:[#allocation2 + $0x310] sm:$0xff]
    %v1042 = vld [vmem:[#allocation2 + $0x318] sm:$0xff]
    %v1043 = vld [vmem:[#allocation2 + $0x320] sm:$0xff]
    %v1044 = vld [vmem:[#allocation2 + $0x328] sm:$0xff]
    %v1045 = vld [vmem:[#allocation2 + $0x330] sm:$0xff]
    %v1046 = vld [vmem:[#allocation2 + $0x338] sm:$0xff]
    %v1047 = vld [vmem:[#allocation2 + $0x340] sm:$0xff]
    %v1048 = vld [vmem:[#allocation2 + $0x348] sm:$0xff]
    %v1049 = vld [vmem:[#allocation2 + $0x350] sm:$0xff]
    %v1050 = vld [vmem:[#allocation2 + $0x358] sm:$0xff]
    %v1051 = vld [vmem:[#allocation2 + $0x360] sm:$0xff]
    %v1052 = vld [vmem:[#allocation2 + $0x368] sm:$0xff]
    %v1053 = vld [vmem:[#allocation2 + $0x370] sm:$0xff]
    %v1054 = vld [vmem:[#allocation2 + $0x378] sm:$0xff]
    %v1055 = vld [vmem:[#allocation2 + $0x380] sm:$0xff]
    %v1056 = vld [vmem:[#allocation2 + $0x388] sm:$0xff]
    %v1057 = vld [vmem:[#allocation2 + $0x390] sm:$0xff]
    %v1058 = vld [vmem:[#allocation2 + $0x398] sm:$0xff]
    %v1059 = vld [vmem:[#allocation2 + $0x3a0] sm:$0xff]
    %v1060 = vld [vmem:[#allocation2 + $0x3a8] sm:$0xff]
    %v1061 = vld [vmem:[#allocation2 + $0x3b0] sm:$0xff]
    %v1062 = vld [vmem:[#allocation2 + $0x3b8] sm:$0xff]
    %v1063 = vld [vmem:[#allocation2 + $0x3c0] sm:$0xff]
    %v1064 = vld [vmem:[#allocation2 + $0x3c8] sm:$0xff]
    %v1065 = vld [vmem:[#allocation2 + $0x3d0] sm:$0xff]
    %v1066 = vld [vmem:[#allocation2 + $0x3d8] sm:$0xff]
    %v1067 = vld [vmem:[#allocation2 + $0x3e0] sm:$0xff]
    %v1068 = vld [vmem:[#allocation2 + $0x3e8] sm:$0xff]
    %v1069 = vld [vmem:[#allocation2 + $0x3f0] sm:$0xff]
    %v1070 = vld [vmem:[#allocation2 + $0x3f8] sm:$0xff]
    %s1071 = scalar_lea.vmem %s2, 1
    %v1072 = vld [vmem:[%s1071] ss:$2 sm:$0xff]
    %s1073 = scalar_lea.vmem %s2, 17
    %v1074 = vld [vmem:[%s1073] ss:$2 sm:$0xff]
    %v1075 = vpack.c.bf16 %v1000, %v1000
    %v1077 = vsel %vm111, %v1075, 0
    %1079 = vmatpush.bf16.msra.mxu0 0
    %1080 = vmatpush.bf16.msra.mxu0 0
    %1081 = vmatpush.bf16.msra.mxu0 0
    %1082 = vmatpush.bf16.msra.mxu0 0
    %1083 = vmatpush.bf16.msra.mxu0 0
    %1084 = vmatpush.bf16.msra.mxu0 0
    %1085 = vmatpush.bf16.msra.mxu0 %v1006
    %1086 = vmatpush.bf16.msra.mxu0 %v1005
    %1087 = vmatmul.bf16.gmra.mxu0 %v1077
    %v1088 = vpop.f32.mrf.mxu0
    %v1089 = vadd.f32 %v1000, %v1088
    %v1090 = vpop.f32.mrf.mxu0
    %1091 = vdwg.mxu0
    %v1092 = vperm.slane %v35, 6
    %v1093 = vadd.f32 %v1089, %v1092
    %v1094 = vsel %vm111, %v1093, 0.0
    %1095 = vadd.xlane.f32.xlu0 %v1094
    %v1096 = vpop.xlane.xlu0 %1095
    %v1097 = vmul.f32 %v1096, %v139
    %v1098 = vmul.f32 %v1093, %v1093
    %v1099 = vsel %vm111, %v1098, 0.0
    %1100 = vadd.xlane.f32.xlu0 %v1099
    %v1101 = vpop.xlane.xlu0 %1100
    %v1102 = vmul.f32 %v1101, %v139
    %v1103 = vmul.f32 %v1097, %v1097
    %v1104 = vsub.f32 %v1102, %v1103
    %v1105 = vsub.f32 %v1093, %v1097
    %v1106 = vadd.f32 %v1104, 1e-05
    %v1107 = vrsqrt.pop %v1106
    %v1108 = vmul.f32 %v1107, %v1106
    %v1109 = vmul.f32 %v1108, %v1107
    %v1110 = vmul.f32 0.5, %v1109
    %v1111 = vsub.f32 1.5, %v1110
    %v1112 = vmul.f32 %v1107, %v1111
    %vm1113 = vweird.f32 %v1106
    %vm1114 = vweird.f32 %v1107
    %vm1115 = vmor %vm1113, %vm1114
    %v1116 = vsel %vm1115, %v1107, %v1112
    %v1117 = vmul.f32 %v1105, %v1116
    %v1118 = vperm.slane %v35, 7
    %v1119 = vmul.f32 %v1117, %v1118
    %v1120 = vperm.slane %v36, 0
    %v1121 = vadd.f32 %v1119, %v1120
    %v1122 = vpack.c.bf16 %v1121, %v1121
    %v1125 = vperm.slane %v1072, 0
    %v1126 = vperm.slane %v1072, 1
    %v1127 = vperm.slane %v1072, 2
    %v1128 = vperm.slane %v1072, 3
    %v1129 = vperm.slane %v1072, 4
    %v1130 = vperm.slane %v1072, 5
    %v1131 = vperm.slane %v1072, 6
    %v1132 = vperm.slane %v1072, 7
    %v1133 = vperm.slane %v1074, 0
    %v1134 = vperm.slane %v1074, 1
    %v1135 = vperm.slane %v1074, 2
    %v1136 = vperm.slane %v1074, 3
    %v1137 = vperm.slane %v1074, 4
    %v1138 = vperm.slane %v1074, 5
    %v1139 = vperm.slane %v1074, 6
    %v1140 = vperm.slane %v1074, 7
    %v1189 = vunpack.c.l.b16 %v1007
    %v1190 = vunpack.c.h.b16 %v1007
    %v1191 = vunpack.c.l.b16 %v1008
    %v1192 = vunpack.c.h.b16 %v1008
    %v1193 = vunpack.c.l.b16 %v1009
    %v1194 = vunpack.c.h.b16 %v1009
    %v1195 = vunpack.c.l.b16 %v1010
    %v1196 = vunpack.c.h.b16 %v1010
    %v1197 = vunpack.c.l.b16 %v1011
    %v1198 = vunpack.c.h.b16 %v1011
    %v1199 = vunpack.c.l.b16 %v1012
    %v1200 = vunpack.c.h.b16 %v1012
    %v1201 = vunpack.c.l.b16 %v1013
    %v1202 = vunpack.c.h.b16 %v1013
    %v1203 = vunpack.c.l.b16 %v1014
    %v1204 = vunpack.c.h.b16 %v1014
    %v1205 = vunpack.c.l.b16 %v1015
    %v1206 = vunpack.c.h.b16 %v1015
    %v1207 = vunpack.c.l.b16 %v1016
    %v1208 = vunpack.c.h.b16 %v1016
    %v1209 = vunpack.c.l.b16 %v1017
    %v1210 = vunpack.c.h.b16 %v1017
    %v1211 = vunpack.c.l.b16 %v1018
    %v1212 = vunpack.c.h.b16 %v1018
    %v1213 = vunpack.c.l.b16 %v1019
    %v1214 = vunpack.c.h.b16 %v1019
    %v1215 = vunpack.c.l.b16 %v1020
    %v1216 = vunpack.c.h.b16 %v1020
    %v1217 = vunpack.c.l.b16 %v1021
    %v1218 = vunpack.c.h.b16 %v1021
    %v1219 = vunpack.c.l.b16 %v1022
    %v1220 = vunpack.c.h.b16 %v1022
    %v1221 = vunpack.c.l.b16 %v1023
    %v1222 = vunpack.c.h.b16 %v1023
    %v1223 = vunpack.c.l.b16 %v1024
    %v1224 = vunpack.c.h.b16 %v1024
    %v1225 = vunpack.c.l.b16 %v1025
    %v1226 = vunpack.c.h.b16 %v1025
    %v1227 = vunpack.c.l.b16 %v1026
    %v1228 = vunpack.c.h.b16 %v1026
    %v1229 = vunpack.c.l.b16 %v1027
    %v1230 = vunpack.c.h.b16 %v1027
    %v1231 = vunpack.c.l.b16 %v1028
    %v1232 = vunpack.c.h.b16 %v1028
    %v1233 = vunpack.c.l.b16 %v1029
    %v1234 = vunpack.c.h.b16 %v1029
    %v1235 = vunpack.c.l.b16 %v1030
    %v1236 = vunpack.c.h.b16 %v1030
    %v1237 = vunpack.c.l.b16 %v1031
    %v1238 = vunpack.c.h.b16 %v1031
    %v1239 = vunpack.c.l.b16 %v1032
    %v1240 = vunpack.c.h.b16 %v1032
    %v1241 = vunpack.c.l.b16 %v1033
    %v1242 = vunpack.c.h.b16 %v1033
    %v1243 = vunpack.c.l.b16 %v1034
    %v1244 = vunpack.c.h.b16 %v1034
    %v1245 = vunpack.c.l.b16 %v1035
    %v1246 = vunpack.c.h.b16 %v1035
    %v1247 = vunpack.c.l.b16 %v1036
    %v1248 = vunpack.c.h.b16 %v1036
    %v1249 = vunpack.c.l.b16 %v1037
    %v1250 = vunpack.c.h.b16 %v1037
    %v1251 = vunpack.c.l.b16 %v1038
    %v1252 = vunpack.c.h.b16 %v1038
    %v1253 = vpack.c.b16 %v1205, %v1189
    %v1254 = vpack.c.b16 %v1206, %v1190
    %v1255 = vpack.c.b16 %v1207, %v1191
    %v1256 = vpack.c.b16 %v1208, %v1192
    %v1257 = vpack.c.b16 %v1209, %v1193
    %v1258 = vpack.c.b16 %v1210, %v1194
    %v1259 = vpack.c.b16 %v1211, %v1195
    %v1260 = vpack.c.b16 %v1212, %v1196
    %v1261 = vpack.c.b16 %v1213, %v1197
    %v1262 = vpack.c.b16 %v1214, %v1198
    %v1263 = vpack.c.b16 %v1215, %v1199
    %v1264 = vpack.c.b16 %v1216, %v1200
    %v1265 = vpack.c.b16 %v1217, %v1201
    %v1266 = vpack.c.b16 %v1218, %v1202
    %v1267 = vpack.c.b16 %v1219, %v1203
    %v1268 = vpack.c.b16 %v1220, %v1204
    %v1269 = vpack.c.b16 %v1237, %v1221
    %v1270 = vpack.c.b16 %v1238, %v1222
    %v1271 = vpack.c.b16 %v1239, %v1223
    %v1272 = vpack.c.b16 %v1240, %v1224
    %v1273 = vpack.c.b16 %v1241, %v1225
    %v1274 = vpack.c.b16 %v1242, %v1226
    %v1275 = vpack.c.b16 %v1243, %v1227
    %v1276 = vpack.c.b16 %v1244, %v1228
    %v1277 = vpack.c.b16 %v1245, %v1229
    %v1278 = vpack.c.b16 %v1246, %v1230
    %v1279 = vpack.c.b16 %v1247, %v1231
    %v1280 = vpack.c.b16 %v1248, %v1232
    %v1281 = vpack.c.b16 %v1249, %v1233
    %v1282 = vpack.c.b16 %v1250, %v1234
    %v1283 = vpack.c.b16 %v1251, %v1235
    %v1284 = vpack.c.b16 %v1252, %v1236
    %v1318 = vsel %vm111, %v1122, 0
    %1320 = vmatpush.bf16.msra.mxu0 0
    %1321 = vmatpush.bf16.msra.mxu0 0
    %1322 = vmatpush.bf16.msra.mxu0 0
    %1323 = vmatpush.bf16.msra.mxu0 0
    %1324 = vmatpush.bf16.msra.mxu0 0
    %1325 = vmatpush.bf16.msra.mxu0 0
    %1326 = vmatpush.bf16.msra.mxu0 %v1269
    %1327 = vmatpush.bf16.msra.mxu0 %v1253
    %1328 = vmatmul.bf16.gmra.mxu0 %v1318
    %v1329 = vpop.f32.mrf.mxu0
    %v1330 = vadd.f32 %v1125, %v1329
    %v1331 = vpop.f32.mrf.mxu0
    %1332 = vdwg.mxu0
    %1333 = vmatpush.bf16.msra.mxu0 0
    %1334 = vmatpush.bf16.msra.mxu0 0
    %1335 = vmatpush.bf16.msra.mxu0 0
    %1336 = vmatpush.bf16.msra.mxu0 0
    %1337 = vmatpush.bf16.msra.mxu0 0
    %1338 = vmatpush.bf16.msra.mxu0 0
    %1339 = vmatpush.bf16.msra.mxu0 %v1270
    %1340 = vmatpush.bf16.msra.mxu0 %v1254
    %1341 = vmatmul.bf16.gmra.mxu0 %v1318
    %v1342 = vpop.f32.mrf.mxu0
    %v1343 = vadd.f32 %v1126, %v1342
    %v1344 = vpop.f32.mrf.mxu0
    %1345 = vdwg.mxu0
    %1346 = vmatpush.bf16.msra.mxu0 0
    %1347 = vmatpush.bf16.msra.mxu0 0
    %1348 = vmatpush.bf16.msra.mxu0 0
    %1349 = vmatpush.bf16.msra.mxu0 0
    %1350 = vmatpush.bf16.msra.mxu0 0
    %1351 = vmatpush.bf16.msra.mxu0 0
    %1352 = vmatpush.bf16.msra.mxu0 %v1271
    %1353 = vmatpush.bf16.msra.mxu0 %v1255
    %1354 = vmatmul.bf16.gmra.mxu0 %v1318
    %v1355 = vpop.f32.mrf.mxu0
    %v1356 = vadd.f32 %v1127, %v1355
    %v1357 = vpop.f32.mrf.mxu0
    %1358 = vdwg.mxu0
    %1359 = vmatpush.bf16.msra.mxu0 0
    %1360 = vmatpush.bf16.msra.mxu0 0
    %1361 = vmatpush.bf16.msra.mxu0 0
    %1362 = vmatpush.bf16.msra.mxu0 0
    %1363 = vmatpush.bf16.msra.mxu0 0
    %1364 = vmatpush.bf16.msra.mxu0 0
    %1365 = vmatpush.bf16.msra.mxu0 %v1272
    %1366 = vmatpush.bf16.msra.mxu0 %v1256
    %1367 = vmatmul.bf16.gmra.mxu0 %v1318
    %v1368 = vpop.f32.mrf.mxu0
    %v1369 = vadd.f32 %v1128, %v1368
    %v1370 = vpop.f32.mrf.mxu0
    %1371 = vdwg.mxu0
    %1372 = vmatpush.bf16.msra.mxu0 0
    %1373 = vmatpush.bf16.msra.mxu0 0
    %1374 = vmatpush.bf16.msra.mxu0 0
    %1375 = vmatpush.bf16.msra.mxu0 0
    %1376 = vmatpush.bf16.msra.mxu0 0
    %1377 = vmatpush.bf16.msra.mxu0 0
    %1378 = vmatpush.bf16.msra.mxu0 %v1273
    %1379 = vmatpush.bf16.msra.mxu0 %v1257
    %1380 = vmatmul.bf16.gmra.mxu0 %v1318
    %v1381 = vpop.f32.mrf.mxu0
    %v1382 = vadd.f32 %v1129, %v1381
    %v1383 = vpop.f32.mrf.mxu0
    %1384 = vdwg.mxu0
    %1385 = vmatpush.bf16.msra.mxu0 0
    %1386 = vmatpush.bf16.msra.mxu0 0
    %1387 = vmatpush.bf16.msra.mxu0 0
    %1388 = vmatpush.bf16.msra.mxu0 0
    %1389 = vmatpush.bf16.msra.mxu0 0
    %1390 = vmatpush.bf16.msra.mxu0 0
    %1391 = vmatpush.bf16.msra.mxu0 %v1274
    %1392 = vmatpush.bf16.msra.mxu0 %v1258
    %1393 = vmatmul.bf16.gmra.mxu0 %v1318
    %v1394 = vpop.f32.mrf.mxu0
    %v1395 = vadd.f32 %v1130, %v1394
    %v1396 = vpop.f32.mrf.mxu0
    %1397 = vdwg.mxu0
    %1398 = vmatpush.bf16.msra.mxu0 0
    %1399 = vmatpush.bf16.msra.mxu0 0
    %1400 = vmatpush.bf16.msra.mxu0 0
    %1401 = vmatpush.bf16.msra.mxu0 0
    %1402 = vmatpush.bf16.msra.mxu0 0
    %1403 = vmatpush.bf16.msra.mxu0 0
    %1404 = vmatpush.bf16.msra.mxu0 %v1275
    %1405 = vmatpush.bf16.msra.mxu0 %v1259
    %1406 = vmatmul.bf16.gmra.mxu0 %v1318
    %v1407 = vpop.f32.mrf.mxu0
    %v1408 = vadd.f32 %v1131, %v1407
    %v1409 = vpop.f32.mrf.mxu0
    %1410 = vdwg.mxu0
    %1411 = vmatpush.bf16.msra.mxu0 0
    %1412 = vmatpush.bf16.msra.mxu0 0
    %1413 = vmatpush.bf16.msra.mxu0 0
    %1414 = vmatpush.bf16.msra.mxu0 0
    %1415 = vmatpush.bf16.msra.mxu0 0
    %1416 = vmatpush.bf16.msra.mxu0 0
    %1417 = vmatpush.bf16.msra.mxu0 %v1276
    %1418 = vmatpush.bf16.msra.mxu0 %v1260
    %1419 = vmatmul.bf16.gmra.mxu0 %v1318
    %v1420 = vpop.f32.mrf.mxu0
    %v1421 = vadd.f32 %v1132, %v1420
    %v1422 = vpop.f32.mrf.mxu0
    %1423 = vdwg.mxu0
    %1424 = vmatpush.bf16.msra.mxu0 0
    %1425 = vmatpush.bf16.msra.mxu0 0
    %1426 = vmatpush.bf16.msra.mxu0 0
    %1427 = vmatpush.bf16.msra.mxu0 0
    %1428 = vmatpush.bf16.msra.mxu0 0
    %1429 = vmatpush.bf16.msra.mxu0 0
    %1430 = vmatpush.bf16.msra.mxu0 %v1277
    %1431 = vmatpush.bf16.msra.mxu0 %v1261
    %1432 = vmatmul.bf16.gmra.mxu0 %v1318
    %v1433 = vpop.f32.mrf.mxu0
    %v1434 = vadd.f32 %v1133, %v1433
    %v1435 = vpop.f32.mrf.mxu0
    %1436 = vdwg.mxu0
    %1437 = vmatpush.bf16.msra.mxu0 0
    %1438 = vmatpush.bf16.msra.mxu0 0
    %1439 = vmatpush.bf16.msra.mxu0 0
    %1440 = vmatpush.bf16.msra.mxu0 0
    %1441 = vmatpush.bf16.msra.mxu0 0
    %1442 = vmatpush.bf16.msra.mxu0 0
    %1443 = vmatpush.bf16.msra.mxu0 %v1278
    %1444 = vmatpush.bf16.msra.mxu0 %v1262
    %1445 = vmatmul.bf16.gmra.mxu0 %v1318
    %v1446 = vpop.f32.mrf.mxu0
    %v1447 = vadd.f32 %v1134, %v1446
    %v1448 = vpop.f32.mrf.mxu0
    %1449 = vdwg.mxu0
    %1450 = vmatpush.bf16.msra.mxu0 0
    %1451 = vmatpush.bf16.msra.mxu0 0
    %1452 = vmatpush.bf16.msra.mxu0 0
    %1453 = vmatpush.bf16.msra.mxu0 0
    %1454 = vmatpush.bf16.msra.mxu0 0
    %1455 = vmatpush.bf16.msra.mxu0 0
    %1456 = vmatpush.bf16.msra.mxu0 %v1279
    %1457 = vmatpush.bf16.msra.mxu0 %v1263
    %1458 = vmatmul.bf16.gmra.mxu0 %v1318
    %v1459 = vpop.f32.mrf.mxu0
    %v1460 = vadd.f32 %v1135, %v1459
    %v1461 = vpop.f32.mrf.mxu0
    %1462 = vdwg.mxu0
    %1463 = vmatpush.bf16.msra.mxu0 0
    %1464 = vmatpush.bf16.msra.mxu0 0
    %1465 = vmatpush.bf16.msra.mxu0 0
    %1466 = vmatpush.bf16.msra.mxu0 0
    %1467 = vmatpush.bf16.msra.mxu0 0
    %1468 = vmatpush.bf16.msra.mxu0 0
    %1469 = vmatpush.bf16.msra.mxu0 %v1280
    %1470 = vmatpush.bf16.msra.mxu0 %v1264
    %1471 = vmatmul.bf16.gmra.mxu0 %v1318
    %v1472 = vpop.f32.mrf.mxu0
    %v1473 = vadd.f32 %v1136, %v1472
    %v1474 = vpop.f32.mrf.mxu0
    %1475 = vdwg.mxu0
    %1476 = vmatpush.bf16.msra.mxu0 0
    %1477 = vmatpush.bf16.msra.mxu0 0
    %1478 = vmatpush.bf16.msra.mxu0 0
    %1479 = vmatpush.bf16.msra.mxu0 0
    %1480 = vmatpush.bf16.msra.mxu0 0
    %1481 = vmatpush.bf16.msra.mxu0 0
    %1482 = vmatpush.bf16.msra.mxu0 %v1281
    %1483 = vmatpush.bf16.msra.mxu0 %v1265
    %1484 = vmatmul.bf16.gmra.mxu0 %v1318
    %v1485 = vpop.f32.mrf.mxu0
    %v1486 = vadd.f32 %v1137, %v1485
    %v1487 = vpop.f32.mrf.mxu0
    %1488 = vdwg.mxu0
    %1489 = vmatpush.bf16.msra.mxu0 0
    %1490 = vmatpush.bf16.msra.mxu0 0
    %1491 = vmatpush.bf16.msra.mxu0 0
    %1492 = vmatpush.bf16.msra.mxu0 0
    %1493 = vmatpush.bf16.msra.mxu0 0
    %1494 = vmatpush.bf16.msra.mxu0 0
    %1495 = vmatpush.bf16.msra.mxu0 %v1282
    %1496 = vmatpush.bf16.msra.mxu0 %v1266
    %1497 = vmatmul.bf16.gmra.mxu0 %v1318
    %v1498 = vpop.f32.mrf.mxu0
    %v1499 = vadd.f32 %v1138, %v1498
    %v1500 = vpop.f32.mrf.mxu0
    %1501 = vdwg.mxu0
    %1502 = vmatpush.bf16.msra.mxu0 0
    %1503 = vmatpush.bf16.msra.mxu0 0
    %1504 = vmatpush.bf16.msra.mxu0 0
    %1505 = vmatpush.bf16.msra.mxu0 0
    %1506 = vmatpush.bf16.msra.mxu0 0
    %1507 = vmatpush.bf16.msra.mxu0 0
    %1508 = vmatpush.bf16.msra.mxu0 %v1283
    %1509 = vmatpush.bf16.msra.mxu0 %v1267
    %1510 = vmatmul.bf16.gmra.mxu0 %v1318
    %v1511 = vpop.f32.mrf.mxu0
    %v1512 = vadd.f32 %v1139, %v1511
    %v1513 = vpop.f32.mrf.mxu0
    %1514 = vdwg.mxu0
    %1515 = vmatpush.bf16.msra.mxu0 0
    %1516 = vmatpush.bf16.msra.mxu0 0
    %1517 = vmatpush.bf16.msra.mxu0 0
    %1518 = vmatpush.bf16.msra.mxu0 0
    %1519 = vmatpush.bf16.msra.mxu0 0
    %1520 = vmatpush.bf16.msra.mxu0 0
    %1521 = vmatpush.bf16.msra.mxu0 %v1284
    %1522 = vmatpush.bf16.msra.mxu0 %v1268
    %1523 = vmatmul.bf16.gmra.mxu0 %v1318
    %v1524 = vpop.f32.mrf.mxu0
    %v1525 = vadd.f32 %v1140, %v1524
    %v1526 = vpop.f32.mrf.mxu0
    %1527 = vdwg.mxu0
    %v1528 = vmax.f32 %v1330, 0.0
    %v1529 = vmax.f32 %v1343, 0.0
    %v1530 = vmax.f32 %v1356, 0.0
    %v1531 = vmax.f32 %v1369, 0.0
    %v1532 = vmax.f32 %v1382, 0.0
    %v1533 = vmax.f32 %v1395, 0.0
    %v1534 = vmax.f32 %v1408, 0.0
    %v1535 = vmax.f32 %v1421, 0.0
    %v1536 = vmax.f32 %v1434, 0.0
    %v1537 = vmax.f32 %v1447, 0.0
    %v1538 = vmax.f32 %v1460, 0.0
    %v1539 = vmax.f32 %v1473, 0.0
    %v1540 = vmax.f32 %v1486, 0.0
    %v1541 = vmax.f32 %v1499, 0.0
    %v1542 = vmax.f32 %v1512, 0.0
    %v1543 = vmax.f32 %v1525, 0.0
    %v1544 = vpack.c.bf16 %v1528, %v1528
    %v1545 = vpack.c.bf16 %v1529, %v1529
    %v1546 = vpack.c.bf16 %v1530, %v1530
    %v1547 = vpack.c.bf16 %v1531, %v1531
    %v1548 = vpack.c.bf16 %v1532, %v1532
    %v1549 = vpack.c.bf16 %v1533, %v1533
    %v1550 = vpack.c.bf16 %v1534, %v1534
    %v1551 = vpack.c.bf16 %v1535, %v1535
    %v1552 = vpack.c.bf16 %v1536, %v1536
    %v1553 = vpack.c.bf16 %v1537, %v1537
    %v1554 = vpack.c.bf16 %v1538, %v1538
    %v1555 = vpack.c.bf16 %v1539, %v1539
    %v1556 = vpack.c.bf16 %v1540, %v1540
    %v1557 = vpack.c.bf16 %v1541, %v1541
    %v1558 = vpack.c.bf16 %v1542, %v1542
    %v1559 = vpack.c.bf16 %v1543, %v1543
    %v1560 = vperm.slane %v36, 1
    %v1593 = vunpack.c.l.b16 %v1039
    %v1594 = vunpack.c.h.b16 %v1039
    %v1595 = vunpack.c.l.b16 %v1040
    %v1596 = vunpack.c.h.b16 %v1040
    %v1597 = vunpack.c.l.b16 %v1041
    %v1598 = vunpack.c.h.b16 %v1041
    %v1599 = vunpack.c.l.b16 %v1042
    %v1600 = vunpack.c.h.b16 %v1042
    %v1601 = vunpack.c.l.b16 %v1043
    %v1602 = vunpack.c.h.b16 %v1043
    %v1603 = vunpack.c.l.b16 %v1044
    %v1604 = vunpack.c.h.b16 %v1044
    %v1605 = vunpack.c.l.b16 %v1045
    %v1606 = vunpack.c.h.b16 %v1045
    %v1607 = vunpack.c.l.b16 %v1046
    %v1608 = vunpack.c.h.b16 %v1046
    %v1609 = vunpack.c.l.b16 %v1047
    %v1610 = vunpack.c.h.b16 %v1047
    %v1611 = vunpack.c.l.b16 %v1048
    %v1612 = vunpack.c.h.b16 %v1048
    %v1613 = vunpack.c.l.b16 %v1049
    %v1614 = vunpack.c.h.b16 %v1049
    %v1615 = vunpack.c.l.b16 %v1050
    %v1616 = vunpack.c.h.b16 %v1050
    %v1617 = vunpack.c.l.b16 %v1051
    %v1618 = vunpack.c.h.b16 %v1051
    %v1619 = vunpack.c.l.b16 %v1052
    %v1620 = vunpack.c.h.b16 %v1052
    %v1621 = vunpack.c.l.b16 %v1053
    %v1622 = vunpack.c.h.b16 %v1053
    %v1623 = vunpack.c.l.b16 %v1054
    %v1624 = vunpack.c.h.b16 %v1054
    %v1625 = vunpack.c.l.b16 %v1055
    %v1626 = vunpack.c.h.b16 %v1055
    %v1627 = vunpack.c.l.b16 %v1056
    %v1628 = vunpack.c.h.b16 %v1056
    %v1629 = vunpack.c.l.b16 %v1057
    %v1630 = vunpack.c.h.b16 %v1057
    %v1631 = vunpack.c.l.b16 %v1058
    %v1632 = vunpack.c.h.b16 %v1058
    %v1633 = vunpack.c.l.b16 %v1059
    %v1634 = vunpack.c.h.b16 %v1059
    %v1635 = vunpack.c.l.b16 %v1060
    %v1636 = vunpack.c.h.b16 %v1060
    %v1637 = vunpack.c.l.b16 %v1061
    %v1638 = vunpack.c.h.b16 %v1061
    %v1639 = vunpack.c.l.b16 %v1062
    %v1640 = vunpack.c.h.b16 %v1062
    %v1641 = vunpack.c.l.b16 %v1063
    %v1642 = vunpack.c.h.b16 %v1063
    %v1643 = vunpack.c.l.b16 %v1064
    %v1644 = vunpack.c.h.b16 %v1064
    %v1645 = vunpack.c.l.b16 %v1065
    %v1646 = vunpack.c.h.b16 %v1065
    %v1647 = vunpack.c.l.b16 %v1066
    %v1648 = vunpack.c.h.b16 %v1066
    %v1649 = vunpack.c.l.b16 %v1067
    %v1650 = vunpack.c.h.b16 %v1067
    %v1651 = vunpack.c.l.b16 %v1068
    %v1652 = vunpack.c.h.b16 %v1068
    %v1653 = vunpack.c.l.b16 %v1069
    %v1654 = vunpack.c.h.b16 %v1069
    %v1655 = vunpack.c.l.b16 %v1070
    %v1656 = vunpack.c.h.b16 %v1070
    %v1657 = vpack.c.b16 %v1609, %v1593
    %v1658 = vpack.c.b16 %v1610, %v1594
    %v1659 = vpack.c.b16 %v1611, %v1595
    %v1660 = vpack.c.b16 %v1612, %v1596
    %v1661 = vpack.c.b16 %v1613, %v1597
    %v1662 = vpack.c.b16 %v1614, %v1598
    %v1663 = vpack.c.b16 %v1615, %v1599
    %v1664 = vpack.c.b16 %v1616, %v1600
    %v1665 = vpack.c.b16 %v1617, %v1601
    %v1666 = vpack.c.b16 %v1618, %v1602
    %v1667 = vpack.c.b16 %v1619, %v1603
    %v1668 = vpack.c.b16 %v1620, %v1604
    %v1669 = vpack.c.b16 %v1621, %v1605
    %v1670 = vpack.c.b16 %v1622, %v1606
    %v1671 = vpack.c.b16 %v1623, %v1607
    %v1672 = vpack.c.b16 %v1624, %v1608
    %v1673 = vpack.c.b16 %v1641, %v1625
    %v1674 = vpack.c.b16 %v1642, %v1626
    %v1675 = vpack.c.b16 %v1643, %v1627
    %v1676 = vpack.c.b16 %v1644, %v1628
    %v1677 = vpack.c.b16 %v1645, %v1629
    %v1678 = vpack.c.b16 %v1646, %v1630
    %v1679 = vpack.c.b16 %v1647, %v1631
    %v1680 = vpack.c.b16 %v1648, %v1632
    %v1681 = vpack.c.b16 %v1649, %v1633
    %v1682 = vpack.c.b16 %v1650, %v1634
    %v1683 = vpack.c.b16 %v1651, %v1635
    %v1684 = vpack.c.b16 %v1652, %v1636
    %v1685 = vpack.c.b16 %v1653, %v1637
    %v1686 = vpack.c.b16 %v1654, %v1638
    %v1687 = vpack.c.b16 %v1655, %v1639
    %v1688 = vpack.c.b16 %v1656, %v1640
    %1721 = vmatpush.bf16.xpose.msra.mxu0 0
    %1722 = vmatpush.bf16.xpose.msra.mxu0 0
    %1723 = vmatpush.bf16.xpose.msra.mxu0 0
    %1724 = vmatpush.bf16.xpose.msra.mxu0 0
    %1725 = vmatpush.bf16.xpose.msra.mxu0 0
    %1726 = vmatpush.bf16.xpose.msra.mxu0 0
    %1727 = vmatpush.bf16.xpose.msra.mxu0 %v1673
    %1728 = vmatpush.bf16.xpose.msra.mxu0 %v1657
    %1729 = vmatmul.bf16.gmra.mxu0 %v1544
    %v1730 = vpop.f32.mrf.mxu0
    %v1731 = vadd.f32 %v1560, %v1730
    %v1732 = vpop.f32.mrf.mxu0
    %1733 = vdwg.mxu0
    %1734 = vmatpush.bf16.xpose.msra.mxu0 0
    %1735 = vmatpush.bf16.xpose.msra.mxu0 0
    %1736 = vmatpush.bf16.xpose.msra.mxu0 0
    %1737 = vmatpush.bf16.xpose.msra.mxu0 0
    %1738 = vmatpush.bf16.xpose.msra.mxu0 0
    %1739 = vmatpush.bf16.xpose.msra.mxu0 0
    %1740 = vmatpush.bf16.xpose.msra.mxu0 %v1674
    %1741 = vmatpush.bf16.xpose.msra.mxu0 %v1658
    %1742 = vmatmul.bf16.gmra.mxu0 %v1545
    %v1743 = vpop.f32.mrf.mxu0
    %v1744 = vadd.f32 %v1731, %v1743
    %v1745 = vpop.f32.mrf.mxu0
    %1746 = vdwg.mxu0
    %1747 = vmatpush.bf16.xpose.msra.mxu0 0
    %1748 = vmatpush.bf16.xpose.msra.mxu0 0
    %1749 = vmatpush.bf16.xpose.msra.mxu0 0
    %1750 = vmatpush.bf16.xpose.msra.mxu0 0
    %1751 = vmatpush.bf16.xpose.msra.mxu0 0
    %1752 = vmatpush.bf16.xpose.msra.mxu0 0
    %1753 = vmatpush.bf16.xpose.msra.mxu0 %v1675
    %1754 = vmatpush.bf16.xpose.msra.mxu0 %v1659
    %1755 = vmatmul.bf16.gmra.mxu0 %v1546
    %v1756 = vpop.f32.mrf.mxu0
    %v1757 = vadd.f32 %v1744, %v1756
    %v1758 = vpop.f32.mrf.mxu0
    %1759 = vdwg.mxu0
    %1760 = vmatpush.bf16.xpose.msra.mxu0 0
    %1761 = vmatpush.bf16.xpose.msra.mxu0 0
    %1762 = vmatpush.bf16.xpose.msra.mxu0 0
    %1763 = vmatpush.bf16.xpose.msra.mxu0 0
    %1764 = vmatpush.bf16.xpose.msra.mxu0 0
    %1765 = vmatpush.bf16.xpose.msra.mxu0 0
    %1766 = vmatpush.bf16.xpose.msra.mxu0 %v1676
    %1767 = vmatpush.bf16.xpose.msra.mxu0 %v1660
    %1768 = vmatmul.bf16.gmra.mxu0 %v1547
    %v1769 = vpop.f32.mrf.mxu0
    %v1770 = vadd.f32 %v1757, %v1769
    %v1771 = vpop.f32.mrf.mxu0
    %1772 = vdwg.mxu0
    %1773 = vmatpush.bf16.xpose.msra.mxu0 0
    %1774 = vmatpush.bf16.xpose.msra.mxu0 0
    %1775 = vmatpush.bf16.xpose.msra.mxu0 0
    %1776 = vmatpush.bf16.xpose.msra.mxu0 0
    %1777 = vmatpush.bf16.xpose.msra.mxu0 0
    %1778 = vmatpush.bf16.xpose.msra.mxu0 0
    %1779 = vmatpush.bf16.xpose.msra.mxu0 %v1677
    %1780 = vmatpush.bf16.xpose.msra.mxu0 %v1661
    %1781 = vmatmul.bf16.gmra.mxu0 %v1548
    %v1782 = vpop.f32.mrf.mxu0
    %v1783 = vadd.f32 %v1770, %v1782
    %v1784 = vpop.f32.mrf.mxu0
    %1785 = vdwg.mxu0
    %1786 = vmatpush.bf16.xpose.msra.mxu0 0
    %1787 = vmatpush.bf16.xpose.msra.mxu0 0
    %1788 = vmatpush.bf16.xpose.msra.mxu0 0
    %1789 = vmatpush.bf16.xpose.msra.mxu0 0
    %1790 = vmatpush.bf16.xpose.msra.mxu0 0
    %1791 = vmatpush.bf16.xpose.msra.mxu0 0
    %1792 = vmatpush.bf16.xpose.msra.mxu0 %v1678
    %1793 = vmatpush.bf16.xpose.msra.mxu0 %v1662
    %1794 = vmatmul.bf16.gmra.mxu0 %v1549
    %v1795 = vpop.f32.mrf.mxu0
    %v1796 = vadd.f32 %v1783, %v1795
    %v1797 = vpop.f32.mrf.mxu0
    %1798 = vdwg.mxu0
    %1799 = vmatpush.bf16.xpose.msra.mxu0 0
    %1800 = vmatpush.bf16.xpose.msra.mxu0 0
    %1801 = vmatpush.bf16.xpose.msra.mxu0 0
    %1802 = vmatpush.bf16.xpose.msra.mxu0 0
    %1803 = vmatpush.bf16.xpose.msra.mxu0 0
    %1804 = vmatpush.bf16.xpose.msra.mxu0 0
    %1805 = vmatpush.bf16.xpose.msra.mxu0 %v1679
    %1806 = vmatpush.bf16.xpose.msra.mxu0 %v1663
    %1807 = vmatmul.bf16.gmra.mxu0 %v1550
    %v1808 = vpop.f32.mrf.mxu0
    %v1809 = vadd.f32 %v1796, %v1808
    %v1810 = vpop.f32.mrf.mxu0
    %1811 = vdwg.mxu0
    %1812 = vmatpush.bf16.xpose.msra.mxu0 0
    %1813 = vmatpush.bf16.xpose.msra.mxu0 0
    %1814 = vmatpush.bf16.xpose.msra.mxu0 0
    %1815 = vmatpush.bf16.xpose.msra.mxu0 0
    %1816 = vmatpush.bf16.xpose.msra.mxu0 0
    %1817 = vmatpush.bf16.xpose.msra.mxu0 0
    %1818 = vmatpush.bf16.xpose.msra.mxu0 %v1680
    %1819 = vmatpush.bf16.xpose.msra.mxu0 %v1664
    %1820 = vmatmul.bf16.gmra.mxu0 %v1551
    %v1821 = vpop.f32.mrf.mxu0
    %v1822 = vadd.f32 %v1809, %v1821
    %v1823 = vpop.f32.mrf.mxu0
    %1824 = vdwg.mxu0
    %1825 = vmatpush.bf16.xpose.msra.mxu0 0
    %1826 = vmatpush.bf16.xpose.msra.mxu0 0
    %1827 = vmatpush.bf16.xpose.msra.mxu0 0
    %1828 = vmatpush.bf16.xpose.msra.mxu0 0
    %1829 = vmatpush.bf16.xpose.msra.mxu0 0
    %1830 = vmatpush.bf16.xpose.msra.mxu0 0
    %1831 = vmatpush.bf16.xpose.msra.mxu0 %v1681
    %1832 = vmatpush.bf16.xpose.msra.mxu0 %v1665
    %1833 = vmatmul.bf16.gmra.mxu0 %v1552
    %v1834 = vpop.f32.mrf.mxu0
    %v1835 = vadd.f32 %v1822, %v1834
    %v1836 = vpop.f32.mrf.mxu0
    %1837 = vdwg.mxu0
    %1838 = vmatpush.bf16.xpose.msra.mxu0 0
    %1839 = vmatpush.bf16.xpose.msra.mxu0 0
    %1840 = vmatpush.bf16.xpose.msra.mxu0 0
    %1841 = vmatpush.bf16.xpose.msra.mxu0 0
    %1842 = vmatpush.bf16.xpose.msra.mxu0 0
    %1843 = vmatpush.bf16.xpose.msra.mxu0 0
    %1844 = vmatpush.bf16.xpose.msra.mxu0 %v1682
    %1845 = vmatpush.bf16.xpose.msra.mxu0 %v1666
    %1846 = vmatmul.bf16.gmra.mxu0 %v1553
    %v1847 = vpop.f32.mrf.mxu0
    %v1848 = vadd.f32 %v1835, %v1847
    %v1849 = vpop.f32.mrf.mxu0
    %1850 = vdwg.mxu0
    %1851 = vmatpush.bf16.xpose.msra.mxu0 0
    %1852 = vmatpush.bf16.xpose.msra.mxu0 0
    %1853 = vmatpush.bf16.xpose.msra.mxu0 0
    %1854 = vmatpush.bf16.xpose.msra.mxu0 0
    %1855 = vmatpush.bf16.xpose.msra.mxu0 0
    %1856 = vmatpush.bf16.xpose.msra.mxu0 0
    %1857 = vmatpush.bf16.xpose.msra.mxu0 %v1683
    %1858 = vmatpush.bf16.xpose.msra.mxu0 %v1667
    %1859 = vmatmul.bf16.gmra.mxu0 %v1554
    %v1860 = vpop.f32.mrf.mxu0
    %v1861 = vadd.f32 %v1848, %v1860
    %v1862 = vpop.f32.mrf.mxu0
    %1863 = vdwg.mxu0
    %1864 = vmatpush.bf16.xpose.msra.mxu0 0
    %1865 = vmatpush.bf16.xpose.msra.mxu0 0
    %1866 = vmatpush.bf16.xpose.msra.mxu0 0
    %1867 = vmatpush.bf16.xpose.msra.mxu0 0
    %1868 = vmatpush.bf16.xpose.msra.mxu0 0
    %1869 = vmatpush.bf16.xpose.msra.mxu0 0
    %1870 = vmatpush.bf16.xpose.msra.mxu0 %v1684
    %1871 = vmatpush.bf16.xpose.msra.mxu0 %v1668
    %1872 = vmatmul.bf16.gmra.mxu0 %v1555
    %v1873 = vpop.f32.mrf.mxu0
    %v1874 = vadd.f32 %v1861, %v1873
    %v1875 = vpop.f32.mrf.mxu0
    %1876 = vdwg.mxu0
    %1877 = vmatpush.bf16.xpose.msra.mxu0 0
    %1878 = vmatpush.bf16.xpose.msra.mxu0 0
    %1879 = vmatpush.bf16.xpose.msra.mxu0 0
    %1880 = vmatpush.bf16.xpose.msra.mxu0 0
    %1881 = vmatpush.bf16.xpose.msra.mxu0 0
    %1882 = vmatpush.bf16.xpose.msra.mxu0 0
    %1883 = vmatpush.bf16.xpose.msra.mxu0 %v1685
    %1884 = vmatpush.bf16.xpose.msra.mxu0 %v1669
    %1885 = vmatmul.bf16.gmra.mxu0 %v1556
    %v1886 = vpop.f32.mrf.mxu0
    %v1887 = vadd.f32 %v1874, %v1886
    %v1888 = vpop.f32.mrf.mxu0
    %1889 = vdwg.mxu0
    %1890 = vmatpush.bf16.xpose.msra.mxu0 0
    %1891 = vmatpush.bf16.xpose.msra.mxu0 0
    %1892 = vmatpush.bf16.xpose.msra.mxu0 0
    %1893 = vmatpush.bf16.xpose.msra.mxu0 0
    %1894 = vmatpush.bf16.xpose.msra.mxu0 0
    %1895 = vmatpush.bf16.xpose.msra.mxu0 0
    %1896 = vmatpush.bf16.xpose.msra.mxu0 %v1686
    %1897 = vmatpush.bf16.xpose.msra.mxu0 %v1670
    %1898 = vmatmul.bf16.gmra.mxu0 %v1557
    %v1899 = vpop.f32.mrf.mxu0
    %v1900 = vadd.f32 %v1887, %v1899
    %v1901 = vpop.f32.mrf.mxu0
    %1902 = vdwg.mxu0
    %1903 = vmatpush.bf16.xpose.msra.mxu0 0
    %1904 = vmatpush.bf16.xpose.msra.mxu0 0
    %1905 = vmatpush.bf16.xpose.msra.mxu0 0
    %1906 = vmatpush.bf16.xpose.msra.mxu0 0
    %1907 = vmatpush.bf16.xpose.msra.mxu0 0
    %1908 = vmatpush.bf16.xpose.msra.mxu0 0
    %1909 = vmatpush.bf16.xpose.msra.mxu0 %v1687
    %1910 = vmatpush.bf16.xpose.msra.mxu0 %v1671
    %1911 = vmatmul.bf16.gmra.mxu0 %v1558
    %v1912 = vpop.f32.mrf.mxu0
    %v1913 = vadd.f32 %v1900, %v1912
    %v1914 = vpop.f32.mrf.mxu0
    %1915 = vdwg.mxu0
    %1916 = vmatpush.bf16.xpose.msra.mxu0 0
    %1917 = vmatpush.bf16.xpose.msra.mxu0 0
    %1918 = vmatpush.bf16.xpose.msra.mxu0 0
    %1919 = vmatpush.bf16.xpose.msra.mxu0 0
    %1920 = vmatpush.bf16.xpose.msra.mxu0 0
    %1921 = vmatpush.bf16.xpose.msra.mxu0 0
    %1922 = vmatpush.bf16.xpose.msra.mxu0 %v1688
    %1923 = vmatpush.bf16.xpose.msra.mxu0 %v1672
    %1924 = vmatmul.bf16.gmra.mxu0 %v1559
    %v1925 = vpop.f32.mrf.mxu0
    %v1926 = vadd.f32 %v1913, %v1925
    %v1927 = vpop.f32.mrf.mxu0
    %1928 = vdwg.mxu0
    %v1929 = vadd.f32 %v1121, %v1926
    %v1930 = vsel %vm111, %v1929, 0.0
    %1931 = vadd.xlane.f32.xlu0 %v1930
    %v1932 = vpop.xlane.xlu0 %1931
    %v1933 = vmul.f32 %v1932, %v139
    %v1934 = vmul.f32 %v1929, %v1929
    %v1935 = vsel %vm111, %v1934, 0.0
    %1936 = vadd.xlane.f32.xlu0 %v1935
    %v1937 = vpop.xlane.xlu0 %1936
    %v1938 = vmul.f32 %v1937, %v139
    %v1939 = vmul.f32 %v1933, %v1933
    %v1940 = vsub.f32 %v1938, %v1939
    %v1941 = vsub.f32 %v1929, %v1933
    %v1942 = vadd.f32 %v1940, 1e-05
    %v1943 = vrsqrt.pop %v1942
    %v1944 = vmul.f32 %v1943, %v1942
    %v1945 = vmul.f32 %v1944, %v1943
    %v1946 = vmul.f32 0.5, %v1945
    %v1947 = vsub.f32 1.5, %v1946
    %v1948 = vmul.f32 %v1943, %v1947
    %vm1949 = vweird.f32 %v1942
    %vm1950 = vweird.f32 %v1943
    %vm1951 = vmor %vm1949, %vm1950
    %v1952 = vsel %vm1951, %v1943, %v1948
    %v1953 = vmul.f32 %v1941, %v1952
    %v1954 = vperm.slane %v36, 2
    %v1955 = vmul.f32 %v1953, %v1954
    %v1956 = vperm.slane %v36, 3
    %v1957 = vadd.f32 %v1955, %v1956
    %v1958 = vperm.slane %v36, 4
    %v1959 = vmul.f32 %v1957, %v1958
    %v1960 = vsel %vm111, %v1959, 0.0
    %1961 = vadd.xlane.f32.xlu0 %v1960
    %v1962 = vpop.xlane.xlu0 %1961
    %v1963 = vperm.slane %v36, 5
    %v1964 = vadd.f32 %v1962, %v1963
    %vm1965 = vcmask 7168
    %1966 = vst.msk [vmem:[%s4] sm:$0xff] %vm1965, %v1964
    // Predicated region
    $region22: #{tpu_custom_call.1} parent=1 // pred_check
      _
    $region23: #{tpu_custom_call.1} parent=1 // pred_check_branch
      %1968 = sbr.rel (0) target = $region25
    $region24: #{tpu_custom_call.1} parent=1 // pred_region
      _
    $region25: #{tpu_custom_call.1} parent=1 // pred_fallthru
      _
    // Predicated region
    $region26: #{tpu_custom_call.1} parent=1 // pred_check
      _
    $region27: #{tpu_custom_call.1} parent=1 // pred_check_branch
      %1970 = sbr.rel (0) target = $region29
    $region28: #{tpu_custom_call.1} parent=1 // pred_region
      _
    $region29: #{tpu_custom_call.1} parent=1 // pred_fallthru
      _
    %1971 = vsyncpa [#allocation3], 1

// kernel: tpu_custom_call.1
$region0: #{tpu_custom_call.1}
  #allocation0 [shape = 'u32[]', space=smem, size = 0x4, offset = 0x4, fixed_abs, tag = 'smem constant byte address 0x4 - core index']
  #allocation1 [shape = 'u32[72,128]{1,0:T(1,128)}', space=vmem, size = 0x9000, scoped, tag = 'internal scratch']
  %s0 = inlined_call_operand.vmem [shape: f32[8,32], index: 0, kind: input, shape index: {}]
  %s1 = inlined_call_operand.vmem [shape: f32[80,32], index: 1, kind: input, shape index: {}]
  %s2 = inlined_call_operand.vmem [shape: f32[2,2048], index: 2, kind: input, shape index: {}]
  %s3 = inlined_call_operand.hbm [shape: bf16[128,2048], index: 3, kind: input, shape index: {}]
  %s4 = inlined_call_operand.vmem [shape: f32[8,1], index: 4, kind: output, shape index: {}]
  %s5 = sld [smem:[#allocation0]]
  $region30: #{tpu_custom_call.1} parent=0
    _
  %s7 = ssub.s32 1, %s5
  %s8 = scalar_select 0, %s7, %s5
  $region1: #{tpu_custom_call.1} parent=0
    #allocation2 [shape = 'u8[524288]{0}', space=vmem, size = 0x80000, scoped, tag = 'input window, operand 3, single buffered']
    #allocation3 [shape = 's32[1]{0}', space=sflag, size = 0x4, scoped, tag = 'scoped memory for tpu_custom_call.1']
    %9 = vsyncpa [#allocation3], 0
    // Predicated region
    $region2: #{tpu_custom_call.1} parent=1 // pred_check
      _
    $region3: #{tpu_custom_call.1} parent=1 // pred_check_branch
      %11 = sbr.rel (0) target = $region5
    $region4: #{tpu_custom_call.1} parent=1 // pred_region
      _
    $region5: #{tpu_custom_call.1} parent=1 // pred_fallthru
      _
    // Predicated region
    $region6: #{tpu_custom_call.1} parent=1 // pred_check
      _
    $region7: #{tpu_custom_call.1} parent=1 // pred_check_branch
      %13 = sbr.rel (0) target = $region9
    $region8: #{tpu_custom_call.1} parent=1 // pred_region
      _
    $region9: #{tpu_custom_call.1} parent=1 // pred_fallthru
      _
    // Predicated region
    $region10: #{tpu_custom_call.1} parent=1 // pred_check
      _
    $region11: #{tpu_custom_call.1} parent=1 // pred_check_branch
      %15 = sbr.rel (0) target = $region13
    $region12: #{tpu_custom_call.1} parent=1 // pred_region
      _
    $region13: #{tpu_custom_call.1} parent=1 // pred_fallthru
      _
    // Predicated region
    $region14: #{tpu_custom_call.1} parent=1 // pred_check
      _
    $region15: #{tpu_custom_call.1} parent=1 // pred_check_branch
      %17 = sbr.rel (0) target = $region17
    $region16: #{tpu_custom_call.1} parent=1 // pred_region
      %19 = vsyncadd [#allocation3], 0
      %s20 = sshll.u32 %s3, 4
      %s21 = int_to_ptr.hbm [resolvable:$true] %s20
      %s22 = sshll.u32 [#allocation2], 4
      %s23 = int_to_ptr.vmem [resolvable:$true] %s22
      %28 = dma.hbm_to_vmem [thread:$0]  %s21, 16384, %s23, [#allocation3], 1024, 1024, 64
    $region17: #{tpu_custom_call.1} parent=1 // pred_fallthru
      _
    // Predicated region
    $region18: #{tpu_custom_call.1} parent=1 // pred_check
      _
    $region19: #{tpu_custom_call.1} parent=1 // pred_check_branch
      %30 = sbr.rel (0) target = $region21
    $region20: #{tpu_custom_call.1} parent=1 // pred_region
      %32 = dma.done [#allocation3], 16384
    $region21: #{tpu_custom_call.1} parent=1 // pred_fallthru
      _
    %v34 = vld [vmem:[%s0] sm:$0xff]
    %v35 = vld [vmem:[%s1] sm:$0xff]
    %v36 = vld [vmem:[%s1 + $0x8] sm:$0xff]
    %v37 = vld [vmem:[%s1 + $0x10] sm:$0xff]
    %v38 = vld [vmem:[%s1 + $0x18] sm:$0xff]
    %v39 = vld [vmem:[%s1 + $0x20] sm:$0xff]
    %v40 = vld [vmem:[%s1 + $0x28] sm:$0xff]
    %v41 = vpack.c.bf16 %v38, %v37
    %v42 = vpack.c.bf16 %v40, %v39
    %v43 = vld [vmem:[#allocation2] sm:$0xff]
    %v44 = vld [vmem:[#allocation2 + $0x8] sm:$0xff]
    %v45 = vld [vmem:[#allocation2 + $0x10] sm:$0xff]
    %v46 = vld [vmem:[#allocation2 + $0x18] sm:$0xff]
    %v47 = vld [vmem:[#allocation2 + $0x20] sm:$0xff]
    %v48 = vld [vmem:[#allocation2 + $0x28] sm:$0xff]
    %v49 = vld [vmem:[#allocation2 + $0x30] sm:$0xff]
    %v50 = vld [vmem:[#allocation2 + $0x38] sm:$0xff]
    %v51 = vld [vmem:[#allocation2 + $0x40] sm:$0xff]
    %v52 = vld [vmem:[#allocation2 + $0x48] sm:$0xff]
    %v53 = vld [vmem:[#allocation2 + $0x50] sm:$0xff]
    %v54 = vld [vmem:[#allocation2 + $0x58] sm:$0xff]
    %v55 = vld [vmem:[#allocation2 + $0x60] sm:$0xff]
    %v56 = vld [vmem:[#allocation2 + $0x68] sm:$0xff]
    %v57 = vld [vmem:[#allocation2 + $0x70] sm:$0xff]
    %v58 = vld [vmem:[#allocation2 + $0x78] sm:$0xff]
    %v59 = vld [vmem:[#allocation2 + $0x80] sm:$0xff]
    %v60 = vld [vmem:[#allocation2 + $0x88] sm:$0xff]
    %v61 = vld [vmem:[#allocation2 + $0x90] sm:$0xff]
    %v62 = vld [vmem:[#allocation2 + $0x98] sm:$0xff]
    %v63 = vld [vmem:[#allocation2 + $0xa0] sm:$0xff]
    %v64 = vld [vmem:[#allocation2 + $0xa8] sm:$0xff]
    %v65 = vld [vmem:[#allocation2 + $0xb0] sm:$0xff]
    %v66 = vld [vmem:[#allocation2 + $0xb8] sm:$0xff]
    %v67 = vld [vmem:[#allocation2 + $0xc0] sm:$0xff]
    %v68 = vld [vmem:[#allocation2 + $0xc8] sm:$0xff]
    %v69 = vld [vmem:[#allocation2 + $0xd0] sm:$0xff]
    %v70 = vld [vmem:[#allocation2 + $0xd8] sm:$0xff]
    %v71 = vld [vmem:[#allocation2 + $0xe0] sm:$0xff]
    %v72 = vld [vmem:[#allocation2 + $0xe8] sm:$0xff]
    %v73 = vld [vmem:[#allocation2 + $0xf0] sm:$0xff]
    %v74 = vld [vmem:[#allocation2 + $0xf8] sm:$0xff]
    %v75 = vld [vmem:[#allocation2 + $0x100] sm:$0xff]
    %v76 = vld [vmem:[#allocation2 + $0x108] sm:$0xff]
    %v77 = vld [vmem:[#allocation2 + $0x110] sm:$0xff]
    %v78 = vld [vmem:[#allocation2 + $0x118] sm:$0xff]
    %v79 = vld [vmem:[#allocation2 + $0x120] sm:$0xff]
    %v80 = vld [vmem:[#allocation2 + $0x128] sm:$0xff]
    %v81 = vld [vmem:[#allocation2 + $0x130] sm:$0xff]
    %v82 = vld [vmem:[#allocation2 + $0x138] sm:$0xff]
    %v83 = vld [vmem:[#allocation2 + $0x140] sm:$0xff]
    %v84 = vld [vmem:[#allocation2 + $0x148] sm:$0xff]
    %v85 = vld [vmem:[#allocation2 + $0x150] sm:$0xff]
    %v86 = vld [vmem:[#allocation2 + $0x158] sm:$0xff]
    %v87 = vld [vmem:[#allocation2 + $0x160] sm:$0xff]
    %v88 = vld [vmem:[#allocation2 + $0x168] sm:$0xff]
    %v89 = vld [vmem:[#allocation2 + $0x170] sm:$0xff]
    %v90 = vld [vmem:[#allocation2 + $0x178] sm:$0xff]
    %v91 = vld [vmem:[#allocation2 + $0x180] sm:$0xff]
    %v92 = vld [vmem:[#allocation2 + $0x188] sm:$0xff]
    %v93 = vld [vmem:[#allocation2 + $0x190] sm:$0xff]
    %v94 = vld [vmem:[#allocation2 + $0x198] sm:$0xff]
    %v95 = vld [vmem:[#allocation2 + $0x1a0] sm:$0xff]
    %v96 = vld [vmem:[#allocation2 + $0x1a8] sm:$0xff]
    %v97 = vld [vmem:[#allocation2 + $0x1b0] sm:$0xff]
    %v98 = vld [vmem:[#allocation2 + $0x1b8] sm:$0xff]
    %v99 = vld [vmem:[#allocation2 + $0x1c0] sm:$0xff]
    %v100 = vld [vmem:[#allocation2 + $0x1c8] sm:$0xff]
    %v101 = vld [vmem:[#allocation2 + $0x1d0] sm:$0xff]
    %v102 = vld [vmem:[#allocation2 + $0x1d8] sm:$0xff]
    %v103 = vld [vmem:[#allocation2 + $0x1e0] sm:$0xff]
    %v104 = vld [vmem:[#allocation2 + $0x1e8] sm:$0xff]
    %v105 = vld [vmem:[#allocation2 + $0x1f0] sm:$0xff]
    %v106 = vld [vmem:[#allocation2 + $0x1f8] sm:$0xff]
    %v107 = vld [vmem:[%s2] ss:$2 sm:$0xff]
    %s108 = scalar_lea.vmem %s2, 16
    %v109 = vld [vmem:[%s108] ss:$2 sm:$0xff]
    %v110 = vpack.c.bf16 %v34, %v34
    %vm111 = vcmask 261120
    %v113 = vsel %vm111, %v110, 0
    %115 = vmatpush.bf16.msra.mxu0 0
    %116 = vmatpush.bf16.msra.mxu0 0
    %117 = vmatpush.bf16.msra.mxu0 0
    %118 = vmatpush.bf16.msra.mxu0 0
    %119 = vmatpush.bf16.msra.mxu0 0
    %120 = vmatpush.bf16.msra.mxu0 0
    %121 = vmatpush.bf16.msra.mxu0 %v42
    %122 = vmatpush.bf16.msra.mxu0 %v41
    %123 = vmatmul.bf16.gmra.mxu0 %v113
    %v124 = vpop.f32.mrf.mxu0
    %v125 = vadd.f32 %v34, %v124
    %v126 = vpop.f32.mrf.mxu0
    %127 = vdwg.mxu0
    %v128 = vperm.slane %v35, 0
    %v129 = vadd.f32 %v125, %v128
    %v130 = vsel %vm111, %v129, 0.0
    %131 = vadd.xlane.f32.xlu0 %v130
    %v132 = vpop.xlane.xlu0 %131
    %v133 = vrcp.pop 32.0
    %v134 = vmul.f32 32.0, %v133
    %v135 = vsub.f32 1.0, %v134
    %v136 = vmul.f32 %v133, %v135
    %v137 = vadd.f32 %v133, %v136
    %vm138 = vweird.f32 %v133
    %v139 = vsel %vm138, %v133, %v137
    %v140 = vmul.f32 %v132, %v139
    %v141 = vmul.f32 %v129, %v129
    %v142 = vsel %vm111, %v141, 0.0
    %143 = vadd.xlane.f32.xlu0 %v142
    %v144 = vpop.xlane.xlu0 %143
    %v145 = vmul.f32 %v144, %v139
    %v146 = vmul.f32 %v140, %v140
    %v147 = vsub.f32 %v145, %v146
    %v148 = vsub.f32 %v129, %v140
    %v149 = vadd.f32 %v147, 1e-05
    %v150 = vrsqrt.pop %v149
    %v151 = vmul.f32 %v150, %v149
    %v152 = vmul.f32 %v151, %v150
    %v153 = vmul.f32 0.5, %v152
    %v154 = vsub.f32 1.5, %v153
    %v155 = vmul.f32 %v150, %v154
    %vm156 = vweird.f32 %v149
    %vm157 = vweird.f32 %v150
    %vm158 = vmor %vm156, %vm157
    %v159 = vsel %vm158, %v150, %v155
    %v160 = vmul.f32 %v148, %v159
    %v161 = vperm.slane %v35, 1
    %v162 = vmul.f32 %v160, %v161
    %v163 = vperm.slane %v35, 2
    %v164 = vadd.f32 %v162, %v163
    %v165 = vpack.c.bf16 %v164, %v164
    %v168 = vperm.slane %v107, 0
    %v169 = vperm.slane %v107, 1
    %v170 = vperm.slane %v107, 2
    %v171 = vperm.slane %v107, 3
    %v172 = vperm.slane %v107, 4
    %v173 = vperm.slane %v107, 5
    %v174 = vperm.slane %v107, 6
    %v175 = vperm.slane %v107, 7
    %v176 = vperm.slane %v109, 0
    %v177 = vperm.slane %v109, 1
    %v178 = vperm.slane %v109, 2
    %v179 = vperm.slane %v109, 3
    %v180 = vperm.slane %v109, 4
    %v181 = vperm.slane %v109, 5
    %v182 = vperm.slane %v109, 6
    %v183 = vperm.slane %v109, 7
    %v232 = vunpack.c.l.b16 %v43
    %v233 = vunpack.c.h.b16 %v43
    %v234 = vunpack.c.l.b16 %v44
    %v235 = vunpack.c.h.b16 %v44
    %v236 = vunpack.c.l.b16 %v45
    %v237 = vunpack.c.h.b16 %v45
    %v238 = vunpack.c.l.b16 %v46
    %v239 = vunpack.c.h.b16 %v46
    %v240 = vunpack.c.l.b16 %v47
    %v241 = vunpack.c.h.b16 %v47
    %v242 = vunpack.c.l.b16 %v48
    %v243 = vunpack.c.h.b16 %v48
    %v244 = vunpack.c.l.b16 %v49
    %v245 = vunpack.c.h.b16 %v49
    %v246 = vunpack.c.l.b16 %v50
    %v247 = vunpack.c.h.b16 %v50
    %v248 = vunpack.c.l.b16 %v51
    %v249 = vunpack.c.h.b16 %v51
    %v250 = vunpack.c.l.b16 %v52
    %v251 = vunpack.c.h.b16 %v52
    %v252 = vunpack.c.l.b16 %v53
    %v253 = vunpack.c.h.b16 %v53
    %v254 = vunpack.c.l.b16 %v54
    %v255 = vunpack.c.h.b16 %v54
    %v256 = vunpack.c.l.b16 %v55
    %v257 = vunpack.c.h.b16 %v55
    %v258 = vunpack.c.l.b16 %v56
    %v259 = vunpack.c.h.b16 %v56
    %v260 = vunpack.c.l.b16 %v57
    %v261 = vunpack.c.h.b16 %v57
    %v262 = vunpack.c.l.b16 %v58
    %v263 = vunpack.c.h.b16 %v58
    %v264 = vunpack.c.l.b16 %v59
    %v265 = vunpack.c.h.b16 %v59
    %v266 = vunpack.c.l.b16 %v60
    %v267 = vunpack.c.h.b16 %v60
    %v268 = vunpack.c.l.b16 %v61
    %v269 = vunpack.c.h.b16 %v61
    %v270 = vunpack.c.l.b16 %v62
    %v271 = vunpack.c.h.b16 %v62
    %v272 = vunpack.c.l.b16 %v63
    %v273 = vunpack.c.h.b16 %v63
    %v274 = vunpack.c.l.b16 %v64
    %v275 = vunpack.c.h.b16 %v64
    %v276 = vunpack.c.l.b16 %v65
    %v277 = vunpack.c.h.b16 %v65
    %v278 = vunpack.c.l.b16 %v66
    %v279 = vunpack.c.h.b16 %v66
    %v280 = vunpack.c.l.b16 %v67
    %v281 = vunpack.c.h.b16 %v67
    %v282 = vunpack.c.l.b16 %v68
    %v283 = vunpack.c.h.b16 %v68
    %v284 = vunpack.c.l.b16 %v69
    %v285 = vunpack.c.h.b16 %v69
    %v286 = vunpack.c.l.b16 %v70
    %v287 = vunpack.c.h.b16 %v70
    %v288 = vunpack.c.l.b16 %v71
    %v289 = vunpack.c.h.b16 %v71
    %v290 = vunpack.c.l.b16 %v72
    %v291 = vunpack.c.h.b16 %v72
    %v292 = vunpack.c.l.b16 %v73
    %v293 = vunpack.c.h.b16 %v73
    %v294 = vunpack.c.l.b16 %v74
    %v295 = vunpack.c.h.b16 %v74
    %v296 = vpack.c.b16 %v248, %v232
    %v297 = vpack.c.b16 %v249, %v233
    %v298 = vpack.c.b16 %v250, %v234
    %v299 = vpack.c.b16 %v251, %v235
    %v300 = vpack.c.b16 %v252, %v236
    %v301 = vpack.c.b16 %v253, %v237
    %v302 = vpack.c.b16 %v254, %v238
    %v303 = vpack.c.b16 %v255, %v239
    %v304 = vpack.c.b16 %v256, %v240
    %v305 = vpack.c.b16 %v257, %v241
    %v306 = vpack.c.b16 %v258, %v242
    %v307 = vpack.c.b16 %v259, %v243
    %v308 = vpack.c.b16 %v260, %v244
    %v309 = vpack.c.b16 %v261, %v245
    %v310 = vpack.c.b16 %v262, %v246
    %v311 = vpack.c.b16 %v263, %v247
    %v312 = vpack.c.b16 %v280, %v264
    %v313 = vpack.c.b16 %v281, %v265
    %v314 = vpack.c.b16 %v282, %v266
    %v315 = vpack.c.b16 %v283, %v267
    %v316 = vpack.c.b16 %v284, %v268
    %v317 = vpack.c.b16 %v285, %v269
    %v318 = vpack.c.b16 %v286, %v270
    %v319 = vpack.c.b16 %v287, %v271
    %v320 = vpack.c.b16 %v288, %v272
    %v321 = vpack.c.b16 %v289, %v273
    %v322 = vpack.c.b16 %v290, %v274
    %v323 = vpack.c.b16 %v291, %v275
    %v324 = vpack.c.b16 %v292, %v276
    %v325 = vpack.c.b16 %v293, %v277
    %v326 = vpack.c.b16 %v294, %v278
    %v327 = vpack.c.b16 %v295, %v279
    %v361 = vsel %vm111, %v165, 0
    %363 = vmatpush.bf16.msra.mxu0 0
    %364 = vmatpush.bf16.msra.mxu0 0
    %365 = vmatpush.bf16.msra.mxu0 0
    %366 = vmatpush.bf16.msra.mxu0 0
    %367 = vmatpush.bf16.msra.mxu0 0
    %368 = vmatpush.bf16.msra.mxu0 0
    %369 = vmatpush.bf16.msra.mxu0 %v312
    %370 = vmatpush.bf16.msra.mxu0 %v296
    %371 = vmatmul.bf16.gmra.mxu0 %v361
    %v372 = vpop.f32.mrf.mxu0
    %v373 = vadd.f32 %v168, %v372
    %v374 = vpop.f32.mrf.mxu0
    %375 = vdwg.mxu0
    %376 = vmatpush.bf16.msra.mxu0 0
    %377 = vmatpush.bf16.msra.mxu0 0
    %378 = vmatpush.bf16.msra.mxu0 0
    %379 = vmatpush.bf16.msra.mxu0 0
    %380 = vmatpush.bf16.msra.mxu0 0
    %381 = vmatpush.bf16.msra.mxu0 0
    %382 = vmatpush.bf16.msra.mxu0 %v313
    %383 = vmatpush.bf16.msra.mxu0 %v297
    %384 = vmatmul.bf16.gmra.mxu0 %v361
    %v385 = vpop.f32.mrf.mxu0
    %v386 = vadd.f32 %v169, %v385
    %v387 = vpop.f32.mrf.mxu0
    %388 = vdwg.mxu0
    %389 = vmatpush.bf16.msra.mxu0 0
    %390 = vmatpush.bf16.msra.mxu0 0
    %391 = vmatpush.bf16.msra.mxu0 0
    %392 = vmatpush.bf16.msra.mxu0 0
    %393 = vmatpush.bf16.msra.mxu0 0
    %394 = vmatpush.bf16.msra.mxu0 0
    %395 = vmatpush.bf16.msra.mxu0 %v314
    %396 = vmatpush.bf16.msra.mxu0 %v298
    %397 = vmatmul.bf16.gmra.mxu0 %v361
    %v398 = vpop.f32.mrf.mxu0
    %v399 = vadd.f32 %v170, %v398
    %v400 = vpop.f32.mrf.mxu0
    %401 = vdwg.mxu0
    %402 = vmatpush.bf16.msra.mxu0 0
    %403 = vmatpush.bf16.msra.mxu0 0
    %404 = vmatpush.bf16.msra.mxu0 0
    %405 = vmatpush.bf16.msra.mxu0 0
    %406 = vmatpush.bf16.msra.mxu0 0
    %407 = vmatpush.bf16.msra.mxu0 0
    %408 = vmatpush.bf16.msra.mxu0 %v315
    %409 = vmatpush.bf16.msra.mxu0 %v299
    %410 = vmatmul.bf16.gmra.mxu0 %v361
    %v411 = vpop.f32.mrf.mxu0
    %v412 = vadd.f32 %v171, %v411
    %v413 = vpop.f32.mrf.mxu0
    %414 = vdwg.mxu0
    %415 = vmatpush.bf16.msra.mxu0 0
    %416 = vmatpush.bf16.msra.mxu0 0
    %417 = vmatpush.bf16.msra.mxu0 0
    %418 = vmatpush.bf16.msra.mxu0 0
    %419 = vmatpush.bf16.msra.mxu0 0
    %420 = vmatpush.bf16.msra.mxu0 0
    %421 = vmatpush.bf16.msra.mxu0 %v316
    %422 = vmatpush.bf16.msra.mxu0 %v300
    %423 = vmatmul.bf16.gmra.mxu0 %v361
    %v424 = vpop.f32.mrf.mxu0
    %v425 = vadd.f32 %v172, %v424
    %v426 = vpop.f32.mrf.mxu0
    %427 = vdwg.mxu0
    %428 = vmatpush.bf16.msra.mxu0 0
    %429 = vmatpush.bf16.msra.mxu0 0
    %430 = vmatpush.bf16.msra.mxu0 0
    %431 = vmatpush.bf16.msra.mxu0 0
    %432 = vmatpush.bf16.msra.mxu0 0
    %433 = vmatpush.bf16.msra.mxu0 0
    %434 = vmatpush.bf16.msra.mxu0 %v317
    %435 = vmatpush.bf16.msra.mxu0 %v301
    %436 = vmatmul.bf16.gmra.mxu0 %v361
    %v437 = vpop.f32.mrf.mxu0
    %v438 = vadd.f32 %v173, %v437
    %v439 = vpop.f32.mrf.mxu0
    %440 = vdwg.mxu0
    %441 = vmatpush.bf16.msra.mxu0 0
    %442 = vmatpush.bf16.msra.mxu0 0
    %443 = vmatpush.bf16.msra.mxu0 0
    %444 = vmatpush.bf16.msra.mxu0 0
    %445 = vmatpush.bf16.msra.mxu0 0
    %446 = vmatpush.bf16.msra.mxu0 0
    %447 = vmatpush.bf16.msra.mxu0 %v318
    %448 = vmatpush.bf16.msra.mxu0 %v302
    %449 = vmatmul.bf16.gmra.mxu0 %v361
    %v450 = vpop.f32.mrf.mxu0
    %v451 = vadd.f32 %v174, %v450
    %v452 = vpop.f32.mrf.mxu0
    %453 = vdwg.mxu0
    %454 = vmatpush.bf16.msra.mxu0 0
    %455 = vmatpush.bf16.msra.mxu0 0
    %456 = vmatpush.bf16.msra.mxu0 0
    %457 = vmatpush.bf16.msra.mxu0 0
    %458 = vmatpush.bf16.msra.mxu0 0
    %459 = vmatpush.bf16.msra.mxu0 0
    %460 = vmatpush.bf16.msra.mxu0 %v319
    %461 = vmatpush.bf16.msra.mxu0 %v303
    %462 = vmatmul.bf16.gmra.mxu0 %v361
    %v463 = vpop.f32.mrf.mxu0
    %v464 = vadd.f32 %v175, %v463
    %v465 = vpop.f32.mrf.mxu0
    %466 = vdwg.mxu0
    %467 = vmatpush.bf16.msra.mxu0 0
    %468 = vmatpush.bf16.msra.mxu0 0
    %469 = vmatpush.bf16.msra.mxu0 0
    %470 = vmatpush.bf16.msra.mxu0 0
    %471 = vmatpush.bf16.msra.mxu0 0
    %472 = vmatpush.bf16.msra.mxu0 0
    %473 = vmatpush.bf16.msra.mxu0 %v320
    %474 = vmatpush.bf16.msra.mxu0 %v304
    %475 = vmatmul.bf16.gmra.mxu0 %v361
    %v476 = vpop.f32.mrf.mxu0
    %v477 = vadd.f32 %v176, %v476
    %v478 = vpop.f32.mrf.mxu0
    %479 = vdwg.mxu0
    %480 = vmatpush.bf16.msra.mxu0 0
    %481 = vmatpush.bf16.msra.mxu0 0
    %482 = vmatpush.bf16.msra.mxu0 0
    %483 = vmatpush.bf16.msra.mxu0 0
    %484 = vmatpush.bf16.msra.mxu0 0
    %485 = vmatpush.bf16.msra.mxu0 0
    %486 = vmatpush.bf16.msra.mxu0 %v321
    %487 = vmatpush.bf16.msra.mxu0 %v305
    %488 = vmatmul.bf16.gmra.mxu0 %v361
    %v489 = vpop.f32.mrf.mxu0
    %v490 = vadd.f32 %v177, %v489
    %v491 = vpop.f32.mrf.mxu0
    %492 = vdwg.mxu0
    %493 = vmatpush.bf16.msra.mxu0 0
    %494 = vmatpush.bf16.msra.mxu0 0
    %495 = vmatpush.bf16.msra.mxu0 0
    %496 = vmatpush.bf16.msra.mxu0 0
    %497 = vmatpush.bf16.msra.mxu0 0
    %498 = vmatpush.bf16.msra.mxu0 0
    %499 = vmatpush.bf16.msra.mxu0 %v322
    %500 = vmatpush.bf16.msra.mxu0 %v306
    %501 = vmatmul.bf16.gmra.mxu0 %v361
    %v502 = vpop.f32.mrf.mxu0
    %v503 = vadd.f32 %v178, %v502
    %v504 = vpop.f32.mrf.mxu0
    %505 = vdwg.mxu0
    %506 = vmatpush.bf16.msra.mxu0 0
    %507 = vmatpush.bf16.msra.mxu0 0
    %508 = vmatpush.bf16.msra.mxu0 0
    %509 = vmatpush.bf16.msra.mxu0 0
    %510 = vmatpush.bf16.msra.mxu0 0
    %511 = vmatpush.bf16.msra.mxu0 0
    %512 = vmatpush.bf16.msra.mxu0 %v323
    %513 = vmatpush.bf16.msra.mxu0 %v307
    %514 = vmatmul.bf16.gmra.mxu0 %v361
    %v515 = vpop.f32.mrf.mxu0
    %v516 = vadd.f32 %v179, %v515
    %v517 = vpop.f32.mrf.mxu0
    %518 = vdwg.mxu0
    %519 = vmatpush.bf16.msra.mxu0 0
    %520 = vmatpush.bf16.msra.mxu0 0
    %521 = vmatpush.bf16.msra.mxu0 0
    %522 = vmatpush.bf16.msra.mxu0 0
    %523 = vmatpush.bf16.msra.mxu0 0
    %524 = vmatpush.bf16.msra.mxu0 0
    %525 = vmatpush.bf16.msra.mxu0 %v324
    %526 = vmatpush.bf16.msra.mxu0 %v308
    %527 = vmatmul.bf16.gmra.mxu0 %v361
    %v528 = vpop.f32.mrf.mxu0
    %v529 = vadd.f32 %v180, %v528
    %v530 = vpop.f32.mrf.mxu0
    %531 = vdwg.mxu0
    %532 = vmatpush.bf16.msra.mxu0 0
    %533 = vmatpush.bf16.msra.mxu0 0
    %534 = vmatpush.bf16.msra.mxu0 0
    %535 = vmatpush.bf16.msra.mxu0 0
    %536 = vmatpush.bf16.msra.mxu0 0
    %537 = vmatpush.bf16.msra.mxu0 0
    %538 = vmatpush.bf16.msra.mxu0 %v325
    %539 = vmatpush.bf16.msra.mxu0 %v309
    %540 = vmatmul.bf16.gmra.mxu0 %v361
    %v541 = vpop.f32.mrf.mxu0
    %v542 = vadd.f32 %v181, %v541
    %v543 = vpop.f32.mrf.mxu0
    %544 = vdwg.mxu0
    %545 = vmatpush.bf16.msra.mxu0 0
    %546 = vmatpush.bf16.msra.mxu0 0
    %547 = vmatpush.bf16.msra.mxu0 0
    %548 = vmatpush.bf16.msra.mxu0 0
    %549 = vmatpush.bf16.msra.mxu0 0
    %550 = vmatpush.bf16.msra.mxu0 0
    %551 = vmatpush.bf16.msra.mxu0 %v326
    %552 = vmatpush.bf16.msra.mxu0 %v310
    %553 = vmatmul.bf16.gmra.mxu0 %v361
    %v554 = vpop.f32.mrf.mxu0
    %v555 = vadd.f32 %v182, %v554
    %v556 = vpop.f32.mrf.mxu0
    %557 = vdwg.mxu0
    %558 = vmatpush.bf16.msra.mxu0 0
    %559 = vmatpush.bf16.msra.mxu0 0
    %560 = vmatpush.bf16.msra.mxu0 0
    %561 = vmatpush.bf16.msra.mxu0 0
    %562 = vmatpush.bf16.msra.mxu0 0
    %563 = vmatpush.bf16.msra.mxu0 0
    %564 = vmatpush.bf16.msra.mxu0 %v327
    %565 = vmatpush.bf16.msra.mxu0 %v311
    %566 = vmatmul.bf16.gmra.mxu0 %v361
    %v567 = vpop.f32.mrf.mxu0
    %v568 = vadd.f32 %v183, %v567
    %v569 = vpop.f32.mrf.mxu0
    %570 = vdwg.mxu0
    %v571 = vmax.f32 %v373, 0.0
    %v572 = vmax.f32 %v386, 0.0
    %v573 = vmax.f32 %v399, 0.0
    %v574 = vmax.f32 %v412, 0.0
    %v575 = vmax.f32 %v425, 0.0
    %v576 = vmax.f32 %v438, 0.0
    %v577 = vmax.f32 %v451, 0.0
    %v578 = vmax.f32 %v464, 0.0
    %v579 = vmax.f32 %v477, 0.0
    %v580 = vmax.f32 %v490, 0.0
    %v581 = vmax.f32 %v503, 0.0
    %v582 = vmax.f32 %v516, 0.0
    %v583 = vmax.f32 %v529, 0.0
    %v584 = vmax.f32 %v542, 0.0
    %v585 = vmax.f32 %v555, 0.0
    %v586 = vmax.f32 %v568, 0.0
    %v587 = vpack.c.bf16 %v571, %v571
    %v588 = vpack.c.bf16 %v572, %v572
    %v589 = vpack.c.bf16 %v573, %v573
    %v590 = vpack.c.bf16 %v574, %v574
    %v591 = vpack.c.bf16 %v575, %v575
    %v592 = vpack.c.bf16 %v576, %v576
    %v593 = vpack.c.bf16 %v577, %v577
    %v594 = vpack.c.bf16 %v578, %v578
    %v595 = vpack.c.bf16 %v579, %v579
    %v596 = vpack.c.bf16 %v580, %v580
    %v597 = vpack.c.bf16 %v581, %v581
    %v598 = vpack.c.bf16 %v582, %v582
    %v599 = vpack.c.bf16 %v583, %v583
    %v600 = vpack.c.bf16 %v584, %v584
    %v601 = vpack.c.bf16 %v585, %v585
    %v602 = vpack.c.bf16 %v586, %v586
    %v603 = vperm.slane %v35, 3
    %v636 = vunpack.c.l.b16 %v75
    %v637 = vunpack.c.h.b16 %v75
    %v638 = vunpack.c.l.b16 %v76
    %v639 = vunpack.c.h.b16 %v76
    %v640 = vunpack.c.l.b16 %v77
    %v641 = vunpack.c.h.b16 %v77
    %v642 = vunpack.c.l.b16 %v78
    %v643 = vunpack.c.h.b16 %v78
    %v644 = vunpack.c.l.b16 %v79
    %v645 = vunpack.c.h.b16 %v79
    %v646 = vunpack.c.l.b16 %v80
    %v647 = vunpack.c.h.b16 %v80
    %v648 = vunpack.c.l.b16 %v81
    %v649 = vunpack.c.h.b16 %v81
    %v650 = vunpack.c.l.b16 %v82
    %v651 = vunpack.c.h.b16 %v82
    %v652 = vunpack.c.l.b16 %v83
    %v653 = vunpack.c.h.b16 %v83
    %v654 = vunpack.c.l.b16 %v84
    %v655 = vunpack.c.h.b16 %v84
    %v656 = vunpack.c.l.b16 %v85
    %v657 = vunpack.c.h.b16 %v85
    %v658 = vunpack.c.l.b16 %v86
    %v659 = vunpack.c.h.b16 %v86
    %v660 = vunpack.c.l.b16 %v87
    %v661 = vunpack.c.h.b16 %v87
    %v662 = vunpack.c.l.b16 %v88
    %v663 = vunpack.c.h.b16 %v88
    %v664 = vunpack.c.l.b16 %v89
    %v665 = vunpack.c.h.b16 %v89
    %v666 = vunpack.c.l.b16 %v90
    %v667 = vunpack.c.h.b16 %v90
    %v668 = vunpack.c.l.b16 %v91
    %v669 = vunpack.c.h.b16 %v91
    %v670 = vunpack.c.l.b16 %v92
    %v671 = vunpack.c.h.b16 %v92
    %v672 = vunpack.c.l.b16 %v93
    %v673 = vunpack.c.h.b16 %v93
    %v674 = vunpack.c.l.b16 %v94
    %v675 = vunpack.c.h.b16 %v94
    %v676 = vunpack.c.l.b16 %v95
    %v677 = vunpack.c.h.b16 %v95
    %v678 = vunpack.c.l.b16 %v96
    %v679 = vunpack.c.h.b16 %v96
    %v680 = vunpack.c.l.b16 %v97
    %v681 = vunpack.c.h.b16 %v97
    %v682 = vunpack.c.l.b16 %v98
    %v683 = vunpack.c.h.b16 %v98
    %v684 = vunpack.c.l.b16 %v99
    %v685 = vunpack.c.h.b16 %v99
    %v686 = vunpack.c.l.b16 %v100
    %v687 = vunpack.c.h.b16 %v100
    %v688 = vunpack.c.l.b16 %v101
    %v689 = vunpack.c.h.b16 %v101
    %v690 = vunpack.c.l.b16 %v102
    %v691 = vunpack.c.h.b16 %v102
    %v692 = vunpack.c.l.b16 %v103
    %v693 = vunpack.c.h.b16 %v103
    %v694 = vunpack.c.l.b16 %v104
    %v695 = vunpack.c.h.b16 %v104
    %v696 = vunpack.c.l.b16 %v105
    %v697 = vunpack.c.h.b16 %v105
    %v698 = vunpack.c.l.b16 %v106
    %v699 = vunpack.c.h.b16 %v106
    %v700 = vpack.c.b16 %v652, %v636
    %v701 = vpack.c.b16 %v653, %v637
    %v702 = vpack.c.b16 %v654, %v638
    %v703 = vpack.c.b16 %v655, %v639
    %v704 = vpack.c.b16 %v656, %v640
    %v705 = vpack.c.b16 %v657, %v641
    %v706 = vpack.c.b16 %v658, %v642
    %v707 = vpack.c.b16 %v659, %v643
    %v708 = vpack.c.b16 %v660, %v644
    %v709 = vpack.c.b16 %v661, %v645
    %v710 = vpack.c.b16 %v662, %v646
    %v711 = vpack.c.b16 %v663, %v647
    %v712 = vpack.c.b16 %v664, %v648
    %v713 = vpack.c.b16 %v665, %v649
    %v714 = vpack.c.b16 %v666, %v650
    %v715 = vpack.c.b16 %v667, %v651
    %v716 = vpack.c.b16 %v684, %v668
    %v717 = vpack.c.b16 %v685, %v669
    %v718 = vpack.c.b16 %v686, %v670
    %v719 = vpack.c.b16 %v687, %v671
    %v720 = vpack.c.b16 %v688, %v672
    %v721 = vpack.c.b16 %v689, %v673
    %v722 = vpack.c.b16 %v690, %v674
    %v723 = vpack.c.b16 %v691, %v675
    %v724 = vpack.c.b16 %v692, %v676
    %v725 = vpack.c.b16 %v693, %v677
    %v726 = vpack.c.b16 %v694, %v678
    %v727 = vpack.c.b16 %v695, %v679
    %v728 = vpack.c.b16 %v696, %v680
    %v729 = vpack.c.b16 %v697, %v681
    %v730 = vpack.c.b16 %v698, %v682
    %v731 = vpack.c.b16 %v699, %v683
    %764 = vmatpush.bf16.xpose.msra.mxu0 0
    %765 = vmatpush.bf16.xpose.msra.mxu0 0
    %766 = vmatpush.bf16.xpose.msra.mxu0 0
    %767 = vmatpush.bf16.xpose.msra.mxu0 0
    %768 = vmatpush.bf16.xpose.msra.mxu0 0
    %769 = vmatpush.bf16.xpose.msra.mxu0 0
    %770 = vmatpush.bf16.xpose.msra.mxu0 %v716
    %771 = vmatpush.bf16.xpose.msra.mxu0 %v700
    %772 = vmatmul.bf16.gmra.mxu0 %v587
    %v773 = vpop.f32.mrf.mxu0
    %v774 = vadd.f32 %v603, %v773
    %v775 = vpop.f32.mrf.mxu0
    %776 = vdwg.mxu0
    %777 = vmatpush.bf16.xpose.msra.mxu0 0
    %778 = vmatpush.bf16.xpose.msra.mxu0 0
    %779 = vmatpush.bf16.xpose.msra.mxu0 0
    %780 = vmatpush.bf16.xpose.msra.mxu0 0
    %781 = vmatpush.bf16.xpose.msra.mxu0 0
    %782 = vmatpush.bf16.xpose.msra.mxu0 0
    %783 = vmatpush.bf16.xpose.msra.mxu0 %v717
    %784 = vmatpush.bf16.xpose.msra.mxu0 %v701
    %785 = vmatmul.bf16.gmra.mxu0 %v588
    %v786 = vpop.f32.mrf.mxu0
    %v787 = vadd.f32 %v774, %v786
    %v788 = vpop.f32.mrf.mxu0
    %789 = vdwg.mxu0
    %790 = vmatpush.bf16.xpose.msra.mxu0 0
    %791 = vmatpush.bf16.xpose.msra.mxu0 0
    %792 = vmatpush.bf16.xpose.msra.mxu0 0
    %793 = vmatpush.bf16.xpose.msra.mxu0 0
    %794 = vmatpush.bf16.xpose.msra.mxu0 0
    %795 = vmatpush.bf16.xpose.msra.mxu0 0
    %796 = vmatpush.bf16.xpose.msra.mxu0 %v718
    %797 = vmatpush.bf16.xpose.msra.mxu0 %v702
    %798 = vmatmul.bf16.gmra.mxu0 %v589
    %v799 = vpop.f32.mrf.mxu0
    %v800 = vadd.f32 %v787, %v799
    %v801 = vpop.f32.mrf.mxu0
    %802 = vdwg.mxu0
    %803 = vmatpush.bf16.xpose.msra.mxu0 0
    %804 = vmatpush.bf16.xpose.msra.mxu0 0
    %805 = vmatpush.bf16.xpose.msra.mxu0 0
    %806 = vmatpush.bf16.xpose.msra.mxu0 0
    %807 = vmatpush.bf16.xpose.msra.mxu0 0
    %808 = vmatpush.bf16.xpose.msra.mxu0 0
    %809 = vmatpush.bf16.xpose.msra.mxu0 %v719
    %810 = vmatpush.bf16.xpose.msra.mxu0 %v703
    %811 = vmatmul.bf16.gmra.mxu0 %v590
    %v812 = vpop.f32.mrf.mxu0
    %v813 = vadd.f32 %v800, %v812
    %v814 = vpop.f32.mrf.mxu0
    %815 = vdwg.mxu0
    %816 = vmatpush.bf16.xpose.msra.mxu0 0
    %817 = vmatpush.bf16.xpose.msra.mxu0 0
    %818 = vmatpush.bf16.xpose.msra.mxu0 0
    %819 = vmatpush.bf16.xpose.msra.mxu0 0
    %820 = vmatpush.bf16.xpose.msra.mxu0 0
    %821 = vmatpush.bf16.xpose.msra.mxu0 0
    %822 = vmatpush.bf16.xpose.msra.mxu0 %v720
    %823 = vmatpush.bf16.xpose.msra.mxu0 %v704
    %824 = vmatmul.bf16.gmra.mxu0 %v591
    %v825 = vpop.f32.mrf.mxu0
    %v826 = vadd.f32 %v813, %v825
    %v827 = vpop.f32.mrf.mxu0
    %828 = vdwg.mxu0
    %829 = vmatpush.bf16.xpose.msra.mxu0 0
    %830 = vmatpush.bf16.xpose.msra.mxu0 0
    %831 = vmatpush.bf16.xpose.msra.mxu0 0
    %832 = vmatpush.bf16.xpose.msra.mxu0 0
    %833 = vmatpush.bf16.xpose.msra.mxu0 0
    %834 = vmatpush.bf16.xpose.msra.mxu0 0
    %835 = vmatpush.bf16.xpose.msra.mxu0 %v721
    %836 = vmatpush.bf16.xpose.msra.mxu0 %v705
    %837 = vmatmul.bf16.gmra.mxu0 %v592
    %v838 = vpop.f32.mrf.mxu0
    %v839 = vadd.f32 %v826, %v838
    %v840 = vpop.f32.mrf.mxu0
    %841 = vdwg.mxu0
    %842 = vmatpush.bf16.xpose.msra.mxu0 0
    %843 = vmatpush.bf16.xpose.msra.mxu0 0
    %844 = vmatpush.bf16.xpose.msra.mxu0 0
    %845 = vmatpush.bf16.xpose.msra.mxu0 0
    %846 = vmatpush.bf16.xpose.msra.mxu0 0
    %847 = vmatpush.bf16.xpose.msra.mxu0 0
    %848 = vmatpush.bf16.xpose.msra.mxu0 %v722
    %849 = vmatpush.bf16.xpose.msra.mxu0 %v706
    %850 = vmatmul.bf16.gmra.mxu0 %v593
    %v851 = vpop.f32.mrf.mxu0
    %v852 = vadd.f32 %v839, %v851
    %v853 = vpop.f32.mrf.mxu0
    %854 = vdwg.mxu0
    %855 = vmatpush.bf16.xpose.msra.mxu0 0
    %856 = vmatpush.bf16.xpose.msra.mxu0 0
    %857 = vmatpush.bf16.xpose.msra.mxu0 0
    %858 = vmatpush.bf16.xpose.msra.mxu0 0
    %859 = vmatpush.bf16.xpose.msra.mxu0 0
    %860 = vmatpush.bf16.xpose.msra.mxu0 0
    %861 = vmatpush.bf16.xpose.msra.mxu0 %v723
    %862 = vmatpush.bf16.xpose.msra.mxu0 %v707
    %863 = vmatmul.bf16.gmra.mxu0 %v594
    %v864 = vpop.f32.mrf.mxu0
    %v865 = vadd.f32 %v852, %v864
    %v866 = vpop.f32.mrf.mxu0
    %867 = vdwg.mxu0
    %868 = vmatpush.bf16.xpose.msra.mxu0 0
    %869 = vmatpush.bf16.xpose.msra.mxu0 0
    %870 = vmatpush.bf16.xpose.msra.mxu0 0
    %871 = vmatpush.bf16.xpose.msra.mxu0 0
    %872 = vmatpush.bf16.xpose.msra.mxu0 0
    %873 = vmatpush.bf16.xpose.msra.mxu0 0
    %874 = vmatpush.bf16.xpose.msra.mxu0 %v724
    %875 = vmatpush.bf16.xpose.msra.mxu0 %v708
    %876 = vmatmul.bf16.gmra.mxu0 %v595
    %v877 = vpop.f32.mrf.mxu0
    %v878 = vadd.f32 %v865, %v877
    %v879 = vpop.f32.mrf.mxu0
    %880 = vdwg.mxu0
    %881 = vmatpush.bf16.xpose.msra.mxu0 0
    %882 = vmatpush.bf16.xpose.msra.mxu0 0
    %883 = vmatpush.bf16.xpose.msra.mxu0 0
    %884 = vmatpush.bf16.xpose.msra.mxu0 0
    %885 = vmatpush.bf16.xpose.msra.mxu0 0
    %886 = vmatpush.bf16.xpose.msra.mxu0 0
    %887 = vmatpush.bf16.xpose.msra.mxu0 %v725
    %888 = vmatpush.bf16.xpose.msra.mxu0 %v709
    %889 = vmatmul.bf16.gmra.mxu0 %v596
    %v890 = vpop.f32.mrf.mxu0
    %v891 = vadd.f32 %v878, %v890
    %v892 = vpop.f32.mrf.mxu0
    %893 = vdwg.mxu0
    %894 = vmatpush.bf16.xpose.msra.mxu0 0
    %895 = vmatpush.bf16.xpose.msra.mxu0 0
    %896 = vmatpush.bf16.xpose.msra.mxu0 0
    %897 = vmatpush.bf16.xpose.msra.mxu0 0
    %898 = vmatpush.bf16.xpose.msra.mxu0 0
    %899 = vmatpush.bf16.xpose.msra.mxu0 0
    %900 = vmatpush.bf16.xpose.msra.mxu0 %v726
    %901 = vmatpush.bf16.xpose.msra.mxu0 %v710
    %902 = vmatmul.bf16.gmra.mxu0 %v597
    %v903 = vpop.f32.mrf.mxu0
    %v904 = vadd.f32 %v891, %v903
    %v905 = vpop.f32.mrf.mxu0
    %906 = vdwg.mxu0
    %907 = vmatpush.bf16.xpose.msra.mxu0 0
    %908 = vmatpush.bf16.xpose.msra.mxu0 0
    %909 = vmatpush.bf16.xpose.msra.mxu0 0
    %910 = vmatpush.bf16.xpose.msra.mxu0 0
    %911 = vmatpush.bf16.xpose.msra.mxu0 0
    %912 = vmatpush.bf16.xpose.msra.mxu0 0
    %913 = vmatpush.bf16.xpose.msra.mxu0 %v727
    %914 = vmatpush.bf16.xpose.msra.mxu0 %v711
    %915 = vmatmul.bf16.gmra.mxu0 %v598
    %v916 = vpop.f32.mrf.mxu0
    %v917 = vadd.f32 %v904, %v916
    %v918 = vpop.f32.mrf.mxu0
    %919 = vdwg.mxu0
    %920 = vmatpush.bf16.xpose.msra.mxu0 0
    %921 = vmatpush.bf16.xpose.msra.mxu0 0
    %922 = vmatpush.bf16.xpose.msra.mxu0 0
    %923 = vmatpush.bf16.xpose.msra.mxu0 0
    %924 = vmatpush.bf16.xpose.msra.mxu0 0
    %925 = vmatpush.bf16.xpose.msra.mxu0 0
    %926 = vmatpush.bf16.xpose.msra.mxu0 %v728
    %927 = vmatpush.bf16.xpose.msra.mxu0 %v712
    %928 = vmatmul.bf16.gmra.mxu0 %v599
    %v929 = vpop.f32.mrf.mxu0
    %v930 = vadd.f32 %v917, %v929
    %v931 = vpop.f32.mrf.mxu0
    %932 = vdwg.mxu0
    %933 = vmatpush.bf16.xpose.msra.mxu0 0
    %934 = vmatpush.bf16.xpose.msra.mxu0 0
    %935 = vmatpush.bf16.xpose.msra.mxu0 0
    %936 = vmatpush.bf16.xpose.msra.mxu0 0
    %937 = vmatpush.bf16.xpose.msra.mxu0 0
    %938 = vmatpush.bf16.xpose.msra.mxu0 0
    %939 = vmatpush.bf16.xpose.msra.mxu0 %v729
    %940 = vmatpush.bf16.xpose.msra.mxu0 %v713
    %941 = vmatmul.bf16.gmra.mxu0 %v600
    %v942 = vpop.f32.mrf.mxu0
    %v943 = vadd.f32 %v930, %v942
    %v944 = vpop.f32.mrf.mxu0
    %945 = vdwg.mxu0
    %946 = vmatpush.bf16.xpose.msra.mxu0 0
    %947 = vmatpush.bf16.xpose.msra.mxu0 0
    %948 = vmatpush.bf16.xpose.msra.mxu0 0
    %949 = vmatpush.bf16.xpose.msra.mxu0 0
    %950 = vmatpush.bf16.xpose.msra.mxu0 0
    %951 = vmatpush.bf16.xpose.msra.mxu0 0
    %952 = vmatpush.bf16.xpose.msra.mxu0 %v730
    %953 = vmatpush.bf16.xpose.msra.mxu0 %v714
    %954 = vmatmul.bf16.gmra.mxu0 %v601
    %v955 = vpop.f32.mrf.mxu0
    %v956 = vadd.f32 %v943, %v955
    %v957 = vpop.f32.mrf.mxu0
    %958 = vdwg.mxu0
    %959 = vmatpush.bf16.xpose.msra.mxu0 0
    %960 = vmatpush.bf16.xpose.msra.mxu0 0
    %961 = vmatpush.bf16.xpose.msra.mxu0 0
    %962 = vmatpush.bf16.xpose.msra.mxu0 0
    %963 = vmatpush.bf16.xpose.msra.mxu0 0
    %964 = vmatpush.bf16.xpose.msra.mxu0 0
    %965 = vmatpush.bf16.xpose.msra.mxu0 %v731
    %966 = vmatpush.bf16.xpose.msra.mxu0 %v715
    %967 = vmatmul.bf16.gmra.mxu0 %v602
    %v968 = vpop.f32.mrf.mxu0
    %v969 = vadd.f32 %v956, %v968
    %v970 = vpop.f32.mrf.mxu0
    %971 = vdwg.mxu0
    %v972 = vadd.f32 %v164, %v969
    %v973 = vsel %vm111, %v972, 0.0
    %974 = vadd.xlane.f32.xlu0 %v973
    %v975 = vpop.xlane.xlu0 %974
    %v976 = vmul.f32 %v975, %v139
    %v977 = vmul.f32 %v972, %v972
    %v978 = vsel %vm111, %v977, 0.0
    %979 = vadd.xlane.f32.xlu0 %v978
    %v980 = vpop.xlane.xlu0 %979
    %v981 = vmul.f32 %v980, %v139
    %v982 = vmul.f32 %v976, %v976
    %v983 = vsub.f32 %v981, %v982
    %v984 = vsub.f32 %v972, %v976
    %v985 = vadd.f32 %v983, 1e-05
    %v986 = vrsqrt.pop %v985
    %v987 = vmul.f32 %v986, %v985
    %v988 = vmul.f32 %v987, %v986
    %v989 = vmul.f32 0.5, %v988
    %v990 = vsub.f32 1.5, %v989
    %v991 = vmul.f32 %v986, %v990
    %vm992 = vweird.f32 %v985
    %vm993 = vweird.f32 %v986
    %vm994 = vmor %vm992, %vm993
    %v995 = vsel %vm994, %v986, %v991
    %v996 = vmul.f32 %v984, %v995
    %v997 = vperm.slane %v35, 4
    %v998 = vmul.f32 %v996, %v997
    %v999 = vperm.slane %v35, 5
    %v1000 = vadd.f32 %v998, %v999
    %v1001 = vld [vmem:[%s1 + $0x30] sm:$0xff]
    %v1002 = vld [vmem:[%s1 + $0x38] sm:$0xff]
    %v1003 = vld [vmem:[%s1 + $0x40] sm:$0xff]
    %v1004 = vld [vmem:[%s1 + $0x48] sm:$0xff]
    %v1005 = vpack.c.bf16 %v1002, %v1001
    %v1006 = vpack.c.bf16 %v1004, %v1003
    %v1007 = vld [vmem:[#allocation2 + $0x200] sm:$0xff]
    %v1008 = vld [vmem:[#allocation2 + $0x208] sm:$0xff]
    %v1009 = vld [vmem:[#allocation2 + $0x210] sm:$0xff]
    %v1010 = vld [vmem:[#allocation2 + $0x218] sm:$0xff]
    %v1011 = vld [vmem:[#allocation2 + $0x220] sm:$0xff]
    %v1012 = vld [vmem:[#allocation2 + $0x228] sm:$0xff]
    %v1013 = vld [vmem:[#allocation2 + $0x230] sm:$0xff]
    %v1014 = vld [vmem:[#allocation2 + $0x238] sm:$0xff]
    %v1015 = vld [vmem:[#allocation2 + $0x240] sm:$0xff]
    %v1016 = vld [vmem:[#allocation2 + $0x248] sm:$0xff]
    %v1017 = vld [vmem:[#allocation2 + $0x250] sm:$0xff]
    %v1018 = vld [vmem:[#allocation2 + $0x258] sm:$0xff]
    %v1019 = vld [vmem:[#allocation2 + $0x260] sm:$0xff]
    %v1020 = vld [vmem:[#allocation2 + $0x268] sm:$0xff]
    %v1021 = vld [vmem:[#allocation2 + $0x270] sm:$0xff]
    %v1022 = vld [vmem:[#allocation2 + $0x278] sm:$0xff]
    %v1023 = vld [vmem:[#allocation2 + $0x280] sm:$0xff]
    %v1024 = vld [vmem:[#allocation2 + $0x288] sm:$0xff]
    %v1025 = vld [vmem:[#allocation2 + $0x290] sm:$0xff]
    %v1026 = vld [vmem:[#allocation2 + $0x298] sm:$0xff]
    %v1027 = vld [vmem:[#allocation2 + $0x2a0] sm:$0xff]
    %v1028 = vld [vmem:[#allocation2 + $0x2a8] sm:$0xff]
    %v1029 = vld [vmem:[#allocation2 + $0x2b0] sm:$0xff]
    %v1030 = vld [vmem:[#allocation2 + $0x2b8] sm:$0xff]
    %v1031 = vld [vmem:[#allocation2 + $0x2c0] sm:$0xff]
    %v1032 = vld [vmem:[#allocation2 + $0x2c8] sm:$0xff]
    %v1033 = vld [vmem:[#allocation2 + $0x2d0] sm:$0xff]
    %v1034 = vld [vmem:[#allocation2 + $0x2d8] sm:$0xff]
    %v1035 = vld [vmem:[#allocation2 + $0x2e0] sm:$0xff]
    %v1036 = vld [vmem:[#allocation2 + $0x2e8] sm:$0xff]
    %v1037 = vld [vmem:[#allocation2 + $0x2f0] sm:$0xff]
    %v1038 = vld [vmem:[#allocation2 + $0x2f8] sm:$0xff]
    %v1039 = vld [vmem:[#allocation2 + $0x300] sm:$0xff]
    %v1040 = vld [vmem:[#allocation2 + $0x308] sm:$0xff]
    %v1041 = vld [vmem:[#allocation2 + $0x310] sm:$0xff]
    %v1042 = vld [vmem:[#allocation2 + $0x318] sm:$0xff]
    %v1043 = vld [vmem:[#allocation2 + $0x320] sm:$0xff]
    %v1044 = vld [vmem:[#allocation2 + $0x328] sm:$0xff]
    %v1045 = vld [vmem:[#allocation2 + $0x330] sm:$0xff]
    %v1046 = vld [vmem:[#allocation2 + $0x338] sm:$0xff]
    %v1047 = vld [vmem:[#allocation2 + $0x340] sm:$0xff]
    %v1048 = vld [vmem:[#allocation2 + $0x348] sm:$0xff]
    %v1049 = vld [vmem:[#allocation2 + $0x350] sm:$0xff]
    %v1050 = vld [vmem:[#allocation2 + $0x358] sm:$0xff]
    %v1051 = vld [vmem:[#allocation2 + $0x360] sm:$0xff]
    %v1052 = vld [vmem:[#allocation2 + $0x368] sm:$0xff]
    %v1053 = vld [vmem:[#allocation2 + $0x370] sm:$0xff]
    %v1054 = vld [vmem:[#allocation2 + $0x378] sm:$0xff]
    %v1055 = vld [vmem:[#allocation2 + $0x380] sm:$0xff]
    %v1056 = vld [vmem:[#allocation2 + $0x388] sm:$0xff]
    %v1057 = vld [vmem:[#allocation2 + $0x390] sm:$0xff]
    %v1058 = vld [vmem:[#allocation2 + $0x398] sm:$0xff]
    %v1059 = vld [vmem:[#allocation2 + $0x3a0] sm:$0xff]
    %v1060 = vld [vmem:[#allocation2 + $0x3a8] sm:$0xff]
    %v1061 = vld [vmem:[#allocation2 + $0x3b0] sm:$0xff]
    %v1062 = vld [vmem:[#allocation2 + $0x3b8] sm:$0xff]
    %v1063 = vld [vmem:[#allocation2 + $0x3c0] sm:$0xff]
    %v1064 = vld [vmem:[#allocation2 + $0x3c8] sm:$0xff]
    %v1065 = vld [vmem:[#allocation2 + $0x3d0] sm:$0xff]
    %v1066 = vld [vmem:[#allocation2 + $0x3d8] sm:$0xff]
    %v1067 = vld [vmem:[#allocation2 + $0x3e0] sm:$0xff]
    %v1068 = vld [vmem:[#allocation2 + $0x3e8] sm:$0xff]
    %v1069 = vld [vmem:[#allocation2 + $0x3f0] sm:$0xff]
    %v1070 = vld [vmem:[#allocation2 + $0x3f8] sm:$0xff]
    %s1071 = scalar_lea.vmem %s2, 1
    %v1072 = vld [vmem:[%s1071] ss:$2 sm:$0xff]
    %s1073 = scalar_lea.vmem %s2, 17
    %v1074 = vld [vmem:[%s1073] ss:$2 sm:$0xff]
    %v1075 = vpack.c.bf16 %v1000, %v1000
    %v1077 = vsel %vm111, %v1075, 0
    %1079 = vmatpush.bf16.msra.mxu0 0
    %1080 = vmatpush.bf16.msra.mxu0 0
    %1081 = vmatpush.bf16.msra.mxu0 0
    %1082 = vmatpush.bf16.msra.mxu0 0
    %1083 = vmatpush.bf16.msra.mxu0 0
    %1084 = vmatpush.bf16.msra.mxu0 0
    %1085 = vmatpush.bf16.msra.mxu0 %v1006
    %1086 = vmatpush.bf16.msra.mxu0 %v1005
    %1087 = vmatmul.bf16.gmra.mxu0 %v1077
    %v1088 = vpop.f32.mrf.mxu0
    %v1089 = vadd.f32 %v1000, %v1088
    %v1090 = vpop.f32.mrf.mxu0
    %1091 = vdwg.mxu0
    %v1092 = vperm.slane %v35, 6
    %v1093 = vadd.f32 %v1089, %v1092
    %v1094 = vsel %vm111, %v1093, 0.0
    %1095 = vadd.xlane.f32.xlu0 %v1094
    %v1096 = vpop.xlane.xlu0 %1095
    %v1097 = vmul.f32 %v1096, %v139
    %v1098 = vmul.f32 %v1093, %v1093
    %v1099 = vsel %vm111, %v1098, 0.0
    %1100 = vadd.xlane.f32.xlu0 %v1099
    %v1101 = vpop.xlane.xlu0 %1100
    %v1102 = vmul.f32 %v1101, %v139
    %v1103 = vmul.f32 %v1097, %v1097
    %v1104 = vsub.f32 %v1102, %v1103
    %v1105 = vsub.f32 %v1093, %v1097
    %v1106 = vadd.f32 %v1104, 1e-05
    %v1107 = vrsqrt.pop %v1106
    %v1108 = vmul.f32 %v1107, %v1106
    %v1109 = vmul.f32 %v1108, %v1107
    %v1110 = vmul.f32 0.5, %v1109
    %v1111 = vsub.f32 1.5, %v1110
    %v1112 = vmul.f32 %v1107, %v1111
    %vm1113 = vweird.f32 %v1106
    %vm1114 = vweird.f32 %v1107
    %vm1115 = vmor %vm1113, %vm1114
    %v1116 = vsel %vm1115, %v1107, %v1112
    %v1117 = vmul.f32 %v1105, %v1116
    %v1118 = vperm.slane %v35, 7
    %v1119 = vmul.f32 %v1117, %v1118
    %v1120 = vperm.slane %v36, 0
    %v1121 = vadd.f32 %v1119, %v1120
    %v1122 = vpack.c.bf16 %v1121, %v1121
    %v1125 = vperm.slane %v1072, 0
    %v1126 = vperm.slane %v1072, 1
    %v1127 = vperm.slane %v1072, 2
    %v1128 = vperm.slane %v1072, 3
    %v1129 = vperm.slane %v1072, 4
    %v1130 = vperm.slane %v1072, 5
    %v1131 = vperm.slane %v1072, 6
    %v1132 = vperm.slane %v1072, 7
    %v1133 = vperm.slane %v1074, 0
    %v1134 = vperm.slane %v1074, 1
    %v1135 = vperm.slane %v1074, 2
    %v1136 = vperm.slane %v1074, 3
    %v1137 = vperm.slane %v1074, 4
    %v1138 = vperm.slane %v1074, 5
    %v1139 = vperm.slane %v1074, 6
    %v1140 = vperm.slane %v1074, 7
    %v1189 = vunpack.c.l.b16 %v1007
    %v1190 = vunpack.c.h.b16 %v1007
    %v1191 = vunpack.c.l.b16 %v1008
    %v1192 = vunpack.c.h.b16 %v1008
    %v1193 = vunpack.c.l.b16 %v1009
    %v1194 = vunpack.c.h.b16 %v1009
    %v1195 = vunpack.c.l.b16 %v1010
    %v1196 = vunpack.c.h.b16 %v1010
    %v1197 = vunpack.c.l.b16 %v1011
    %v1198 = vunpack.c.h.b16 %v1011
    %v1199 = vunpack.c.l.b16 %v1012
    %v1200 = vunpack.c.h.b16 %v1012
    %v1201 = vunpack.c.l.b16 %v1013
    %v1202 = vunpack.c.h.b16 %v1013
    %v1203 = vunpack.c.l.b16 %v1014
    %v1204 = vunpack.c.h.b16 %v1014
    %v1205 = vunpack.c.l.b16 %v1015
    %v1206 = vunpack.c.h.b16 %v1015
    %v1207 = vunpack.c.l.b16 %v1016
    %v1208 = vunpack.c.h.b16 %v1016
    %v1209 = vunpack.c.l.b16 %v1017
    %v1210 = vunpack.c.h.b16 %v1017
    %v1211 = vunpack.c.l.b16 %v1018
    %v1212 = vunpack.c.h.b16 %v1018
    %v1213 = vunpack.c.l.b16 %v1019
    %v1214 = vunpack.c.h.b16 %v1019
    %v1215 = vunpack.c.l.b16 %v1020
    %v1216 = vunpack.c.h.b16 %v1020
    %v1217 = vunpack.c.l.b16 %v1021
    %v1218 = vunpack.c.h.b16 %v1021
    %v1219 = vunpack.c.l.b16 %v1022
    %v1220 = vunpack.c.h.b16 %v1022
    %v1221 = vunpack.c.l.b16 %v1023
    %v1222 = vunpack.c.h.b16 %v1023
    %v1223 = vunpack.c.l.b16 %v1024
    %v1224 = vunpack.c.h.b16 %v1024
    %v1225 = vunpack.c.l.b16 %v1025
    %v1226 = vunpack.c.h.b16 %v1025
    %v1227 = vunpack.c.l.b16 %v1026
    %v1228 = vunpack.c.h.b16 %v1026
    %v1229 = vunpack.c.l.b16 %v1027
    %v1230 = vunpack.c.h.b16 %v1027
    %v1231 = vunpack.c.l.b16 %v1028
    %v1232 = vunpack.c.h.b16 %v1028
    %v1233 = vunpack.c.l.b16 %v1029
    %v1234 = vunpack.c.h.b16 %v1029
    %v1235 = vunpack.c.l.b16 %v1030
    %v1236 = vunpack.c.h.b16 %v1030
    %v1237 = vunpack.c.l.b16 %v1031
    %v1238 = vunpack.c.h.b16 %v1031
    %v1239 = vunpack.c.l.b16 %v1032
    %v1240 = vunpack.c.h.b16 %v1032
    %v1241 = vunpack.c.l.b16 %v1033
    %v1242 = vunpack.c.h.b16 %v1033
    %v1243 = vunpack.c.l.b16 %v1034
    %v1244 = vunpack.c.h.b16 %v1034
    %v1245 = vunpack.c.l.b16 %v1035
    %v1246 = vunpack.c.h.b16 %v1035
    %v1247 = vunpack.c.l.b16 %v1036
    %v1248 = vunpack.c.h.b16 %v1036
    %v1249 = vunpack.c.l.b16 %v1037
    %v1250 = vunpack.c.h.b16 %v1037
    %v1251 = vunpack.c.l.b16 %v1038
    %v1252 = vunpack.c.h.b16 %v1038
    %v1253 = vpack.c.b16 %v1205, %v1189
    %v1254 = vpack.c.b16 %v1206, %v1190
    %v1255 = vpack.c.b16 %v1207, %v1191
    %v1256 = vpack.c.b16 %v1208, %v1192
    %v1257 = vpack.c.b16 %v1209, %v1193
    %v1258 = vpack.c.b16 %v1210, %v1194
    %v1259 = vpack.c.b16 %v1211, %v1195
    %v1260 = vpack.c.b16 %v1212, %v1196
    %v1261 = vpack.c.b16 %v1213, %v1197
    %v1262 = vpack.c.b16 %v1214, %v1198
    %v1263 = vpack.c.b16 %v1215, %v1199
    %v1264 = vpack.c.b16 %v1216, %v1200
    %v1265 = vpack.c.b16 %v1217, %v1201
    %v1266 = vpack.c.b16 %v1218, %v1202
    %v1267 = vpack.c.b16 %v1219, %v1203
    %v1268 = vpack.c.b16 %v1220, %v1204
    %v1269 = vpack.c.b16 %v1237, %v1221
    %v1270 = vpack.c.b16 %v1238, %v1222
    %v1271 = vpack.c.b16 %v1239, %v1223
    %v1272 = vpack.c.b16 %v1240, %v1224
    %v1273 = vpack.c.b16 %v1241, %v1225
    %v1274 = vpack.c.b16 %v1242, %v1226
    %v1275 = vpack.c.b16 %v1243, %v1227
    %v1276 = vpack.c.b16 %v1244, %v1228
    %v1277 = vpack.c.b16 %v1245, %v1229
    %v1278 = vpack.c.b16 %v1246, %v1230
    %v1279 = vpack.c.b16 %v1247, %v1231
    %v1280 = vpack.c.b16 %v1248, %v1232
    %v1281 = vpack.c.b16 %v1249, %v1233
    %v1282 = vpack.c.b16 %v1250, %v1234
    %v1283 = vpack.c.b16 %v1251, %v1235
    %v1284 = vpack.c.b16 %v1252, %v1236
    %v1318 = vsel %vm111, %v1122, 0
    %1320 = vmatpush.bf16.msra.mxu0 0
    %1321 = vmatpush.bf16.msra.mxu0 0
    %1322 = vmatpush.bf16.msra.mxu0 0
    %1323 = vmatpush.bf16.msra.mxu0 0
    %1324 = vmatpush.bf16.msra.mxu0 0
    %1325 = vmatpush.bf16.msra.mxu0 0
    %1326 = vmatpush.bf16.msra.mxu0 %v1269
    %1327 = vmatpush.bf16.msra.mxu0 %v1253
    %1328 = vmatmul.bf16.gmra.mxu0 %v1318
    %v1329 = vpop.f32.mrf.mxu0
    %v1330 = vadd.f32 %v1125, %v1329
    %v1331 = vpop.f32.mrf.mxu0
    %1332 = vdwg.mxu0
    %1333 = vmatpush.bf16.msra.mxu0 0
    %1334 = vmatpush.bf16.msra.mxu0 0
    %1335 = vmatpush.bf16.msra.mxu0 0
    %1336 = vmatpush.bf16.msra.mxu0 0
    %1337 = vmatpush.bf16.msra.mxu0 0
    %1338 = vmatpush.bf16.msra.mxu0 0
    %1339 = vmatpush.bf16.msra.mxu0 %v1270
    %1340 = vmatpush.bf16.msra.mxu0 %v1254
    %1341 = vmatmul.bf16.gmra.mxu0 %v1318
    %v1342 = vpop.f32.mrf.mxu0
    %v1343 = vadd.f32 %v1126, %v1342
    %v1344 = vpop.f32.mrf.mxu0
    %1345 = vdwg.mxu0
    %1346 = vmatpush.bf16.msra.mxu0 0
    %1347 = vmatpush.bf16.msra.mxu0 0
    %1348 = vmatpush.bf16.msra.mxu0 0
    %1349 = vmatpush.bf16.msra.mxu0 0
    %1350 = vmatpush.bf16.msra.mxu0 0
    %1351 = vmatpush.bf16.msra.mxu0 0
    %1352 = vmatpush.bf16.msra.mxu0 %v1271
    %1353 = vmatpush.bf16.msra.mxu0 %v1255
    %1354 = vmatmul.bf16.gmra.mxu0 %v1318
    %v1355 = vpop.f32.mrf.mxu0
    %v1356 = vadd.f32 %v1127, %v1355
    %v1357 = vpop.f32.mrf.mxu0
    %1358 = vdwg.mxu0
    %1359 = vmatpush.bf16.msra.mxu0 0
    %1360 = vmatpush.bf16.msra.mxu0 0
    %1361 = vmatpush.bf16.msra.mxu0 0
    %1362 = vmatpush.bf16.msra.mxu0 0
    %1363 = vmatpush.bf16.msra.mxu0 0
    %1364 = vmatpush.bf16.msra.mxu0 0
    %1365 = vmatpush.bf16.msra.mxu0 %v1272
    %1366 = vmatpush.bf16.msra.mxu0 %v1256
    %1367 = vmatmul.bf16.gmra.mxu0 %v1318
    %v1368 = vpop.f32.mrf.mxu0
    %v1369 = vadd.f32 %v1128, %v1368
    %v1370 = vpop.f32.mrf.mxu0
    %1371 = vdwg.mxu0
    %1372 = vmatpush.bf16.msra.mxu0 0
    %1373 = vmatpush.bf16.msra.mxu0 0
    %1374 = vmatpush.bf16.msra.mxu0 0
    %1375 = vmatpush.bf16.msra.mxu0 0
    %1376 = vmatpush.bf16.msra.mxu0 0
    %1377 = vmatpush.bf16.msra.mxu0 0
    %1378 = vmatpush.bf16.msra.mxu0 %v1273
    %1379 = vmatpush.bf16.msra.mxu0 %v1257
    %1380 = vmatmul.bf16.gmra.mxu0 %v1318
    %v1381 = vpop.f32.mrf.mxu0
    %v1382 = vadd.f32 %v1129, %v1381
    %v1383 = vpop.f32.mrf.mxu0
    %1384 = vdwg.mxu0
    %1385 = vmatpush.bf16.msra.mxu0 0
    %1386 = vmatpush.bf16.msra.mxu0 0
    %1387 = vmatpush.bf16.msra.mxu0 0
    %1388 = vmatpush.bf16.msra.mxu0 0
    %1389 = vmatpush.bf16.msra.mxu0 0
    %1390 = vmatpush.bf16.msra.mxu0 0
    %1391 = vmatpush.bf16.msra.mxu0 %v1274
    %1392 = vmatpush.bf16.msra.mxu0 %v1258
    %1393 = vmatmul.bf16.gmra.mxu0 %v1318
    %v1394 = vpop.f32.mrf.mxu0
    %v1395 = vadd.f32 %v1130, %v1394
    %v1396 = vpop.f32.mrf.mxu0
    %1397 = vdwg.mxu0
    %1398 = vmatpush.bf16.msra.mxu0 0
    %1399 = vmatpush.bf16.msra.mxu0 0
    %1400 = vmatpush.bf16.msra.mxu0 0
    %1401 = vmatpush.bf16.msra.mxu0 0
    %1402 = vmatpush.bf16.msra.mxu0 0
    %1403 = vmatpush.bf16.msra.mxu0 0
    %1404 = vmatpush.bf16.msra.mxu0 %v1275
    %1405 = vmatpush.bf16.msra.mxu0 %v1259
    %1406 = vmatmul.bf16.gmra.mxu0 %v1318
    %v1407 = vpop.f32.mrf.mxu0
    %v1408 = vadd.f32 %v1131, %v1407
    %v1409 = vpop.f32.mrf.mxu0
    %1410 = vdwg.mxu0
    %1411 = vmatpush.bf16.msra.mxu0 0
    %1412 = vmatpush.bf16.msra.mxu0 0
    %1413 = vmatpush.bf16.msra.mxu0 0
    %1414 = vmatpush.bf16.msra.mxu0 0
    %1415 = vmatpush.bf16.msra.mxu0 0
    %1416 = vmatpush.bf16.msra.mxu0 0
    %1417 = vmatpush.bf16.msra.mxu0 %v1276
    %1418 = vmatpush.bf16.msra.mxu0 %v1260
    %1419 = vmatmul.bf16.gmra.mxu0 %v1318
    %v1420 = vpop.f32.mrf.mxu0
    %v1421 = vadd.f32 %v1132, %v1420
    %v1422 = vpop.f32.mrf.mxu0
    %1423 = vdwg.mxu0
    %1424 = vmatpush.bf16.msra.mxu0 0
    %1425 = vmatpush.bf16.msra.mxu0 0
    %1426 = vmatpush.bf16.msra.mxu0 0
    %1427 = vmatpush.bf16.msra.mxu0 0
    %1428 = vmatpush.bf16.msra.mxu0 0
    %1429 = vmatpush.bf16.msra.mxu0 0
    %1430 = vmatpush.bf16.msra.mxu0 %v1277
    %1431 = vmatpush.bf16.msra.mxu0 %v1261
    %1432 = vmatmul.bf16.gmra.mxu0 %v1318
    %v1433 = vpop.f32.mrf.mxu0
    %v1434 = vadd.f32 %v1133, %v1433
    %v1435 = vpop.f32.mrf.mxu0
    %1436 = vdwg.mxu0
    %1437 = vmatpush.bf16.msra.mxu0 0
    %1438 = vmatpush.bf16.msra.mxu0 0
    %1439 = vmatpush.bf16.msra.mxu0 0
    %1440 = vmatpush.bf16.msra.mxu0 0
    %1441 = vmatpush.bf16.msra.mxu0 0
    %1442 = vmatpush.bf16.msra.mxu0 0
    %1443 = vmatpush.bf16.msra.mxu0 %v1278
    %1444 = vmatpush.bf16.msra.mxu0 %v1262
    %1445 = vmatmul.bf16.gmra.mxu0 %v1318
    %v1446 = vpop.f32.mrf.mxu0
    %v1447 = vadd.f32 %v1134, %v1446
    %v1448 = vpop.f32.mrf.mxu0
    %1449 = vdwg.mxu0
    %1450 = vmatpush.bf16.msra.mxu0 0
    %1451 = vmatpush.bf16.msra.mxu0 0
    %1452 = vmatpush.bf16.msra.mxu0 0
    %1453 = vmatpush.bf16.msra.mxu0 0
    %1454 = vmatpush.bf16.msra.mxu0 0
    %1455 = vmatpush.bf16.msra.mxu0 0
    %1456 = vmatpush.bf16.msra.mxu0 %v1279
    %1457 = vmatpush.bf16.msra.mxu0 %v1263
    %1458 = vmatmul.bf16.gmra.mxu0 %v1318
    %v1459 = vpop.f32.mrf.mxu0
    %v1460 = vadd.f32 %v1135, %v1459
    %v1461 = vpop.f32.mrf.mxu0
    %1462 = vdwg.mxu0
    %1463 = vmatpush.bf16.msra.mxu0 0
    %1464 = vmatpush.bf16.msra.mxu0 0
    %1465 = vmatpush.bf16.msra.mxu0 0
    %1466 = vmatpush.bf16.msra.mxu0 0
    %1467 = vmatpush.bf16.msra.mxu0 0
    %1468 = vmatpush.bf16.msra.mxu0 0
    %1469 = vmatpush.bf16.msra.mxu0 %v1280
    %1470 = vmatpush.bf16.msra.mxu0 %v1264
    %1471 = vmatmul.bf16.gmra.mxu0 %v1318
    %v1472 = vpop.f32.mrf.mxu0
    %v1473 = vadd.f32 %v1136, %v1472
    %v1474 = vpop.f32.mrf.mxu0
    %1475 = vdwg.mxu0
    %1476 = vmatpush.bf16.msra.mxu0 0
    %1477 = vmatpush.bf16.msra.mxu0 0
    %1478 = vmatpush.bf16.msra.mxu0 0
    %1479 = vmatpush.bf16.msra.mxu0 0
    %1480 = vmatpush.bf16.msra.mxu0 0
    %1481 = vmatpush.bf16.msra.mxu0 0
    %1482 = vmatpush.bf16.msra.mxu0 %v1281
    %1483 = vmatpush.bf16.msra.mxu0 %v1265
    %1484 = vmatmul.bf16.gmra.mxu0 %v1318
    %v1485 = vpop.f32.mrf.mxu0
    %v1486 = vadd.f32 %v1137, %v1485
    %v1487 = vpop.f32.mrf.mxu0
    %1488 = vdwg.mxu0
    %1489 = vmatpush.bf16.msra.mxu0 0
    %1490 = vmatpush.bf16.msra.mxu0 0
    %1491 = vmatpush.bf16.msra.mxu0 0
    %1492 = vmatpush.bf16.msra.mxu0 0
    %1493 = vmatpush.bf16.msra.mxu0 0
    %1494 = vmatpush.bf16.msra.mxu0 0
    %1495 = vmatpush.bf16.msra.mxu0 %v1282
    %1496 = vmatpush.bf16.msra.mxu0 %v1266
    %1497 = vmatmul.bf16.gmra.mxu0 %v1318
    %v1498 = vpop.f32.mrf.mxu0
    %v1499 = vadd.f32 %v1138, %v1498
    %v1500 = vpop.f32.mrf.mxu0
    %1501 = vdwg.mxu0
    %1502 = vmatpush.bf16.msra.mxu0 0
    %1503 = vmatpush.bf16.msra.mxu0 0
    %1504 = vmatpush.bf16.msra.mxu0 0
    %1505 = vmatpush.bf16.msra.mxu0 0
    %1506 = vmatpush.bf16.msra.mxu0 0
    %1507 = vmatpush.bf16.msra.mxu0 0
    %1508 = vmatpush.bf16.msra.mxu0 %v1283
    %1509 = vmatpush.bf16.msra.mxu0 %v1267
    %1510 = vmatmul.bf16.gmra.mxu0 %v1318
    %v1511 = vpop.f32.mrf.mxu0
    %v1512 = vadd.f32 %v1139, %v1511
    %v1513 = vpop.f32.mrf.mxu0
    %1514 = vdwg.mxu0
    %1515 = vmatpush.bf16.msra.mxu0 0
    %1516 = vmatpush.bf16.msra.mxu0 0
    %1517 = vmatpush.bf16.msra.mxu0 0
    %1518 = vmatpush.bf16.msra.mxu0 0
    %1519 = vmatpush.bf16.msra.mxu0 0
    %1520 = vmatpush.bf16.msra.mxu0 0
    %1521 = vmatpush.bf16.msra.mxu0 %v1284
    %1522 = vmatpush.bf16.msra.mxu0 %v1268
    %1523 = vmatmul.bf16.gmra.mxu0 %v1318
    %v1524 = vpop.f32.mrf.mxu0
    %v1525 = vadd.f32 %v1140, %v1524
    %v1526 = vpop.f32.mrf.mxu0
    %1527 = vdwg.mxu0
    %v1528 = vmax.f32 %v1330, 0.0
    %v1529 = vmax.f32 %v1343, 0.0
    %v1530 = vmax.f32 %v1356, 0.0
    %v1531 = vmax.f32 %v1369, 0.0
    %v1532 = vmax.f32 %v1382, 0.0
    %v1533 = vmax.f32 %v1395, 0.0
    %v1534 = vmax.f32 %v1408, 0.0
    %v1535 = vmax.f32 %v1421, 0.0
    %v1536 = vmax.f32 %v1434, 0.0
    %v1537 = vmax.f32 %v1447, 0.0
    %v1538 = vmax.f32 %v1460, 0.0
    %v1539 = vmax.f32 %v1473, 0.0
    %v1540 = vmax.f32 %v1486, 0.0
    %v1541 = vmax.f32 %v1499, 0.0
    %v1542 = vmax.f32 %v1512, 0.0
    %v1543 = vmax.f32 %v1525, 0.0
    %v1544 = vpack.c.bf16 %v1528, %v1528
    %v1545 = vpack.c.bf16 %v1529, %v1529
    %v1546 = vpack.c.bf16 %v1530, %v1530
    %v1547 = vpack.c.bf16 %v1531, %v1531
    %v1548 = vpack.c.bf16 %v1532, %v1532
    %v1549 = vpack.c.bf16 %v1533, %v1533
    %v1550 = vpack.c.bf16 %v1534, %v1534
    %v1551 = vpack.c.bf16 %v1535, %v1535
    %v1552 = vpack.c.bf16 %v1536, %v1536
    %v1553 = vpack.c.bf16 %v1537, %v1537
    %v1554 = vpack.c.bf16 %v1538, %v1538
    %v1555 = vpack.c.bf16 %v1539, %v1539
    %v1556 = vpack.c.bf16 %v1540, %v1540
    %v1557 = vpack.c.bf16 %v1541, %v1541
    %v1558 = vpack.c.bf16 %v1542, %v1542
    %v1559 = vpack.c.bf16 %v1543, %v1543
    %v1560 = vperm.slane %v36, 1
    %v1593 = vunpack.c.l.b16 %v1039
    %v1594 = vunpack.c.h.b16 %v1039
    %v1595 = vunpack.c.l.b16 %v1040
    %v1596 = vunpack.c.h.b16 %v1040
    %v1597 = vunpack.c.l.b16 %v1041
    %v1598 = vunpack.c.h.b16 %v1041
    %v1599 = vunpack.c.l.b16 %v1042
    %v1600 = vunpack.c.h.b16 %v1042
    %v1601 = vunpack.c.l.b16 %v1043
    %v1602 = vunpack.c.h.b16 %v1043
    %v1603 = vunpack.c.l.b16 %v1044
    %v1604 = vunpack.c.h.b16 %v1044
    %v1605 = vunpack.c.l.b16 %v1045
    %v1606 = vunpack.c.h.b16 %v1045
    %v1607 = vunpack.c.l.b16 %v1046
    %v1608 = vunpack.c.h.b16 %v1046
    %v1609 = vunpack.c.l.b16 %v1047
    %v1610 = vunpack.c.h.b16 %v1047
    %v1611 = vunpack.c.l.b16 %v1048
    %v1612 = vunpack.c.h.b16 %v1048
    %v1613 = vunpack.c.l.b16 %v1049
    %v1614 = vunpack.c.h.b16 %v1049
    %v1615 = vunpack.c.l.b16 %v1050
    %v1616 = vunpack.c.h.b16 %v1050
    %v1617 = vunpack.c.l.b16 %v1051
    %v1618 = vunpack.c.h.b16 %v1051
    %v1619 = vunpack.c.l.b16 %v1052
    %v1620 = vunpack.c.h.b16 %v1052
    %v1621 = vunpack.c.l.b16 %v1053
    %v1622 = vunpack.c.h.b16 %v1053
    %v1623 = vunpack.c.l.b16 %v1054
    %v1624 = vunpack.c.h.b16 %v1054
    %v1625 = vunpack.c.l.b16 %v1055
    %v1626 = vunpack.c.h.b16 %v1055
    %v1627 = vunpack.c.l.b16 %v1056
    %v1628 = vunpack.c.h.b16 %v1056
    %v1629 = vunpack.c.l.b16 %v1057
    %v1630 = vunpack.c.h.b16 %v1057
    %v1631 = vunpack.c.l.b16 %v1058
    %v1632 = vunpack.c.h.b16 %v1058
    %v1633 = vunpack.c.l.b16 %v1059
    %v1634 = vunpack.c.h.b16 %v1059
    %v1635 = vunpack.c.l.b16 %v1060
    %v1636 = vunpack.c.h.b16 %v1060
    %v1637 = vunpack.c.l.b16 %v1061
    %v1638 = vunpack.c.h.b16 %v1061
    %v1639 = vunpack.c.l.b16 %v1062
    %v1640 = vunpack.c.h.b16 %v1062
    %v1641 = vunpack.c.l.b16 %v1063
    %v1642 = vunpack.c.h.b16 %v1063
    %v1643 = vunpack.c.l.b16 %v1064
    %v1644 = vunpack.c.h.b16 %v1064
    %v1645 = vunpack.c.l.b16 %v1065
    %v1646 = vunpack.c.h.b16 %v1065
    %v1647 = vunpack.c.l.b16 %v1066
    %v1648 = vunpack.c.h.b16 %v1066
    %v1649 = vunpack.c.l.b16 %v1067
    %v1650 = vunpack.c.h.b16 %v1067
    %v1651 = vunpack.c.l.b16 %v1068
    %v1652 = vunpack.c.h.b16 %v1068
    %v1653 = vunpack.c.l.b16 %v1069
    %v1654 = vunpack.c.h.b16 %v1069
    %v1655 = vunpack.c.l.b16 %v1070
    %v1656 = vunpack.c.h.b16 %v1070
    %v1657 = vpack.c.b16 %v1609, %v1593
    %v1658 = vpack.c.b16 %v1610, %v1594
    %v1659 = vpack.c.b16 %v1611, %v1595
    %v1660 = vpack.c.b16 %v1612, %v1596
    %v1661 = vpack.c.b16 %v1613, %v1597
    %v1662 = vpack.c.b16 %v1614, %v1598
    %v1663 = vpack.c.b16 %v1615, %v1599
    %v1664 = vpack.c.b16 %v1616, %v1600
    %v1665 = vpack.c.b16 %v1617, %v1601
    %v1666 = vpack.c.b16 %v1618, %v1602
    %v1667 = vpack.c.b16 %v1619, %v1603
    %v1668 = vpack.c.b16 %v1620, %v1604
    %v1669 = vpack.c.b16 %v1621, %v1605
    %v1670 = vpack.c.b16 %v1622, %v1606
    %v1671 = vpack.c.b16 %v1623, %v1607
    %v1672 = vpack.c.b16 %v1624, %v1608
    %v1673 = vpack.c.b16 %v1641, %v1625
    %v1674 = vpack.c.b16 %v1642, %v1626
    %v1675 = vpack.c.b16 %v1643, %v1627
    %v1676 = vpack.c.b16 %v1644, %v1628
    %v1677 = vpack.c.b16 %v1645, %v1629
    %v1678 = vpack.c.b16 %v1646, %v1630
    %v1679 = vpack.c.b16 %v1647, %v1631
    %v1680 = vpack.c.b16 %v1648, %v1632
    %v1681 = vpack.c.b16 %v1649, %v1633
    %v1682 = vpack.c.b16 %v1650, %v1634
    %v1683 = vpack.c.b16 %v1651, %v1635
    %v1684 = vpack.c.b16 %v1652, %v1636
    %v1685 = vpack.c.b16 %v1653, %v1637
    %v1686 = vpack.c.b16 %v1654, %v1638
    %v1687 = vpack.c.b16 %v1655, %v1639
    %v1688 = vpack.c.b16 %v1656, %v1640
    %1721 = vmatpush.bf16.xpose.msra.mxu0 0
    %1722 = vmatpush.bf16.xpose.msra.mxu0 0
    %1723 = vmatpush.bf16.xpose.msra.mxu0 0
    %1724 = vmatpush.bf16.xpose.msra.mxu0 0
    %1725 = vmatpush.bf16.xpose.msra.mxu0 0
    %1726 = vmatpush.bf16.xpose.msra.mxu0 0
    %1727 = vmatpush.bf16.xpose.msra.mxu0 %v1673
    %1728 = vmatpush.bf16.xpose.msra.mxu0 %v1657
    %1729 = vmatmul.bf16.gmra.mxu0 %v1544
    %v1730 = vpop.f32.mrf.mxu0
    %v1731 = vadd.f32 %v1560, %v1730
    %v1732 = vpop.f32.mrf.mxu0
    %1733 = vdwg.mxu0
    %1734 = vmatpush.bf16.xpose.msra.mxu0 0
    %1735 = vmatpush.bf16.xpose.msra.mxu0 0
    %1736 = vmatpush.bf16.xpose.msra.mxu0 0
    %1737 = vmatpush.bf16.xpose.msra.mxu0 0
    %1738 = vmatpush.bf16.xpose.msra.mxu0 0
    %1739 = vmatpush.bf16.xpose.msra.mxu0 0
    %1740 = vmatpush.bf16.xpose.msra.mxu0 %v1674
    %1741 = vmatpush.bf16.xpose.msra.mxu0 %v1658
    %1742 = vmatmul.bf16.gmra.mxu0 %v1545
    %v1743 = vpop.f32.mrf.mxu0
    %v1744 = vadd.f32 %v1731, %v1743
    %v1745 = vpop.f32.mrf.mxu0
    %1746 = vdwg.mxu0
    %1747 = vmatpush.bf16.xpose.msra.mxu0 0
    %1748 = vmatpush.bf16.xpose.msra.mxu0 0
    %1749 = vmatpush.bf16.xpose.msra.mxu0 0
    %1750 = vmatpush.bf16.xpose.msra.mxu0 0
    %1751 = vmatpush.bf16.xpose.msra.mxu0 0
    %1752 = vmatpush.bf16.xpose.msra.mxu0 0
    %1753 = vmatpush.bf16.xpose.msra.mxu0 %v1675
    %1754 = vmatpush.bf16.xpose.msra.mxu0 %v1659
    %1755 = vmatmul.bf16.gmra.mxu0 %v1546
    %v1756 = vpop.f32.mrf.mxu0
    %v1757 = vadd.f32 %v1744, %v1756
    %v1758 = vpop.f32.mrf.mxu0
    %1759 = vdwg.mxu0
    %1760 = vmatpush.bf16.xpose.msra.mxu0 0
    %1761 = vmatpush.bf16.xpose.msra.mxu0 0
    %1762 = vmatpush.bf16.xpose.msra.mxu0 0
    %1763 = vmatpush.bf16.xpose.msra.mxu0 0
    %1764 = vmatpush.bf16.xpose.msra.mxu0 0
    %1765 = vmatpush.bf16.xpose.msra.mxu0 0
    %1766 = vmatpush.bf16.xpose.msra.mxu0 %v1676
    %1767 = vmatpush.bf16.xpose.msra.mxu0 %v1660
    %1768 = vmatmul.bf16.gmra.mxu0 %v1547
    %v1769 = vpop.f32.mrf.mxu0
    %v1770 = vadd.f32 %v1757, %v1769
    %v1771 = vpop.f32.mrf.mxu0
    %1772 = vdwg.mxu0
    %1773 = vmatpush.bf16.xpose.msra.mxu0 0
    %1774 = vmatpush.bf16.xpose.msra.mxu0 0
    %1775 = vmatpush.bf16.xpose.msra.mxu0 0
    %1776 = vmatpush.bf16.xpose.msra.mxu0 0
    %1777 = vmatpush.bf16.xpose.msra.mxu0 0
    %1778 = vmatpush.bf16.xpose.msra.mxu0 0
    %1779 = vmatpush.bf16.xpose.msra.mxu0 %v1677
    %1780 = vmatpush.bf16.xpose.msra.mxu0 %v1661
    %1781 = vmatmul.bf16.gmra.mxu0 %v1548
    %v1782 = vpop.f32.mrf.mxu0
    %v1783 = vadd.f32 %v1770, %v1782
    %v1784 = vpop.f32.mrf.mxu0
    %1785 = vdwg.mxu0
    %1786 = vmatpush.bf16.xpose.msra.mxu0 0
    %1787 = vmatpush.bf16.xpose.msra.mxu0 0
    %1788 = vmatpush.bf16.xpose.msra.mxu0 0
    %1789 = vmatpush.bf16.xpose.msra.mxu0 0
    %1790 = vmatpush.bf16.xpose.msra.mxu0 0
    %1791 = vmatpush.bf16.xpose.msra.mxu0 0
    %1792 = vmatpush.bf16.xpose.msra.mxu0 %v1678
    %1793 = vmatpush.bf16.xpose.msra.mxu0 %v1662
    %1794 = vmatmul.bf16.gmra.mxu0 %v1549
    %v1795 = vpop.f32.mrf.mxu0
    %v1796 = vadd.f32 %v1783, %v1795
    %v1797 = vpop.f32.mrf.mxu0
    %1798 = vdwg.mxu0
    %1799 = vmatpush.bf16.xpose.msra.mxu0 0
    %1800 = vmatpush.bf16.xpose.msra.mxu0 0
    %1801 = vmatpush.bf16.xpose.msra.mxu0 0
    %1802 = vmatpush.bf16.xpose.msra.mxu0 0
    %1803 = vmatpush.bf16.xpose.msra.mxu0 0
    %1804 = vmatpush.bf16.xpose.msra.mxu0 0
    %1805 = vmatpush.bf16.xpose.msra.mxu0 %v1679
    %1806 = vmatpush.bf16.xpose.msra.mxu0 %v1663
    %1807 = vmatmul.bf16.gmra.mxu0 %v1550
    %v1808 = vpop.f32.mrf.mxu0
    %v1809 = vadd.f32 %v1796, %v1808
    %v1810 = vpop.f32.mrf.mxu0
    %1811 = vdwg.mxu0
    %1812 = vmatpush.bf16.xpose.msra.mxu0 0
    %1813 = vmatpush.bf16.xpose.msra.mxu0 0
    %1814 = vmatpush.bf16.xpose.msra.mxu0 0
    %1815 = vmatpush.bf16.xpose.msra.mxu0 0
    %1816 = vmatpush.bf16.xpose.msra.mxu0 0
    %1817 = vmatpush.bf16.xpose.msra.mxu0 0
    %1818 = vmatpush.bf16.xpose.msra.mxu0 %v1680
    %1819 = vmatpush.bf16.xpose.msra.mxu0 %v1664
    %1820 = vmatmul.bf16.gmra.mxu0 %v1551
    %v1821 = vpop.f32.mrf.mxu0
    %v1822 = vadd.f32 %v1809, %v1821
    %v1823 = vpop.f32.mrf.mxu0
    %1824 = vdwg.mxu0
    %1825 = vmatpush.bf16.xpose.msra.mxu0 0
    %1826 = vmatpush.bf16.xpose.msra.mxu0 0
    %1827 = vmatpush.bf16.xpose.msra.mxu0 0
    %1828 = vmatpush.bf16.xpose.msra.mxu0 0
    %1829 = vmatpush.bf16.xpose.msra.mxu0 0
    %1830 = vmatpush.bf16.xpose.msra.mxu0 0
    %1831 = vmatpush.bf16.xpose.msra.mxu0 %v1681
    %1832 = vmatpush.bf16.xpose.msra.mxu0 %v1665
    %1833 = vmatmul.bf16.gmra.mxu0 %v1552
    %v1834 = vpop.f32.mrf.mxu0
    %v1835 = vadd.f32 %v1822, %v1834
    %v1836 = vpop.f32.mrf.mxu0
    %1837 = vdwg.mxu0
    %1838 = vmatpush.bf16.xpose.msra.mxu0 0
    %1839 = vmatpush.bf16.xpose.msra.mxu0 0
    %1840 = vmatpush.bf16.xpose.msra.mxu0 0
    %1841 = vmatpush.bf16.xpose.msra.mxu0 0
    %1842 = vmatpush.bf16.xpose.msra.mxu0 0
    %1843 = vmatpush.bf16.xpose.msra.mxu0 0
    %1844 = vmatpush.bf16.xpose.msra.mxu0 %v1682
    %1845 = vmatpush.bf16.xpose.msra.mxu0 %v1666
    %1846 = vmatmul.bf16.gmra.mxu0 %v1553
    %v1847 = vpop.f32.mrf.mxu0
    %v1848 = vadd.f32 %v1835, %v1847
    %v1849 = vpop.f32.mrf.mxu0
    %1850 = vdwg.mxu0
    %1851 = vmatpush.bf16.xpose.msra.mxu0 0
    %1852 = vmatpush.bf16.xpose.msra.mxu0 0
    %1853 = vmatpush.bf16.xpose.msra.mxu0 0
    %1854 = vmatpush.bf16.xpose.msra.mxu0 0
    %1855 = vmatpush.bf16.xpose.msra.mxu0 0
    %1856 = vmatpush.bf16.xpose.msra.mxu0 0
    %1857 = vmatpush.bf16.xpose.msra.mxu0 %v1683
    %1858 = vmatpush.bf16.xpose.msra.mxu0 %v1667
    %1859 = vmatmul.bf16.gmra.mxu0 %v1554
    %v1860 = vpop.f32.mrf.mxu0
    %v1861 = vadd.f32 %v1848, %v1860
    %v1862 = vpop.f32.mrf.mxu0
    %1863 = vdwg.mxu0
    %1864 = vmatpush.bf16.xpose.msra.mxu0 0
    %1865 = vmatpush.bf16.xpose.msra.mxu0 0
    %1866 = vmatpush.bf16.xpose.msra.mxu0 0
    %1867 = vmatpush.bf16.xpose.msra.mxu0 0
    %1868 = vmatpush.bf16.xpose.msra.mxu0 0
    %1869 = vmatpush.bf16.xpose.msra.mxu0 0
    %1870 = vmatpush.bf16.xpose.msra.mxu0 %v1684
    %1871 = vmatpush.bf16.xpose.msra.mxu0 %v1668
    %1872 = vmatmul.bf16.gmra.mxu0 %v1555
    %v1873 = vpop.f32.mrf.mxu0
    %v1874 = vadd.f32 %v1861, %v1873
    %v1875 = vpop.f32.mrf.mxu0
    %1876 = vdwg.mxu0
    %1877 = vmatpush.bf16.xpose.msra.mxu0 0
    %1878 = vmatpush.bf16.xpose.msra.mxu0 0
    %1879 = vmatpush.bf16.xpose.msra.mxu0 0
    %1880 = vmatpush.bf16.xpose.msra.mxu0 0
    %1881 = vmatpush.bf16.xpose.msra.mxu0 0
    %1882 = vmatpush.bf16.xpose.msra.mxu0 0
    %1883 = vmatpush.bf16.xpose.msra.mxu0 %v1685
    %1884 = vmatpush.bf16.xpose.msra.mxu0 %v1669
    %1885 = vmatmul.bf16.gmra.mxu0 %v1556
    %v1886 = vpop.f32.mrf.mxu0
    %v1887 = vadd.f32 %v1874, %v1886
    %v1888 = vpop.f32.mrf.mxu0
    %1889 = vdwg.mxu0
    %1890 = vmatpush.bf16.xpose.msra.mxu0 0
    %1891 = vmatpush.bf16.xpose.msra.mxu0 0
    %1892 = vmatpush.bf16.xpose.msra.mxu0 0
    %1893 = vmatpush.bf16.xpose.msra.mxu0 0
    %1894 = vmatpush.bf16.xpose.msra.mxu0 0
    %1895 = vmatpush.bf16.xpose.msra.mxu0 0
    %1896 = vmatpush.bf16.xpose.msra.mxu0 %v1686
    %1897 = vmatpush.bf16.xpose.msra.mxu0 %v1670
    %1898 = vmatmul.bf16.gmra.mxu0 %v1557
    %v1899 = vpop.f32.mrf.mxu0
    %v1900 = vadd.f32 %v1887, %v1899
    %v1901 = vpop.f32.mrf.mxu0
    %1902 = vdwg.mxu0
    %1903 = vmatpush.bf16.xpose.msra.mxu0 0
    %1904 = vmatpush.bf16.xpose.msra.mxu0 0
    %1905 = vmatpush.bf16.xpose.msra.mxu0 0
    %1906 = vmatpush.bf16.xpose.msra.mxu0 0
    %1907 = vmatpush.bf16.xpose.msra.mxu0 0
    %1908 = vmatpush.bf16.xpose.msra.mxu0 0
    %1909 = vmatpush.bf16.xpose.msra.mxu0 %v1687
    %1910 = vmatpush.bf16.xpose.msra.mxu0 %v1671
    %1911 = vmatmul.bf16.gmra.mxu0 %v1558
    %v1912 = vpop.f32.mrf.mxu0
    %v1913 = vadd.f32 %v1900, %v1912
    %v1914 = vpop.f32.mrf.mxu0
    %1915 = vdwg.mxu0
    %1916 = vmatpush.bf16.xpose.msra.mxu0 0
    %1917 = vmatpush.bf16.xpose.msra.mxu0 0
    %1918 = vmatpush.bf16.xpose.msra.mxu0 0
    %1919 = vmatpush.bf16.xpose.msra.mxu0 0
    %1920 = vmatpush.bf16.xpose.msra.mxu0 0
    %1921 = vmatpush.bf16.xpose.msra.mxu0 0
    %1922 = vmatpush.bf16.xpose.msra.mxu0 %v1688
    %1923 = vmatpush.bf16.xpose.msra.mxu0 %v1672
    %1924 = vmatmul.bf16.gmra.mxu0 %v1559
    %v1925 = vpop.f32.mrf.mxu0
    %v1926 = vadd.f32 %v1913, %v1925
    %v1927 = vpop.f32.mrf.mxu0
    %1928 = vdwg.mxu0
    %v1929 = vadd.f32 %v1121, %v1926
    %v1930 = vsel %vm111, %v1929, 0.0
    %1931 = vadd.xlane.f32.xlu0 %v1930
    %v1932 = vpop.xlane.xlu0 %1931
    %v1933 = vmul.f32 %v1932, %v139
    %v1934 = vmul.f32 %v1929, %v1929
    %v1935 = vsel %vm111, %v1934, 0.0
    %1936 = vadd.xlane.f32.xlu0 %v1935
    %v1937 = vpop.xlane.xlu0 %1936
    %v1938 = vmul.f32 %v1937, %v139
    %v1939 = vmul.f32 %v1933, %v1933
    %v1940 = vsub.f32 %v1938, %v1939
    %v1941 = vsub.f32 %v1929, %v1933
    %v1942 = vadd.f32 %v1940, 1e-05
    %v1943 = vrsqrt.pop %v1942
    %v1944 = vmul.f32 %v1943, %v1942
    %v1945 = vmul.f32 %v1944, %v1943
    %v1946 = vmul.f32 0.5, %v1945
    %v1947 = vsub.f32 1.5, %v1946
    %v1948 = vmul.f32 %v1943, %v1947
    %vm1949 = vweird.f32 %v1942
    %vm1950 = vweird.f32 %v1943
    %vm1951 = vmor %vm1949, %vm1950
    %v1952 = vsel %vm1951, %v1943, %v1948
    %v1953 = vmul.f32 %v1941, %v1952
    %v1954 = vperm.slane %v36, 2
    %v1955 = vmul.f32 %v1953, %v1954
    %v1956 = vperm.slane %v36, 3
    %v1957 = vadd.f32 %v1955, %v1956
    %v1958 = vperm.slane %v36, 4
    %v1959 = vmul.f32 %v1957, %v1958
    %v1960 = vsel %vm111, %v1959, 0.0
    %1961 = vadd.xlane.f32.xlu0 %v1960
    %v1962 = vpop.xlane.xlu0 %1961
    %v1963 = vperm.slane %v36, 5
    %v1964 = vadd.f32 %v1962, %v1963
    %vm1965 = vcmask 7168
    %1966 = vst.msk [vmem:[%s4] sm:$0xff] %vm1965, %v1964
    // Predicated region
    $region22: #{tpu_custom_call.1} parent=1 // pred_check
      _
    $region23: #{tpu_custom_call.1} parent=1 // pred_check_branch
      %1968 = sbr.rel (0) target = $region25
    $region24: #{tpu_custom_call.1} parent=1 // pred_region
      _
    $region25: #{tpu_custom_call.1} parent=1 // pred_fallthru
      _
    // Predicated region
    $region26: #{tpu_custom_call.1} parent=1 // pred_check
      _
    $region27: #{tpu_custom_call.1} parent=1 // pred_check_branch
      %1970 = sbr.rel (0) target = $region29
    $region28: #{tpu_custom_call.1} parent=1 // pred_region
      _
    $region29: #{tpu_custom_call.1} parent=1 // pred_fallthru
      _
    %1971 = vsyncpa [#allocation3], 1

</llo_original>
